<compile_context>
chip_gen: v7x
topology: tpu7x:2x2x1
jax: 0.10.0
libtpu: 0.0.40
codegen_flags: <defaults>
</compile_context>

<pallas_src>
import numpy as np
import jax
import jax.numpy as jnp
from jax.experimental import pallas as pl
from jax.experimental.pallas import tpu as pltpu


_LANE = 128          # pad GEMM output channels to a lane-dense multiple
_PALLAS_MIN_M = 256  # GEMMs with fewer rows stay in XLA (dispatch-bound otherwise)
_TM_CAP = 1024       # max rows per grid block


def _round_up(x, m):
    return (x + m - 1) // m * m


def _apply_act(r, act):
    if act == "leaky_relu":
        return jnp.where(r > 0, r, 0.2 * r)
    if act == "relu":
        return jnp.maximum(r, 0.0)
    if act == "sigmoid":
        return jax.nn.sigmoid(r)
    return r


# ----------------------------------------------------------------------------
# Pallas kernel: matmul with fused bias + activation epilogue (full-K block)
# ----------------------------------------------------------------------------
def _mm_bias_act_kernel(act):
    def kernel(a_ref, b_ref, bias_ref, o_ref):
        r = jnp.dot(a_ref[...], b_ref[...], preferred_element_type=jnp.float32)
        r = r + bias_ref[...]
        o_ref[...] = _apply_act(r, act).astype(o_ref.dtype)

    return kernel


def matmul_bias_act(a, wmat, bias2d, n_true, act="none", out_dtype=jnp.bfloat16):
    """(M, K) @ (K, Np) + bias with fused activation -> (M, n_true) out_dtype.

    wmat is a bf16 GEMM-ready weight zero-padded to Np = round_up(n_true, 128).
    Large-M GEMMs run as one Pallas kernel: full-K / lane-padded-N blocks, bf16
    MXU operands, f32 accumulate + epilogue, >= 2 parallel grid blocks (megacore
    on v7x).  Small-M GEMMs stay in XLA so they fuse with surrounding glue.
    """
    M, K = a.shape
    a = a.astype(jnp.bfloat16)

    if M < _PALLAS_MIN_M:
        # Tiny GEMM: pure XLA (fuses with the concat/reshape glue around it).
        r = jnp.dot(a, wmat[:, :n_true], preferred_element_type=jnp.float32)
        r = r + bias2d[:, :n_true]
        return _apply_act(r, act).astype(out_dtype)

    Np = wmat.shape[1]
    tm = min(_TM_CAP, _round_up((M + 1) // 2, 16))   # >=2 blocks -> both v7x TCs
    nblk = -(-M // tm)
    Mp = nblk * tm
    if Mp != M:
        a = jnp.pad(a, ((0, Mp - M), (0, 0)))

    out = pl.pallas_call(
        _mm_bias_act_kernel(act),
        out_shape=jax.ShapeDtypeStruct((Mp, Np), out_dtype),
        grid_spec=pltpu.PrefetchScalarGridSpec(
            num_scalar_prefetch=0,
            grid=(nblk,),
            in_specs=[
                pl.BlockSpec((tm, K), lambda i: (i, 0)),
                pl.BlockSpec((K, Np), lambda i: (0, 0)),
                pl.BlockSpec((1, Np), lambda i: (0, 0)),
            ],
            out_specs=pl.BlockSpec((tm, Np), lambda i: (i, 0)),
        ),
        compiler_params=pltpu.CompilerParams(
            dimension_semantics=("parallel",)),
    )(a, wmat, bias2d)
    return out[:M, :n_true]


# ----------------------------------------------------------------------------
# GEMM-ready weight transforms (done ONCE at init), lane-padded to 128 cols
# ----------------------------------------------------------------------------
def _pad_gemm_weight(wmat_np, bias_np):
    """(K, N) f32 weight + (N,) bias -> bf16 (K, Np) weight, f32 (1, Np) bias, N."""
    K, N = wmat_np.shape
    Np = _round_up(N, _LANE)
    wpad = np.zeros((K, Np), np.float32)
    wpad[:, :N] = wmat_np
    bpad = np.zeros((1, Np), np.float32)
    bpad[0, :N] = bias_np
    return jnp.asarray(wpad, jnp.bfloat16), jnp.asarray(bpad, jnp.float32), N


def _conv_wmat(w_np):
    """torch Conv2d weight (O, I, kh, kw) -> (kh*kw*I, O), row order (i, j, c)."""
    O, I, kh, kw = w_np.shape
    return np.transpose(w_np, (2, 3, 1, 0)).reshape(kh * kw * I, O)


def _subpixel_wmat(w_np):
    """torch ConvTranspose2d weight (I, O, 4, 4), stride=2, pad=1 ->
    sub-pixel GEMM weight (9*I, 4*O).

    Rows ordered (dh, dw, i) over the 3x3 stride-1 taps of the pad=1 input;
    columns ordered (py*2 + px, o) over output parity classes."""
    I, O, kh, kw = w_np.shape
    assert kh == 4 and kw == 4
    m = np.zeros((3, 3, I, 2, 2, O), np.float32)
    for py in range(2):
        for px in range(2):
            for dhp in range(2):
                for dwp in range(2):
                    ky = 3 - py - 2 * dhp
                    kx = 3 - px - 2 * dwp
                    m[py + dhp, px + dwp, :, py, px, :] = w_np[:, :, ky, kx]
    return m.reshape(9 * I, 4 * O)


# ----------------------------------------------------------------------------
# Conv / transposed conv on top of the (Pallas | XLA) GEMM
# ----------------------------------------------------------------------------
def conv2d_gemm(x, layer, kh, kw, stride, pad, act, out_dtype=jnp.bfloat16):
    """x NHWC; layer = (wmat (kh*kw*I, Np) bf16, bias (1, Np) f32, n_true)."""
    wmat, b2, n = layer
    x = x.astype(jnp.bfloat16)
    if pad > 0:
        x = jnp.pad(x, ((0, 0), (pad, pad), (pad, pad), (0, 0)))
    B, H, W, C = x.shape
    Ho = (H - kh) // stride + 1
    Wo = (W - kw) // stride + 1
    cols = []
    for i in range(kh):
        for j in range(kw):
            cols.append(x[:, i:i + stride * (Ho - 1) + 1:stride,
                          j:j + stride * (Wo - 1) + 1:stride, :])
    a = jnp.concatenate(cols, axis=-1).reshape(B * Ho * Wo, kh * kw * C)
    y = matmul_bias_act(a, wmat, b2, n, act, out_dtype)
    return y.reshape(B, Ho, Wo, n)


def conv_transpose2d_subpixel(x, layer, act, out_dtype=jnp.bfloat16):
    """ConvTranspose2d(k=4, s=2, p=1) as a sub-pixel conv.

    x NHWC (B,H,W,I); layer weight from _subpixel_wmat; output (B,2H,2W,O)."""
    wmat, b2, n4 = layer                      # n4 = 4 * O
    B, H, W, C = x.shape
    xp = jnp.pad(x.astype(jnp.bfloat16), ((0, 0), (1, 1), (1, 1), (0, 0)))
    cols = []
    for dh in range(3):
        for dw in range(3):
            cols.append(xp[:, dh:dh + H, dw:dw + W, :])
    a = jnp.concatenate(cols, axis=-1).reshape(B * H * W, 9 * C)
    y = matmul_bias_act(a, wmat, b2, n4, act, out_dtype)      # (B*H*W, 4*O)
    O = n4 // 4
    y = y.reshape(B, H, W, 2, 2, O)                           # (.., py, px, o)
    y = jnp.transpose(y, (0, 1, 3, 2, 4, 5)).reshape(B, 2 * H, 2 * W, O)
    return y


# ----------------------------------------------------------------------------
# WGADA model (forward pass only), parameters initialized deterministically
# ----------------------------------------------------------------------------
class WGADAPallas:
    # TODO(synk): exact UNet / FullyConvFeatExtractor / FullyConvFC definitions
    # were not included in the reference snippet; standard pix2pix-style
    # k=4/s=2/p=1 blocks with LeakyReLU(0.2) encoder, ReLU decoder, skip
    # connections and a Sigmoid head are used (constructor args are honored).
    def __init__(self, key, nb_distortions=4, z_noise_dim=8,
                 g_blocks=(8, 16, 16, 16), f_blocks=None,
                 dist_level_emb_repeat=4, dist_categ_emb_repeat=2,
                 target_im_size=32, output_channels=3):
        f_blocks = g_blocks if f_blocks is None else f_blocks
        self.nb = nb_distortions
        self.z_dim = z_noise_dim
        self.g_blocks = tuple(g_blocks)
        self.f_blocks = tuple(f_blocks)
        self.dlr = dist_level_emb_repeat
        self.dcr = dist_categ_emb_repeat
        self.cat_emb = (dist_level_emb_repeat
                        + dist_categ_emb_repeat * nb_distortions + z_noise_dim)
        self.out_ch = output_channels
        self.target_im_size = target_im_size

        keys = iter(jax.random.split(key, 64))

        def w_conv(o, i, k):
            return np.asarray(
                jax.random.normal(next(keys), (o, i, k, k), jnp.float32)) * 0.05

        def w_tconv(i, o, k):
            return np.asarray(
                jax.random.normal(next(keys), (i, o, k, k), jnp.float32)) * 0.05

        # G encoder: Conv(k4,s2,p1) + LeakyReLU, channels g_blocks (GEMM-ready)
        enc_ch = [3 + 2 * nb_distortions] + list(g_blocks)
        self.g_enc = [
            _pad_gemm_weight(_conv_wmat(w_conv(enc_ch[i + 1], enc_ch[i], 4)),
                             np.zeros((enc_ch[i + 1],), np.float32))
            for i in range(len(g_blocks))]

        # G decoder: ConvTranspose(k4,s2,p1) as sub-pixel GEMM, skip concat
        n = len(g_blocks)
        dec_specs = []
        prev = g_blocks[-1] + self.cat_emb
        for i in range(n - 1, 0, -1):
            dec_specs.append((prev, g_blocks[i - 1]))
            prev = 2 * g_blocks[i - 1]
        dec_specs.append((prev, output_channels))
        self.g_dec = []
        for ic, oc in dec_specs:
            w = w_tconv(ic, oc, 4)
            b = np.zeros((oc,), np.float32)
            self.g_dec.append(_pad_gemm_weight(_subpixel_wmat(w), np.tile(b, 4)))

        # F: FullyConvFeatExtractor — Conv(k4,s2,p1)+LeakyReLU, channels f_blocks
        f_ch = [3] + list(f_blocks)
        self.f_convs = [
            _pad_gemm_weight(_conv_wmat(w_conv(f_ch[i + 1], f_ch[i], 4)),
                             np.zeros((f_ch[i + 1],), np.float32))
            for i in range(len(f_blocks))]
        self.f_out_ch = f_blocks[-1]

        # D / C / E heads: FullyConvFC (1x1 conv) fused into one GEMM
        def fc_w(i, o):
            return np.asarray(
                jax.random.normal(next(keys), (i, o), jnp.float32)) * 0.05

        head_w = np.concatenate(
            [fc_w(self.f_out_ch, 1), fc_w(self.f_out_ch, nb_distortions),
             fc_w(self.f_out_ch, 1)], axis=1)
        self.head_w, self.head_b, self.head_n = _pad_gemm_weight(
            head_w, np.zeros((2 + nb_distortions,), np.float32))

        # Jit the whole forward: glue ops fuse, all Pallas calls dispatch from
        # one compiled program.
        self._jit_forward = jax.jit(self._forward_impl)

    # ------------------------------------------------------------------
    def encoder_shape(self, im_shape):
        B, C, H, W = im_shape
        n = len(self.g_blocks)
        return (B, self.g_blocks[-1], H // (2 ** n), W // (2 ** n))

    def distortion_embeddings(self, y_dist_categ, y_dist_level, im_shape):
        B, C, H, W = im_shape
        onehot = jax.nn.one_hot(y_dist_categ[:, 0].astype(jnp.int32),
                                self.nb, dtype=jnp.float32)            # (B, nb)
        dlevel_in = jnp.repeat(y_dist_level, self.nb, axis=1)          # (B, nb)
        enc_emb = jnp.concatenate([onehot, dlevel_in], axis=1)         # (B, 2nb)
        enc_emb = jnp.broadcast_to(enc_emb[:, None, None, :],
                                   (B, H, W, enc_emb.shape[1]))

        eB, eC, eH, eW = self.encoder_shape(im_shape)
        dlevel_out = jnp.repeat(y_dist_level, self.dlr, axis=1)
        dcateg_out = jnp.repeat(onehot, self.dcr, axis=1)
        dec_emb = jnp.concatenate([dcateg_out, dlevel_out], axis=1)
        dec_emb = jnp.broadcast_to(dec_emb[:, None, None, :],
                                   (B, eH, eW, dec_emb.shape[1]))
        return enc_emb, dec_emb

    def generate_znoise(self, im_shape, key):
        B, C, H, W = im_shape
        _, _, eH, eW = self.encoder_shape(im_shape)
        return jax.random.normal(key, (B, eH, eW, self.z_dim), jnp.float32) * 0.1

    # ------------------------------------------------------------------
    def _g_forward(self, enc_in, dec_extra):
        feats = []
        h = enc_in
        for layer in self.g_enc:
            h = conv2d_gemm(h, layer, 4, 4, stride=2, pad=1,
                            act="leaky_relu", out_dtype=jnp.bfloat16)
            feats.append(h)
        h = jnp.concatenate([feats[-1], dec_extra.astype(jnp.bfloat16)], axis=-1)
        n = len(self.g_dec)
        for d, layer in enumerate(self.g_dec):
            last = (d == n - 1)
            act = "sigmoid" if last else "relu"
            odt = jnp.float32 if last else jnp.bfloat16
            h = conv_transpose2d_subpixel(h, layer, act=act, out_dtype=odt)
            if not last:
                h = jnp.concatenate([h, feats[n - 2 - d]], axis=-1)
        return h

    def _f_forward(self, x):
        h = x
        nl = len(self.f_convs)
        for li, layer in enumerate(self.f_convs):
            odt = jnp.float32 if li == nl - 1 else jnp.bfloat16
            h = conv2d_gemm(h, layer, 4, 4, stride=2, pad=1,
                            act="leaky_relu", out_dtype=odt)
        return h

    # ------------------------------------------------------------------
    def _forward_impl(self, x_ref, x_dist, y_dist_categ, y_dist_level, key):
        """x_ref, x_dist: NCHW; y_dist_categ, y_dist_level: (B, 1)."""
        B, C, H, W = x_ref.shape
        x_ref_h = jnp.transpose(x_ref, (0, 2, 3, 1))
        x_dist_h = jnp.transpose(x_dist, (0, 2, 3, 1))

        z_noise = self.generate_znoise((B, C, H, W), key)
        enc_emb, dec_emb = self.distortion_embeddings(
            y_dist_categ, y_dist_level, (B, C, H, W))
        enc_in = jnp.concatenate([x_ref_h, enc_emb], axis=-1)
        dec_extra = jnp.concatenate([dec_emb, z_noise], axis=-1)

        fake_img = self._g_forward(enc_in, dec_extra)

        # One batched F pass over fake + real images.
        feat_all = self._f_forward(jnp.concatenate([fake_img, x_dist_h], axis=0))

        # One fused GEMM for the D / C / E 1x1 heads on the batched features.
        B2, eH, eW, Cf = feat_all.shape
        heads = matmul_bias_act(feat_all.reshape(B2 * eH * eW, Cf),
                                self.head_w, self.head_b, self.head_n,
                                act="none", out_dtype=jnp.float32)
        heads = heads.reshape(B2, eH, eW, self.head_n)
        conf_all = heads[..., 0:1]
        type_all = heads[..., 1:1 + self.nb]
        lvl_all = jax.nn.sigmoid(heads[..., 1 + self.nb:2 + self.nb])

        fake_feat, real_feat = feat_all[:B], feat_all[B:]
        fake_conf, real_conf = conf_all[:B], conf_all[B:]
        fake_type, real_type = type_all[:B], type_all[B:]
        fake_lvl, real_lvl = lvl_all[:B], lvl_all[B:]

        to_nchw = lambda t: jnp.transpose(t, (0, 3, 1, 2))
        fake_pred = [to_nchw(fake_img), to_nchw(fake_feat), to_nchw(fake_conf),
                     to_nchw(fake_type), to_nchw(fake_lvl)]
        real_pred = [x_dist, to_nchw(real_feat), to_nchw(real_conf),
                     to_nchw(real_type), to_nchw(real_lvl)]
        return fake_pred, real_pred

    def forward(self, x_ref, x_dist, y_dist_categ, y_dist_level, key):
        return self._jit_forward(x_ref, x_dist, y_dist_categ, y_dist_level, key)


# ----------------------------------------------------------------------------
if __name__ == "__main__":
    key = jax.random.PRNGKey(0)
    k_params, k_x1, k_x2, k_z = jax.random.split(key, 4)

    B, C, H, W = 2, 3, 32, 32
    model = WGADAPallas(k_params,
                        nb_distortions=4, z_noise_dim=8,
                        g_blocks=(8, 16, 16, 16),
                        dist_level_emb_repeat=4, dist_categ_emb_repeat=2,
                        target_im_size=H)

    x_ref = jax.random.uniform(k_x1, (B, C, H, W), jnp.float32)
    x_dist = jax.random.uniform(k_x2, (B, C, H, W), jnp.float32)
    y_dist_categ = jnp.array([[1.0], [3.0]], jnp.float32)
    y_dist_level = jnp.array([[0.3], [0.7]], jnp.float32)

    fake_pred, real_pred = model.forward(x_ref, x_dist,
                                         y_dist_categ, y_dist_level, k_z)
    jax.block_until_ready(fake_pred[0])
    jax.block_until_ready(real_pred[-1])

    assert fake_pred[0].shape == (B, 3, H, W)          # fake image
    assert fake_pred[1].shape[1] == 16                 # feature extractor
    assert fake_pred[2].shape[1] == 1                  # critic head
    assert fake_pred[3].shape[1] == 4                  # classifier head
    assert fake_pred[4].shape[1] == 1                  # evaluator head
    assert real_pred[2].shape == fake_pred[2].shape
    assert bool(jnp.all(jnp.isfinite(fake_pred[0])))
    print("KERNEL_OK")
</pallas_src>

<mosaic_0001>
module attributes {stable_mosaic.version = 11 : i64} {
  func.func @kernel(%arg0: i32, %arg1: memref<256x176xbf16, #tpu.memory_space<vmem>>, %arg2: memref<176x128xbf16, #tpu.memory_space<vmem>>, %arg3: memref<1x128xf32, #tpu.memory_space<vmem>>, %arg4: memref<256x128xbf16, #tpu.memory_space<vmem>>) attributes {dimension_semantics = [#tpu.dimension_semantics<parallel>], iteration_bounds = array<i64: 2>, scalar_prefetch = 0 : i64, scratch_operands = 0 : i64, tpu.core_type = #tpu.core_type<tc>, window_params = [{transform_indices = @transform_0, window_bounds = array<i64: 256, 176>}, {pipeline_mode = #tpu.pipeline_mode<synchronous>, transform_indices = @transform_1, window_bounds = array<i64: 176, 128>}, {pipeline_mode = #tpu.pipeline_mode<synchronous>, transform_indices = @transform_2, window_bounds = array<i64: 1, 128>}, {transform_indices = @transform_3, window_bounds = array<i64: 256, 128>}]} {
    %c0 = arith.constant 0 : index
    %c0_0 = arith.constant 0 : index
    %0 = vector.load %arg1[%c0, %c0_0] : memref<256x176xbf16, #tpu.memory_space<vmem>>, vector<256x176xbf16>
    %c0_1 = arith.constant 0 : index
    %c0_2 = arith.constant 0 : index
    %1 = vector.load %arg2[%c0_1, %c0_2] : memref<176x128xbf16, #tpu.memory_space<vmem>>, vector<176x128xbf16>
    %cst = arith.constant dense<0.000000e+00> : vector<256x128xf32>
    %2 = tpu.matmul %0, %1, %cst {dimension_numbers = #tpu.dot_dimension_numbers<[1], [0], [0], [1], [0, 0, 1, 1], [], []>} : vector<256x176xbf16>, vector<176x128xbf16>, vector<256x128xf32> -> vector<256x128xf32>
    %c0_3 = arith.constant 0 : index
    %c0_4 = arith.constant 0 : index
    %3 = vector.load %arg3[%c0_3, %c0_4] : memref<1x128xf32, #tpu.memory_space<vmem>>, vector<1x128xf32>
    %4 = vector.broadcast %3 : vector<1x128xf32> to vector<256x128xf32>
    %5 = arith.addf %2, %4 : vector<256x128xf32>
    %cst_5 = arith.constant 0.000000e+00 : f32
    %6 = vector.broadcast %cst_5 : f32 to vector<256x128xf32>
    %7 = arith.cmpf ogt, %5, %6 : vector<256x128xf32>
    %cst_6 = arith.constant 2.000000e-01 : f32
    %8 = vector.broadcast %cst_6 : f32 to vector<256x128xf32>
    %9 = arith.mulf %8, %5 : vector<256x128xf32>
    %10 = arith.select %7, %5, %9 : vector<256x128xi1>, vector<256x128xf32>
    %11 = arith.truncf %10 : vector<256x128xf32> to vector<256x128xbf16>
    %c0_7 = arith.constant 0 : index
    %c0_8 = arith.constant 0 : index
    %12 = vector.load %arg4[%c0_7, %c0_8] : memref<256x128xbf16, #tpu.memory_space<vmem>>, vector<256x128xbf16>
    tpu.vector_store %arg4[%c0_7, %c0_8], %11 {strides = array<i32>} : memref<256x128xbf16, #tpu.memory_space<vmem>>, vector<256x128xbf16>,
    return
  }
  func.func @transform_0(%arg0: i32) -> (i32, i32) {
    %c0_i32 = arith.constant 0 : i32
    %c0_i32_0 = arith.constant 0 : i32
    return %arg0, %c0_i32 : i32, i32
  }
  func.func @transform_1(%arg0: i32) -> (i32, i32) {
    %c0_i32 = arith.constant 0 : i32
    %c0_i32_0 = arith.constant 0 : i32
    %c0_i32_1 = arith.constant 0 : i32
    return %c0_i32, %c0_i32_0 : i32, i32
  }
  func.func @transform_2(%arg0: i32) -> (i32, i32) {
    %c0_i32 = arith.constant 0 : i32
    %c0_i32_0 = arith.constant 0 : i32
    %c0_i32_1 = arith.constant 0 : i32
    return %c0_i32, %c0_i32_0 : i32, i32
  }
  func.func @transform_3(%arg0: i32) -> (i32, i32) {
    %c0_i32 = arith.constant 0 : i32
    %c0_i32_0 = arith.constant 0 : i32
    return %arg0, %c0_i32 : i32, i32
  }
}

module attributes {stable_mosaic.version = 11 : i64} {
  func.func @kernel(%arg0: i32, %arg1: memref<256x144xbf16, #tpu.memory_space<vmem>>, %arg2: memref<144x128xbf16, #tpu.memory_space<vmem>>, %arg3: memref<1x128xf32, #tpu.memory_space<vmem>>, %arg4: memref<256x128xf32, #tpu.memory_space<vmem>>) attributes {dimension_semantics = [#tpu.dimension_semantics<parallel>], iteration_bounds = array<i64: 2>, scalar_prefetch = 0 : i64, scratch_operands = 0 : i64, tpu.core_type = #tpu.core_type<tc>, window_params = [{transform_indices = @transform_0, window_bounds = array<i64: 256, 144>}, {pipeline_mode = #tpu.pipeline_mode<synchronous>, transform_indices = @transform_1, window_bounds = array<i64: 144, 128>}, {pipeline_mode = #tpu.pipeline_mode<synchronous>, transform_indices = @transform_2, window_bounds = array<i64: 1, 128>}, {transform_indices = @transform_3, window_bounds = array<i64: 256, 128>}]} {
    %c0 = arith.constant 0 : index
    %c0_0 = arith.constant 0 : index
    %0 = vector.load %arg1[%c0, %c0_0] : memref<256x144xbf16, #tpu.memory_space<vmem>>, vector<256x144xbf16>
    %c0_1 = arith.constant 0 : index
    %c0_2 = arith.constant 0 : index
    %1 = vector.load %arg2[%c0_1, %c0_2] : memref<144x128xbf16, #tpu.memory_space<vmem>>, vector<144x128xbf16>
    %cst = arith.constant dense<0.000000e+00> : vector<256x128xf32>
    %2 = tpu.matmul %0, %1, %cst {dimension_numbers = #tpu.dot_dimension_numbers<[1], [0], [0], [1], [0, 0, 1, 1], [], []>} : vector<256x144xbf16>, vector<144x128xbf16>, vector<256x128xf32> -> vector<256x128xf32>
    %c0_3 = arith.constant 0 : index
    %c0_4 = arith.constant 0 : index
    %3 = vector.load %arg3[%c0_3, %c0_4] : memref<1x128xf32, #tpu.memory_space<vmem>>, vector<1x128xf32>
    %4 = vector.broadcast %3 : vector<1x128xf32> to vector<256x128xf32>
    %5 = arith.addf %2, %4 : vector<256x128xf32>
    %6 = arith.negf %5 : vector<256x128xf32>
    %7 = math.exp %6 : vector<256x128xf32>
    %cst_5 = arith.constant 1.000000e+00 : f32
    %8 = vector.broadcast %cst_5 : f32 to vector<256x128xf32>
    %9 = arith.addf %8, %7 : vector<256x128xf32>
    %10 = arith.divf %8, %9 : vector<256x128xf32>
    %c0_6 = arith.constant 0 : index
    %c0_7 = arith.constant 0 : index
    %11 = vector.load %arg4[%c0_6, %c0_7] : memref<256x128xf32, #tpu.memory_space<vmem>>, vector<256x128xf32>
    tpu.vector_store %arg4[%c0_6, %c0_7], %10 {strides = array<i32>} : memref<256x128xf32, #tpu.memory_space<vmem>>, vector<256x128xf32>,
    return
  }
  func.func @transform_0(%arg0: i32) -> (i32, i32) {
    %c0_i32 = arith.constant 0 : i32
    %c0_i32_0 = arith.constant 0 : i32
    return %arg0, %c0_i32 : i32, i32
  }
  func.func @transform_1(%arg0: i32) -> (i32, i32) {
    %c0_i32 = arith.constant 0 : i32
    %c0_i32_0 = arith.constant 0 : i32
    %c0_i32_1 = arith.constant 0 : i32
    return %c0_i32, %c0_i32_0 : i32, i32
  }
  func.func @transform_2(%arg0: i32) -> (i32, i32) {
    %c0_i32 = arith.constant 0 : i32
    %c0_i32_0 = arith.constant 0 : i32
    %c0_i32_1 = arith.constant 0 : i32
    return %c0_i32, %c0_i32_0 : i32, i32
  }
  func.func @transform_3(%arg0: i32) -> (i32, i32) {
    %c0_i32 = arith.constant 0 : i32
    %c0_i32_0 = arith.constant 0 : i32
    return %arg0, %c0_i32 : i32, i32
  }
}

module attributes {stable_mosaic.version = 11 : i64} {
  func.func @kernel(%arg0: i32, %arg1: memref<512x48xbf16, #tpu.memory_space<vmem>>, %arg2: memref<48x128xbf16, #tpu.memory_space<vmem>>, %arg3: memref<1x128xf32, #tpu.memory_space<vmem>>, %arg4: memref<512x128xbf16, #tpu.memory_space<vmem>>) attributes {dimension_semantics = [#tpu.dimension_semantics<parallel>], iteration_bounds = array<i64: 2>, scalar_prefetch = 0 : i64, scratch_operands = 0 : i64, tpu.core_type = #tpu.core_type<tc>, window_params = [{transform_indices = @transform_0, window_bounds = array<i64: 512, 48>}, {pipeline_mode = #tpu.pipeline_mode<synchronous>, transform_indices = @transform_1, window_bounds = array<i64: 48, 128>}, {pipeline_mode = #tpu.pipeline_mode<synchronous>, transform_indices = @transform_2, window_bounds = array<i64: 1, 128>}, {transform_indices = @transform_3, window_bounds = array<i64: 512, 128>}]} {
    %c0 = arith.constant 0 : index
    %c0_0 = arith.constant 0 : index
    %0 = vector.load %arg1[%c0, %c0_0] : memref<512x48xbf16, #tpu.memory_space<vmem>>, vector<512x48xbf16>
    %c0_1 = arith.constant 0 : index
    %c0_2 = arith.constant 0 : index
    %1 = vector.load %arg2[%c0_1, %c0_2] : memref<48x128xbf16, #tpu.memory_space<vmem>>, vector<48x128xbf16>
    %cst = arith.constant dense<0.000000e+00> : vector<512x128xf32>
    %2 = tpu.matmul %0, %1, %cst {dimension_numbers = #tpu.dot_dimension_numbers<[1], [0], [0], [1], [0, 0, 1, 1], [], []>} : vector<512x48xbf16>, vector<48x128xbf16>, vector<512x128xf32> -> vector<512x128xf32>
    %c0_3 = arith.constant 0 : index
    %c0_4 = arith.constant 0 : index
    %3 = vector.load %arg3[%c0_3, %c0_4] : memref<1x128xf32, #tpu.memory_space<vmem>>, vector<1x128xf32>
    %4 = vector.broadcast %3 : vector<1x128xf32> to vector<512x128xf32>
    %5 = arith.addf %2, %4 : vector<512x128xf32>
    %cst_5 = arith.constant 0.000000e+00 : f32
    %6 = vector.broadcast %cst_5 : f32 to vector<512x128xf32>
    %7 = arith.cmpf ogt, %5, %6 : vector<512x128xf32>
    %cst_6 = arith.constant 2.000000e-01 : f32
    %8 = vector.broadcast %cst_6 : f32 to vector<512x128xf32>
    %9 = arith.mulf %8, %5 : vector<512x128xf32>
    %10 = arith.select %7, %5, %9 : vector<512x128xi1>, vector<512x128xf32>
    %11 = arith.truncf %10 : vector<512x128xf32> to vector<512x128xbf16>
    %c0_7 = arith.constant 0 : index
    %c0_8 = arith.constant 0 : index
    %12 = vector.load %arg4[%c0_7, %c0_8] : memref<512x128xbf16, #tpu.memory_space<vmem>>, vector<512x128xbf16>
    tpu.vector_store %arg4[%c0_7, %c0_8], %11 {strides = array<i32>} : memref<512x128xbf16, #tpu.memory_space<vmem>>, vector<512x128xbf16>,
    return
  }
  func.func @transform_0(%arg0: i32) -> (i32, i32) {
    %c0_i32 = arith.constant 0 : i32
    %c0_i32_0 = arith.constant 0 : i32
    return %arg0, %c0_i32 : i32, i32
  }
  func.func @transform_1(%arg0: i32) -> (i32, i32) {
    %c0_i32 = arith.constant 0 : i32
    %c0_i32_0 = arith.constant 0 : i32
    %c0_i32_1 = arith.constant 0 : i32
    return %c0_i32, %c0_i32_0 : i32, i32
  }
  func.func @transform_2(%arg0: i32) -> (i32, i32) {
    %c0_i32 = arith.constant 0 : i32
    %c0_i32_0 = arith.constant 0 : i32
    %c0_i32_1 = arith.constant 0 : i32
    return %c0_i32, %c0_i32_0 : i32, i32
  }
  func.func @transform_3(%arg0: i32) -> (i32, i32) {
    %c0_i32 = arith.constant 0 : i32
    %c0_i32_0 = arith.constant 0 : i32
    return %arg0, %c0_i32 : i32, i32
  }
}

module attributes {stable_mosaic.version = 11 : i64} {
  func.func @kernel(%arg0: i32, %arg1: memref<128x128xbf16, #tpu.memory_space<vmem>>, %arg2: memref<128x128xbf16, #tpu.memory_space<vmem>>, %arg3: memref<1x128xf32, #tpu.memory_space<vmem>>, %arg4: memref<128x128xbf16, #tpu.memory_space<vmem>>) attributes {dimension_semantics = [#tpu.dimension_semantics<parallel>], iteration_bounds = array<i64: 2>, scalar_prefetch = 0 : i64, scratch_operands = 0 : i64, tpu.core_type = #tpu.core_type<tc>, window_params = [{transform_indices = @transform_0, window_bounds = array<i64: 128, 128>}, {pipeline_mode = #tpu.pipeline_mode<synchronous>, transform_indices = @transform_1, window_bounds = array<i64: 128, 128>}, {pipeline_mode = #tpu.pipeline_mode<synchronous>, transform_indices = @transform_2, window_bounds = array<i64: 1, 128>}, {transform_indices = @transform_3, window_bounds = array<i64: 128, 128>}]} {
    %c0 = arith.constant 0 : index
    %c0_0 = arith.constant 0 : index
    %0 = vector.load %arg1[%c0, %c0_0] : memref<128x128xbf16, #tpu.memory_space<vmem>>, vector<128x128xbf16>
    %c0_1 = arith.constant 0 : index
    %c0_2 = arith.constant 0 : index
    %1 = vector.load %arg2[%c0_1, %c0_2] : memref<128x128xbf16, #tpu.memory_space<vmem>>, vector<128x128xbf16>
    %cst = arith.constant dense<0.000000e+00> : vector<128x128xf32>
    %2 = tpu.matmul %0, %1, %cst {dimension_numbers = #tpu.dot_dimension_numbers<[1], [0], [0], [1], [0, 0, 1, 1], [], []>} : vector<128x128xbf16>, vector<128x128xbf16>, vector<128x128xf32> -> vector<128x128xf32>
    %c0_3 = arith.constant 0 : index
    %c0_4 = arith.constant 0 : index
    %3 = vector.load %arg3[%c0_3, %c0_4] : memref<1x128xf32, #tpu.memory_space<vmem>>, vector<1x128xf32>
    %4 = vector.broadcast %3 : vector<1x128xf32> to vector<128x128xf32>
    %5 = arith.addf %2, %4 : vector<128x128xf32>
    %cst_5 = arith.constant 0.000000e+00 : f32
    %6 = vector.broadcast %cst_5 : f32 to vector<128x128xf32>
    %7 = arith.cmpf ogt, %5, %6 : vector<128x128xf32>
    %cst_6 = arith.constant 2.000000e-01 : f32
    %8 = vector.broadcast %cst_6 : f32 to vector<128x128xf32>
    %9 = arith.mulf %8, %5 : vector<128x128xf32>
    %10 = arith.select %7, %5, %9 : vector<128x128xi1>, vector<128x128xf32>
    %11 = arith.truncf %10 : vector<128x128xf32> to vector<128x128xbf16>
    %c0_7 = arith.constant 0 : index
    %c0_8 = arith.constant 0 : index
    %12 = vector.load %arg4[%c0_7, %c0_8] : memref<128x128xbf16, #tpu.memory_space<vmem>>, vector<128x128xbf16>
    tpu.vector_store %arg4[%c0_7, %c0_8], %11 {strides = array<i32>} : memref<128x128xbf16, #tpu.memory_space<vmem>>, vector<128x128xbf16>,
    return
  }
  func.func @transform_0(%arg0: i32) -> (i32, i32) {
    %c0_i32 = arith.constant 0 : i32
    %c0_i32_0 = arith.constant 0 : i32
    return %arg0, %c0_i32 : i32, i32
  }
  func.func @transform_1(%arg0: i32) -> (i32, i32) {
    %c0_i32 = arith.constant 0 : i32
    %c0_i32_0 = arith.constant 0 : i32
    %c0_i32_1 = arith.constant 0 : i32
    return %c0_i32, %c0_i32_0 : i32, i32
  }
  func.func @transform_2(%arg0: i32) -> (i32, i32) {
    %c0_i32 = arith.constant 0 : i32
    %c0_i32_0 = arith.constant 0 : i32
    %c0_i32_1 = arith.constant 0 : i32
    return %c0_i32, %c0_i32_0 : i32, i32
  }
  func.func @transform_3(%arg0: i32) -> (i32, i32) {
    %c0_i32 = arith.constant 0 : i32
    %c0_i32_0 = arith.constant 0 : i32
    return %arg0, %c0_i32 : i32, i32
  }
}

</mosaic_0001>

<llo_original>
// kernel: _forward_impl.4
$region0: #{_forward_impl.4}
  #allocation0 [shape = 'u32[]', space=smem, size = 0x4, offset = 0x4, fixed_abs, tag = 'smem constant byte address 0x4 - core index']
  #allocation1 [shape = 'u32[144,128]{1,0:T(1,128)}', space=vmem, size = 0x12000, scoped, tag = 'internal scratch']
  %s0 = inlined_call_operand.vmem [shape: bf16[512,176], index: 0, kind: input, shape index: {}]
  %s1 = inlined_call_operand.vmem [shape: bf16[176,128], index: 1, kind: input, shape index: {}]
  %s2 = inlined_call_operand.vmem [shape: f32[1,128], index: 2, kind: input, shape index: {}]
  %s3 = inlined_call_operand.vmem [shape: bf16[512,128], index: 3, kind: output, shape index: {}]
  %s4 = sld [smem:[#allocation0]]
  $region45: #{_forward_impl.4} parent=0
    _
  %s6 = ssub.s32 1, %s4
  %s7 = scalar_select 0, %s6, %s4
  loop: start=0, step=1, limit=4
  $region2: #{_forward_impl.4} parent=0 // loop_pre_header
    _
  $region3: #{_forward_impl.4} parent=0 // loop_header
    %s9 = sphi 0, %s13
    %p10 = scmp.ge.s32.totalorder %s9, 4
    %s19 = sphi 0, %s21
    %s22 = sphi 0, %s19
    %s23 = sphi 0, %s22
    %s39 = sphi 0, %s23
    %s43 = sphi 0, %s43
    %s45 = sphi 0, %s43
    %s46 = sphi 0, %s45
    %s60 = sphi 0, %s46
    %s64 = sphi 0, %s64
    %s66 = sphi 0, %s64
    %s67 = sphi 0, %s66
    %s81 = sphi 0, %s67
    %s87 = sphi 0, %s89
    %s90 = sphi 0, %s87
    %s91 = sphi 0, %s90
    %s107 = sphi 0, %s91
  $region4: #{_forward_impl.4} parent=0 // loop_header_branch
    %12 = sbr.rel (%p10) target = $region8
  $region5: #{_forward_impl.4} parent=0 // loop_body
    %s14 = ssub.s32 %s9, 1
    %s15 = ssub.s32 %s9, 2
    %s16 = sadd.s32 %s9, 1
    %s17 = ssub.s32 %s9, %s16
    %p18 = scmp.eq.s32.totalorder %s17, 0
    %s20 = sadd.s32 %s19, 1
    %s21 = scalar_select %p18, %s19, %s20
    %p24 = pneg %p18
    %p25 = scmp.eq.s32.totalorder %s9, 1
    %p26 = por %p24, %p25
    %p27 = scmp.ne.s32.totalorder %s19, %s22
    %p28 = scmp.eq.s32.totalorder %s9, 0
    %p29 = por %p27, %p28
    %p30 = scmp.ne.s32.totalorder %s19, %s22
    %p31 = scmp.eq.s32.totalorder %s14, 1
    %p32 = por %p30, %p31
    %p33 = scmp.ne.s32.totalorder %s22, %s23
    %p34 = scmp.eq.s32.totalorder %s14, 0
    %p35 = por %p33, %p34
    %p36 = scmp.ne.s32.totalorder %s22, %s23
    %p37 = scmp.eq.s32.totalorder %s15, 1
    %p38 = por %p36, %p37
    %p40 = scmp.ne.s32.totalorder %s23, %s39
    %p41 = scmp.eq.s32.totalorder %s15, 0
    %p42 = por %p40, %p41
    %s44 = sadd.s32 %s43, 1
    %p47 = scmp.eq.s32.totalorder %s9, 1
    %p48 = scmp.ne.s32.totalorder %s43, %s45
    %p49 = scmp.eq.s32.totalorder %s9, 0
    %p50 = por %p48, %p49
    %p51 = scmp.ne.s32.totalorder %s43, %s45
    %p52 = scmp.eq.s32.totalorder %s14, 1
    %p53 = por %p51, %p52
    %p54 = scmp.ne.s32.totalorder %s45, %s46
    %p55 = scmp.eq.s32.totalorder %s14, 0
    %p56 = por %p54, %p55
    %p57 = scmp.ne.s32.totalorder %s45, %s46
    %p58 = scmp.eq.s32.totalorder %s15, 1
    %p59 = por %p57, %p58
    %p61 = scmp.ne.s32.totalorder %s46, %s60
    %p62 = scmp.eq.s32.totalorder %s15, 0
    %p63 = por %p61, %p62
    %s65 = sadd.s32 %s64, 1
    %p68 = scmp.eq.s32.totalorder %s9, 1
    %p69 = scmp.ne.s32.totalorder %s64, %s66
    %p70 = scmp.eq.s32.totalorder %s9, 0
    %p71 = por %p69, %p70
    %p72 = scmp.ne.s32.totalorder %s64, %s66
    %p73 = scmp.eq.s32.totalorder %s14, 1
    %p74 = por %p72, %p73
    %p75 = scmp.ne.s32.totalorder %s66, %s67
    %p76 = scmp.eq.s32.totalorder %s14, 0
    %p77 = por %p75, %p76
    %p78 = scmp.ne.s32.totalorder %s66, %s67
    %p79 = scmp.eq.s32.totalorder %s15, 1
    %p80 = por %p78, %p79
    %p82 = scmp.ne.s32.totalorder %s67, %s81
    %p83 = scmp.eq.s32.totalorder %s15, 0
    %p84 = por %p82, %p83
    %s85 = ssub.s32 %s9, %s16
    %p86 = scmp.eq.s32.totalorder %s85, 0
    %s88 = sadd.s32 %s87, 1
    %s89 = scalar_select %p86, %s87, %s88
    %p92 = pneg %p86
    %p93 = scmp.eq.s32.totalorder %s9, 1
    %p94 = por %p92, %p93
    %p95 = scmp.ne.s32.totalorder %s87, %s90
    %p96 = scmp.eq.s32.totalorder %s9, 0
    %p97 = por %p95, %p96
    %p98 = scmp.ne.s32.totalorder %s87, %s90
    %p99 = scmp.eq.s32.totalorder %s14, 1
    %p100 = por %p98, %p99
    %p101 = scmp.ne.s32.totalorder %s90, %s91
    %p102 = scmp.eq.s32.totalorder %s14, 0
    %p103 = por %p101, %p102
    %p104 = scmp.ne.s32.totalorder %s90, %s91
    %p105 = scmp.eq.s32.totalorder %s15, 1
    %p106 = por %p104, %p105
    %p108 = scmp.ne.s32.totalorder %s91, %s107
    %p109 = scmp.eq.s32.totalorder %s15, 0
    %p110 = por %p108, %p109
    %p111 = scmp.le.s32.totalorder 1, %s9
    %p112 = scmp.lt.s32.totalorder %s9, 3
    %p113 = pnand %p111, %p112
    %p114 = pneg %p113
    // Predicated region
    $region9: #{_forward_impl.4} parent=5 // pred_check
      _
    $region10: #{_forward_impl.4} parent=5 // pred_check_branch
      %116 = sbr.rel (%p113) target = $region12
    $region11: #{_forward_impl.4} parent=5 // pred_region
      %s117 = ssub.s32 %s9, 1
      // Predicated region
      $region13: #{_forward_impl.4} parent=11 // pred_check
        %p118 = pneg %p56
      $region14: #{_forward_impl.4} parent=11 // pred_check_branch
        %120 = sbr.rel (%p118) target = $region16
      $region15: #{_forward_impl.4} parent=11 // pred_region
        _
      $region16: #{_forward_impl.4} parent=11 // pred_fallthru
        _
      // Predicated region
      $region17: #{_forward_impl.4} parent=11 // pred_check
        %p121 = pneg %p77
      $region18: #{_forward_impl.4} parent=11 // pred_check_branch
        %123 = sbr.rel (%p121) target = $region20
      $region19: #{_forward_impl.4} parent=11 // pred_region
        _
      $region20: #{_forward_impl.4} parent=11 // pred_fallthru
        _
    $region12: #{_forward_impl.4} parent=5 // pred_fallthru
      _
    %p124 = scmp.lt.s32.totalorder %s9, 2
    // Predicated region
    $region21: #{_forward_impl.4} parent=5 // pred_check
      %p125 = pneg %p124
    $region22: #{_forward_impl.4} parent=5 // pred_check_branch
      %127 = sbr.rel (%p125) target = $region24
    $region23: #{_forward_impl.4} parent=5 // pred_region
      // Predicated region
      $region25: #{_forward_impl.4} parent=23 // pred_check
        %p128 = pneg %p29
      $region26: #{_forward_impl.4} parent=23 // pred_check_branch
        %130 = sbr.rel (%p128) target = $region28
      $region27: #{_forward_impl.4} parent=23 // pred_region
        %s131 = smul.u32 32, %s9
        %p132 = scmp.lt.s32.totalorder %s131, 63
        %s133 = scalar_select %p132, %s131, 63
        %s134 = smul.addr %s133, 2
        %s135 = smul.addr %s134, 4
        %s136 = scalar_lea.vmem %s0, %s135
        %s137 = smul.u32 32, %s9
      $region28: #{_forward_impl.4} parent=23 // pred_fallthru
        _
    $region24: #{_forward_impl.4} parent=5 // pred_fallthru
      _
    %p138 = scmp.le.s32.totalorder 1, %s9
    %p139 = scmp.lt.s32.totalorder %s9, 3
    %p140 = pnand %p138, %p139
    %p141 = pneg %p140
    // Predicated region
    $region29: #{_forward_impl.4} parent=5 // pred_check
      _
    $region30: #{_forward_impl.4} parent=5 // pred_check_branch
      %143 = sbr.rel (%p140) target = $region32
    $region31: #{_forward_impl.4} parent=5 // pred_region
      %s144 = ssub.s32 %s9, 1
      %s145 = smul.u32 32, %s14
      %p146 = scmp.lt.s32.totalorder %s145, 63
      %s147 = scalar_select %p146, %s145, 63
      %s148 = smul.addr %s147, 2
      %s149 = smul.addr %s148, 4
      %s150 = scalar_lea.vmem %s0, %s149
      %p151 = pneg %p35
      %p152 = pneg %p32
      %p153 = pneg %p56
      %p154 = pneg %p53
      %p155 = pneg %p77
      %p156 = pneg %p74
      %p157 = pneg %p103
      %p158 = pneg %p100
      %s159 = smul.u32 32, %s14
      %p160 = scmp.lt.s32.totalorder %s159, 63
      %s161 = scalar_select %p160, %s159, 63
      %s162 = smul.addr %s161, 4
      %s163 = scalar_lea.vmem %s3, %s162
      %s164 = smul.u32 32, %s14
      %p165 = scmp.lt.s32.totalorder %s164, 63
      %s166 = scalar_select %p165, %s164, 63
      %s167 = smul.addr %s166, 2
      %s168 = smul.addr %s167, 4
      %s169 = scalar_lea.vmem %s0, %s168
      %s170 = smul.u32 32, %s14
      %s171 = smul.u32 32, %s14
      %p172 = scmp.lt.s32.totalorder %s171, 63
      %s173 = scalar_select %p172, %s171, 63
      %s174 = smul.addr %s173, 4
      %s175 = scalar_lea.vmem %s3, %s174
      %s176 = smul.u32 32, %s14
      %v178 = vld [vmem:[%s169] sm:$0xff]
      %v179 = vld [vmem:[%s169 + $0x8] sm:$0xff]
      %v180 = vld [vmem:[%s169 + $0x10] sm:$0xff]
      %v181 = vld [vmem:[%s169 + $0x18] sm:$0xff]
      %v182 = vld [vmem:[%s169 + $0x20] sm:$0xff]
      %v183 = vld [vmem:[%s169 + $0x28] sm:$0xff]
      %v184 = vld [vmem:[%s169 + $0x30] sm:$0xff]
      %v185 = vld [vmem:[%s169 + $0x38] sm:$0xff]
      %v186 = vld [vmem:[%s169 + $0x40] sm:$0xff]
      %v187 = vld [vmem:[%s169 + $0x48] sm:$0xff]
      %v188 = vld [vmem:[%s169 + $0x50] sm:$0xff]
      %v189 = vld [vmem:[%s169 + $0x58] sm:$0xff]
      %v190 = vld [vmem:[%s169 + $0x60] sm:$0xff]
      %v191 = vld [vmem:[%s169 + $0x68] sm:$0xff]
      %v192 = vld [vmem:[%s169 + $0x70] sm:$0xff]
      %v193 = vld [vmem:[%s169 + $0x78] sm:$0xff]
      %v194 = vld [vmem:[%s169 + $0x80] sm:$0xff]
      %v195 = vld [vmem:[%s169 + $0x88] sm:$0xff]
      %v196 = vld [vmem:[%s169 + $0x90] sm:$0xff]
      %v197 = vld [vmem:[%s169 + $0x98] sm:$0xff]
      %v198 = vld [vmem:[%s169 + $0xa0] sm:$0xff]
      %v199 = vld [vmem:[%s169 + $0xa8] sm:$0xff]
      %v200 = vld [vmem:[%s169 + $0xb0] sm:$0xff]
      %v201 = vld [vmem:[%s169 + $0xb8] sm:$0xff]
      %v202 = vld [vmem:[%s169 + $0xc0] sm:$0xff]
      %v203 = vld [vmem:[%s169 + $0xc8] sm:$0xff]
      %v204 = vld [vmem:[%s169 + $0xd0] sm:$0xff]
      %v205 = vld [vmem:[%s169 + $0xd8] sm:$0xff]
      %v206 = vld [vmem:[%s169 + $0xe0] sm:$0xff]
      %v207 = vld [vmem:[%s169 + $0xe8] sm:$0xff]
      %v208 = vld [vmem:[%s169 + $0xf0] sm:$0xff]
      %v209 = vld [vmem:[%s169 + $0xf8] sm:$0xff]
      %v210 = vld [vmem:[%s1] sm:$0xf]
      %v211 = vld [vmem:[%s1 + $0x4] sm:$0xf]
      %v212 = vld [vmem:[%s1 + $0x8] sm:$0xf]
      %v213 = vld [vmem:[%s1 + $0xc] sm:$0xf]
      %v214 = vld [vmem:[%s1 + $0x10] sm:$0xf]
      %v215 = vld [vmem:[%s1 + $0x14] sm:$0xf]
      %v216 = vld [vmem:[%s1 + $0x18] sm:$0xf]
      %v217 = vld [vmem:[%s1 + $0x1c] sm:$0xf]
      %v218 = vld [vmem:[%s1 + $0x20] sm:$0xf]
      %v219 = vld [vmem:[%s1 + $0x24] sm:$0xf]
      %v220 = vld [vmem:[%s1 + $0x28] sm:$0xf]
      %v221 = vld [vmem:[%s1 + $0x2c] sm:$0xf]
      %v222 = vld [vmem:[%s1 + $0x30] sm:$0xf]
      %v223 = vld [vmem:[%s1 + $0x34] sm:$0xf]
      %v224 = vld [vmem:[%s1 + $0x38] sm:$0xf]
      %v225 = vld [vmem:[%s1 + $0x3c] sm:$0xf]
      %v226 = vld [vmem:[%s1 + $0x40] sm:$0xf]
      %v227 = vld [vmem:[%s1 + $0x44] sm:$0xf]
      %v228 = vld [vmem:[%s1 + $0x48] sm:$0xf]
      %v229 = vld [vmem:[%s1 + $0x4c] sm:$0xf]
      %v230 = vld [vmem:[%s1 + $0x50] sm:$0xf]
      %v231 = vld [vmem:[%s1 + $0x54] sm:$0xf]
      %v232 = vld [vmem:[%s2] sm:$0x1]
      %v234 = vlaneseq
      %v235 = vshrl.u32 %v234, 7
      %v236 = vsub.s32 0, %v235
      %v237 = vrot.slane %v232, %v236
      %v271 = vunpack.c.l.b16 %v178
      %v272 = vunpack.c.h.b16 %v178
      %v273 = vunpack.c.l.b16 %v179
      %v274 = vunpack.c.h.b16 %v179
      %v275 = vunpack.c.l.b16 %v180
      %v276 = vunpack.c.h.b16 %v180
      %v277 = vunpack.c.l.b16 %v181
      %v278 = vunpack.c.h.b16 %v181
      %v279 = vunpack.c.l.b16 %v182
      %v280 = vunpack.c.h.b16 %v182
      %v281 = vunpack.c.l.b16 %v183
      %v282 = vunpack.c.h.b16 %v183
      %v283 = vunpack.c.l.b16 %v184
      %v284 = vunpack.c.h.b16 %v184
      %v285 = vunpack.c.l.b16 %v185
      %v286 = vunpack.c.h.b16 %v185
      %v287 = vunpack.c.l.b16 %v186
      %v288 = vunpack.c.h.b16 %v186
      %v289 = vunpack.c.l.b16 %v187
      %v290 = vunpack.c.h.b16 %v187
      %v291 = vunpack.c.l.b16 %v188
      %v292 = vunpack.c.h.b16 %v188
      %v293 = vunpack.c.l.b16 %v189
      %v294 = vunpack.c.h.b16 %v189
      %v295 = vunpack.c.l.b16 %v190
      %v296 = vunpack.c.h.b16 %v190
      %v297 = vunpack.c.l.b16 %v191
      %v298 = vunpack.c.h.b16 %v191
      %v299 = vunpack.c.l.b16 %v192
      %v300 = vunpack.c.h.b16 %v192
      %v301 = vunpack.c.l.b16 %v193
      %v302 = vunpack.c.h.b16 %v193
      %v303 = vunpack.c.l.b16 %v194
      %v304 = vunpack.c.h.b16 %v194
      %v305 = vunpack.c.l.b16 %v195
      %v306 = vunpack.c.h.b16 %v195
      %v307 = vunpack.c.l.b16 %v196
      %v308 = vunpack.c.h.b16 %v196
      %v309 = vunpack.c.l.b16 %v197
      %v310 = vunpack.c.h.b16 %v197
      %v311 = vunpack.c.l.b16 %v198
      %v312 = vunpack.c.h.b16 %v198
      %v313 = vunpack.c.l.b16 %v199
      %v314 = vunpack.c.h.b16 %v199
      %v315 = vunpack.c.l.b16 %v200
      %v316 = vunpack.c.h.b16 %v200
      %v317 = vunpack.c.l.b16 %v201
      %v318 = vunpack.c.h.b16 %v201
      %v319 = vunpack.c.l.b16 %v202
      %v320 = vunpack.c.h.b16 %v202
      %v321 = vunpack.c.l.b16 %v203
      %v322 = vunpack.c.h.b16 %v203
      %v323 = vunpack.c.l.b16 %v204
      %v324 = vunpack.c.h.b16 %v204
      %v325 = vunpack.c.l.b16 %v205
      %v326 = vunpack.c.h.b16 %v205
      %v327 = vunpack.c.l.b16 %v206
      %v328 = vunpack.c.h.b16 %v206
      %v329 = vunpack.c.l.b16 %v207
      %v330 = vunpack.c.h.b16 %v207
      %v331 = vunpack.c.l.b16 %v208
      %v332 = vunpack.c.h.b16 %v208
      %v333 = vunpack.c.l.b16 %v209
      %v334 = vunpack.c.h.b16 %v209
      %v335 = vpack.c.b16 %v273, %v271
      %v336 = vpack.c.b16 %v274, %v272
      %v337 = vpack.c.b16 %v277, %v275
      %v338 = vpack.c.b16 %v278, %v276
      %v339 = vpack.c.b16 %v281, %v279
      %v340 = vpack.c.b16 %v282, %v280
      %v341 = vpack.c.b16 %v285, %v283
      %v342 = vpack.c.b16 %v286, %v284
      %v343 = vpack.c.b16 %v289, %v287
      %v344 = vpack.c.b16 %v290, %v288
      %v345 = vpack.c.b16 %v293, %v291
      %v346 = vpack.c.b16 %v294, %v292
      %v347 = vpack.c.b16 %v297, %v295
      %v348 = vpack.c.b16 %v298, %v296
      %v349 = vpack.c.b16 %v301, %v299
      %v350 = vpack.c.b16 %v302, %v300
      %v351 = vpack.c.b16 %v305, %v303
      %v352 = vpack.c.b16 %v306, %v304
      %v353 = vpack.c.b16 %v309, %v307
      %v354 = vpack.c.b16 %v310, %v308
      %v355 = vpack.c.b16 %v313, %v311
      %v356 = vpack.c.b16 %v314, %v312
      %v357 = vpack.c.b16 %v317, %v315
      %v358 = vpack.c.b16 %v318, %v316
      %v359 = vpack.c.b16 %v321, %v319
      %v360 = vpack.c.b16 %v322, %v320
      %v361 = vpack.c.b16 %v325, %v323
      %v362 = vpack.c.b16 %v326, %v324
      %v363 = vpack.c.b16 %v329, %v327
      %v364 = vpack.c.b16 %v330, %v328
      %v365 = vpack.c.b16 %v333, %v331
      %v366 = vpack.c.b16 %v334, %v332
      %v405 = vunpack.c.l.b16 %v210
      %v406 = vunpack.c.l.b16 %v211
      %v407 = vunpack.c.l.b16 %v212
      %v408 = vunpack.c.l.b16 %v213
      %v409 = vunpack.c.l.b16 %v214
      %v410 = vunpack.c.l.b16 %v215
      %v411 = vunpack.c.l.b16 %v216
      %v412 = vunpack.c.l.b16 %v217
      %v413 = vunpack.c.l.b16 %v218
      %v414 = vunpack.c.l.b16 %v219
      %v415 = vunpack.c.l.b16 %v220
      %v416 = vunpack.c.l.b16 %v221
      %v417 = vunpack.c.l.b16 %v222
      %v418 = vunpack.c.l.b16 %v223
      %v419 = vunpack.c.l.b16 %v224
      %v420 = vunpack.c.l.b16 %v225
      %v421 = vunpack.c.l.b16 %v226
      %v422 = vunpack.c.l.b16 %v227
      %v423 = vunpack.c.l.b16 %v228
      %v424 = vunpack.c.l.b16 %v229
      %v425 = vunpack.c.l.b16 %v230
      %v426 = vunpack.c.l.b16 %v231
      %v427 = vpack.c.b16 %v406, %v405
      %v428 = vpack.c.b16 %v408, %v407
      %v429 = vpack.c.b16 %v410, %v409
      %v430 = vpack.c.b16 %v412, %v411
      %v431 = vpack.c.b16 %v414, %v413
      %v432 = vpack.c.b16 %v416, %v415
      %v433 = vpack.c.b16 %v418, %v417
      %v434 = vpack.c.b16 %v420, %v419
      %v435 = vpack.c.b16 %v422, %v421
      %v436 = vpack.c.b16 %v424, %v423
      %v437 = vpack.c.b16 %v426, %v425
      %vm449 = vcmask 392192
      %v451 = vsel %vm449, %v336, 0
      %v454 = vsel %vm449, %v338, 0
      %v457 = vsel %vm449, %v340, 0
      %v460 = vsel %vm449, %v342, 0
      %v463 = vsel %vm449, %v344, 0
      %v466 = vsel %vm449, %v346, 0
      %v469 = vsel %vm449, %v348, 0
      %v472 = vsel %vm449, %v350, 0
      %v475 = vsel %vm449, %v352, 0
      %v478 = vsel %vm449, %v354, 0
      %v481 = vsel %vm449, %v356, 0
      %v484 = vsel %vm449, %v358, 0
      %v487 = vsel %vm449, %v360, 0
      %v490 = vsel %vm449, %v362, 0
      %v493 = vsel %vm449, %v364, 0
      %v496 = vsel %vm449, %v366, 0
      %498 = vmatprep.subr.bf16.mxu0 0
      %499 = vmatpush1.bf16.msra.mxu0 %v427
      %500 = vmatprep.subr.bf16.mxu0 0
      %501 = vmatpush1.bf16.msra.mxu0 %v428
      %502 = vmatprep.subr.bf16.mxu0 0
      %503 = vmatpush1.bf16.msra.mxu0 %v429
      %504 = vmatprep.subr.bf16.mxu0 0
      %505 = vmatpush1.bf16.msra.mxu0 %v430
      %506 = vmatprep.subr.bf16.mxu0 0
      %507 = vmatpush1.bf16.msra.mxu0 %v431
      %508 = vmatprep.subr.bf16.mxu0 0
      %509 = vmatpush1.bf16.msra.mxu0 %v432
      %510 = vmatprep.subr.bf16.mxu0 0
      %511 = vmatpush1.bf16.msra.mxu0 %v433
      %512 = vmatprep.subr.bf16.mxu0 0
      %513 = vmatpush1.bf16.msra.mxu0 %v434
      %514 = vmatprep.subr.bf16.mxu0 0
      %515 = vmatpush1.bf16.msra.mxu0 %v435
      %516 = vmatprep.subr.bf16.mxu0 0
      %517 = vmatpush1.bf16.msra.mxu0 %v436
      %518 = vmatprep.subr.bf16.mxu0 0
      %519 = vmatpush1.bf16.msra.mxu0 %v437
      %520 = vmatprep.subr.bf16.mxu0 0
      %521 = vmatpush1.bf16.msra.mxu0 0
      %522 = vmatprep.subr.bf16.mxu0 0
      %523 = vmatpush1.bf16.msra.mxu0 0
      %524 = vmatprep.subr.bf16.mxu0 0
      %525 = vmatpush1.bf16.msra.mxu0 0
      %526 = vmatprep.subr.bf16.mxu0 0
      %527 = vmatpush1.bf16.msra.mxu0 0
      %528 = vmatprep.subr.bf16.mxu0 0
      %529 = vmatpush1.bf16.msra.mxu0 0
      %530 = vmatprep.mubr.bf16.mxu0 %v451
      %531 = vmatmul.mubr.bf16.gmra.mrb[0].mxu0 %v335
      %v532 = vpop.f32.mrb[0].mxu0
      %v533 = vadd.f32 %v237, %v532
      %v534 = vpop.f32.mrb[0].mxu0
      %v535 = vpop.f32.mrb[0].mxu0
      %v536 = vadd.f32 %v237, %v535
      %v537 = vpop.f32.mrb[0].mxu0
      %538 = vmatprep.mubr.bf16.mxu0 %v454
      %539 = vmatmul.mubr.bf16.gmra.mrb[0].mxu0 %v337
      %v540 = vpop.f32.mrb[0].mxu0
      %v541 = vadd.f32 %v237, %v540
      %v542 = vpop.f32.mrb[0].mxu0
      %v543 = vpop.f32.mrb[0].mxu0
      %v544 = vadd.f32 %v237, %v543
      %v545 = vpop.f32.mrb[0].mxu0
      %546 = vmatprep.mubr.bf16.mxu0 %v457
      %547 = vmatmul.mubr.bf16.gmra.mrb[0].mxu0 %v339
      %v548 = vpop.f32.mrb[0].mxu0
      %v549 = vadd.f32 %v237, %v548
      %v550 = vpop.f32.mrb[0].mxu0
      %v551 = vpop.f32.mrb[0].mxu0
      %v552 = vadd.f32 %v237, %v551
      %v553 = vpop.f32.mrb[0].mxu0
      %554 = vmatprep.mubr.bf16.mxu0 %v460
      %555 = vmatmul.mubr.bf16.gmra.mrb[0].mxu0 %v341
      %v556 = vpop.f32.mrb[0].mxu0
      %v557 = vadd.f32 %v237, %v556
      %v558 = vpop.f32.mrb[0].mxu0
      %v559 = vpop.f32.mrb[0].mxu0
      %v560 = vadd.f32 %v237, %v559
      %v561 = vpop.f32.mrb[0].mxu0
      %562 = vmatprep.mubr.bf16.mxu0 %v463
      %563 = vmatmul.mubr.bf16.gmra.mrb[0].mxu0 %v343
      %v564 = vpop.f32.mrb[0].mxu0
      %v565 = vadd.f32 %v237, %v564
      %v566 = vpop.f32.mrb[0].mxu0
      %v567 = vpop.f32.mrb[0].mxu0
      %v568 = vadd.f32 %v237, %v567
      %v569 = vpop.f32.mrb[0].mxu0
      %570 = vmatprep.mubr.bf16.mxu0 %v466
      %571 = vmatmul.mubr.bf16.gmra.mrb[0].mxu0 %v345
      %v572 = vpop.f32.mrb[0].mxu0
      %v573 = vadd.f32 %v237, %v572
      %v574 = vpop.f32.mrb[0].mxu0
      %v575 = vpop.f32.mrb[0].mxu0
      %v576 = vadd.f32 %v237, %v575
      %v577 = vpop.f32.mrb[0].mxu0
      %578 = vmatprep.mubr.bf16.mxu0 %v469
      %579 = vmatmul.mubr.bf16.gmra.mrb[0].mxu0 %v347
      %v580 = vpop.f32.mrb[0].mxu0
      %v581 = vadd.f32 %v237, %v580
      %v582 = vpop.f32.mrb[0].mxu0
      %v583 = vpop.f32.mrb[0].mxu0
      %v584 = vadd.f32 %v237, %v583
      %v585 = vpop.f32.mrb[0].mxu0
      %586 = vmatprep.mubr.bf16.mxu0 %v472
      %587 = vmatmul.mubr.bf16.gmra.mrb[0].mxu0 %v349
      %v588 = vpop.f32.mrb[0].mxu0
      %v589 = vadd.f32 %v237, %v588
      %v590 = vpop.f32.mrb[0].mxu0
      %v591 = vpop.f32.mrb[0].mxu0
      %v592 = vadd.f32 %v237, %v591
      %v593 = vpop.f32.mrb[0].mxu0
      %594 = vmatprep.mubr.bf16.mxu0 %v475
      %595 = vmatmul.mubr.bf16.gmra.mrb[0].mxu0 %v351
      %v596 = vpop.f32.mrb[0].mxu0
      %v597 = vadd.f32 %v237, %v596
      %v598 = vpop.f32.mrb[0].mxu0
      %v599 = vpop.f32.mrb[0].mxu0
      %v600 = vadd.f32 %v237, %v599
      %v601 = vpop.f32.mrb[0].mxu0
      %602 = vmatprep.mubr.bf16.mxu0 %v478
      %603 = vmatmul.mubr.bf16.gmra.mrb[0].mxu0 %v353
      %v604 = vpop.f32.mrb[0].mxu0
      %v605 = vadd.f32 %v237, %v604
      %v606 = vpop.f32.mrb[0].mxu0
      %v607 = vpop.f32.mrb[0].mxu0
      %v608 = vadd.f32 %v237, %v607
      %v609 = vpop.f32.mrb[0].mxu0
      %610 = vmatprep.mubr.bf16.mxu0 %v481
      %611 = vmatmul.mubr.bf16.gmra.mrb[0].mxu0 %v355
      %v612 = vpop.f32.mrb[0].mxu0
      %v613 = vadd.f32 %v237, %v612
      %v614 = vpop.f32.mrb[0].mxu0
      %v615 = vpop.f32.mrb[0].mxu0
      %v616 = vadd.f32 %v237, %v615
      %v617 = vpop.f32.mrb[0].mxu0
      %618 = vmatprep.mubr.bf16.mxu0 %v484
      %619 = vmatmul.mubr.bf16.gmra.mrb[0].mxu0 %v357
      %v620 = vpop.f32.mrb[0].mxu0
      %v621 = vadd.f32 %v237, %v620
      %v622 = vpop.f32.mrb[0].mxu0
      %v623 = vpop.f32.mrb[0].mxu0
      %v624 = vadd.f32 %v237, %v623
      %v625 = vpop.f32.mrb[0].mxu0
      %626 = vmatprep.mubr.bf16.mxu0 %v487
      %627 = vmatmul.mubr.bf16.gmra.mrb[0].mxu0 %v359
      %v628 = vpop.f32.mrb[0].mxu0
      %v629 = vadd.f32 %v237, %v628
      %v630 = vpop.f32.mrb[0].mxu0
      %v631 = vpop.f32.mrb[0].mxu0
      %v632 = vadd.f32 %v237, %v631
      %v633 = vpop.f32.mrb[0].mxu0
      %634 = vmatprep.mubr.bf16.mxu0 %v490
      %635 = vmatmul.mubr.bf16.gmra.mrb[0].mxu0 %v361
      %v636 = vpop.f32.mrb[0].mxu0
      %v637 = vadd.f32 %v237, %v636
      %v638 = vpop.f32.mrb[0].mxu0
      %v639 = vpop.f32.mrb[0].mxu0
      %v640 = vadd.f32 %v237, %v639
      %v641 = vpop.f32.mrb[0].mxu0
      %642 = vmatprep.mubr.bf16.mxu0 %v493
      %643 = vmatmul.mubr.bf16.gmra.mrb[0].mxu0 %v363
      %v644 = vpop.f32.mrb[0].mxu0
      %v645 = vadd.f32 %v237, %v644
      %v646 = vpop.f32.mrb[0].mxu0
      %v647 = vpop.f32.mrb[0].mxu0
      %v648 = vadd.f32 %v237, %v647
      %v649 = vpop.f32.mrb[0].mxu0
      %650 = vmatprep.mubr.bf16.mxu0 %v496
      %651 = vmatmul.mubr.bf16.gmra.mrb[0].mxu0 %v365
      %v652 = vpop.f32.mrb[0].mxu0
      %v653 = vadd.f32 %v237, %v652
      %v654 = vpop.f32.mrb[0].mxu0
      %v655 = vpop.f32.mrb[0].mxu0
      %v656 = vadd.f32 %v237, %v655
      %v657 = vpop.f32.mrb[0].mxu0
      %658 = vdwg.mxu0
      %vm659 = vcmp.gt.f32.partialorder %v533, 0.0
      %vm660 = vcmp.gt.f32.partialorder %v536, 0.0
      %vm661 = vcmp.gt.f32.partialorder %v541, 0.0
      %vm662 = vcmp.gt.f32.partialorder %v544, 0.0
      %vm663 = vcmp.gt.f32.partialorder %v549, 0.0
      %vm664 = vcmp.gt.f32.partialorder %v552, 0.0
      %vm665 = vcmp.gt.f32.partialorder %v557, 0.0
      %vm666 = vcmp.gt.f32.partialorder %v560, 0.0
      %vm667 = vcmp.gt.f32.partialorder %v565, 0.0
      %vm668 = vcmp.gt.f32.partialorder %v568, 0.0
      %vm669 = vcmp.gt.f32.partialorder %v573, 0.0
      %vm670 = vcmp.gt.f32.partialorder %v576, 0.0
      %vm671 = vcmp.gt.f32.partialorder %v581, 0.0
      %vm672 = vcmp.gt.f32.partialorder %v584, 0.0
      %vm673 = vcmp.gt.f32.partialorder %v589, 0.0
      %vm674 = vcmp.gt.f32.partialorder %v592, 0.0
      %vm675 = vcmp.gt.f32.partialorder %v597, 0.0
      %vm676 = vcmp.gt.f32.partialorder %v600, 0.0
      %vm677 = vcmp.gt.f32.partialorder %v605, 0.0
      %vm678 = vcmp.gt.f32.partialorder %v608, 0.0
      %vm679 = vcmp.gt.f32.partialorder %v613, 0.0
      %vm680 = vcmp.gt.f32.partialorder %v616, 0.0
      %vm681 = vcmp.gt.f32.partialorder %v621, 0.0
      %vm682 = vcmp.gt.f32.partialorder %v624, 0.0
      %vm683 = vcmp.gt.f32.partialorder %v629, 0.0
      %vm684 = vcmp.gt.f32.partialorder %v632, 0.0
      %vm685 = vcmp.gt.f32.partialorder %v637, 0.0
      %vm686 = vcmp.gt.f32.partialorder %v640, 0.0
      %vm687 = vcmp.gt.f32.partialorder %v645, 0.0
      %vm688 = vcmp.gt.f32.partialorder %v648, 0.0
      %vm689 = vcmp.gt.f32.partialorder %v653, 0.0
      %vm690 = vcmp.gt.f32.partialorder %v656, 0.0
      %v691 = vmul.f32 %v533, 0.2
      %v692 = vmul.f32 %v536, 0.2
      %v693 = vmul.f32 %v541, 0.2
      %v694 = vmul.f32 %v544, 0.2
      %v695 = vmul.f32 %v549, 0.2
      %v696 = vmul.f32 %v552, 0.2
      %v697 = vmul.f32 %v557, 0.2
      %v698 = vmul.f32 %v560, 0.2
      %v699 = vmul.f32 %v565, 0.2
      %v700 = vmul.f32 %v568, 0.2
      %v701 = vmul.f32 %v573, 0.2
      %v702 = vmul.f32 %v576, 0.2
      %v703 = vmul.f32 %v581, 0.2
      %v704 = vmul.f32 %v584, 0.2
      %v705 = vmul.f32 %v589, 0.2
      %v706 = vmul.f32 %v592, 0.2
      %v707 = vmul.f32 %v597, 0.2
      %v708 = vmul.f32 %v600, 0.2
      %v709 = vmul.f32 %v605, 0.2
      %v710 = vmul.f32 %v608, 0.2
      %v711 = vmul.f32 %v613, 0.2
      %v712 = vmul.f32 %v616, 0.2
      %v713 = vmul.f32 %v621, 0.2
      %v714 = vmul.f32 %v624, 0.2
      %v715 = vmul.f32 %v629, 0.2
      %v716 = vmul.f32 %v632, 0.2
      %v717 = vmul.f32 %v637, 0.2
      %v718 = vmul.f32 %v640, 0.2
      %v719 = vmul.f32 %v645, 0.2
      %v720 = vmul.f32 %v648, 0.2
      %v721 = vmul.f32 %v653, 0.2
      %v722 = vmul.f32 %v656, 0.2
      %v723 = vsel %vm659, %v533, %v691
      %v724 = vsel %vm660, %v536, %v692
      %v725 = vsel %vm661, %v541, %v693
      %v726 = vsel %vm662, %v544, %v694
      %v727 = vsel %vm663, %v549, %v695
      %v728 = vsel %vm664, %v552, %v696
      %v729 = vsel %vm665, %v557, %v697
      %v730 = vsel %vm666, %v560, %v698
      %v731 = vsel %vm667, %v565, %v699
      %v732 = vsel %vm668, %v568, %v700
      %v733 = vsel %vm669, %v573, %v701
      %v734 = vsel %vm670, %v576, %v702
      %v735 = vsel %vm671, %v581, %v703
      %v736 = vsel %vm672, %v584, %v704
      %v737 = vsel %vm673, %v589, %v705
      %v738 = vsel %vm674, %v592, %v706
      %v739 = vsel %vm675, %v597, %v707
      %v740 = vsel %vm676, %v600, %v708
      %v741 = vsel %vm677, %v605, %v709
      %v742 = vsel %vm678, %v608, %v710
      %v743 = vsel %vm679, %v613, %v711
      %v744 = vsel %vm680, %v616, %v712
      %v745 = vsel %vm681, %v621, %v713
      %v746 = vsel %vm682, %v624, %v714
      %v747 = vsel %vm683, %v629, %v715
      %v748 = vsel %vm684, %v632, %v716
      %v749 = vsel %vm685, %v637, %v717
      %v750 = vsel %vm686, %v640, %v718
      %v751 = vsel %vm687, %v645, %v719
      %v752 = vsel %vm688, %v648, %v720
      %v753 = vsel %vm689, %v653, %v721
      %v754 = vsel %vm690, %v656, %v722
      %v755 = vpack.c.bf16 %v724, %v723
      %v756 = vpack.c.bf16 %v726, %v725
      %v757 = vpack.c.bf16 %v728, %v727
      %v758 = vpack.c.bf16 %v730, %v729
      %v759 = vpack.c.bf16 %v732, %v731
      %v760 = vpack.c.bf16 %v734, %v733
      %v761 = vpack.c.bf16 %v736, %v735
      %v762 = vpack.c.bf16 %v738, %v737
      %v763 = vpack.c.bf16 %v740, %v739
      %v764 = vpack.c.bf16 %v742, %v741
      %v765 = vpack.c.bf16 %v744, %v743
      %v766 = vpack.c.bf16 %v746, %v745
      %v767 = vpack.c.bf16 %v748, %v747
      %v768 = vpack.c.bf16 %v750, %v749
      %v769 = vpack.c.bf16 %v752, %v751
      %v770 = vpack.c.bf16 %v754, %v753
      %v787 = vunpack.c.l.b16 %v755
      %v788 = vunpack.c.h.b16 %v755
      %v789 = vunpack.c.l.b16 %v756
      %v790 = vunpack.c.h.b16 %v756
      %v791 = vunpack.c.l.b16 %v757
      %v792 = vunpack.c.h.b16 %v757
      %v793 = vunpack.c.l.b16 %v758
      %v794 = vunpack.c.h.b16 %v758
      %v795 = vunpack.c.l.b16 %v759
      %v796 = vunpack.c.h.b16 %v759
      %v797 = vunpack.c.l.b16 %v760
      %v798 = vunpack.c.h.b16 %v760
      %v799 = vunpack.c.l.b16 %v761
      %v800 = vunpack.c.h.b16 %v761
      %v801 = vunpack.c.l.b16 %v762
      %v802 = vunpack.c.h.b16 %v762
      %v803 = vunpack.c.l.b16 %v763
      %v804 = vunpack.c.h.b16 %v763
      %v805 = vunpack.c.l.b16 %v764
      %v806 = vunpack.c.h.b16 %v764
      %v807 = vunpack.c.l.b16 %v765
      %v808 = vunpack.c.h.b16 %v765
      %v809 = vunpack.c.l.b16 %v766
      %v810 = vunpack.c.h.b16 %v766
      %v811 = vunpack.c.l.b16 %v767
      %v812 = vunpack.c.h.b16 %v767
      %v813 = vunpack.c.l.b16 %v768
      %v814 = vunpack.c.h.b16 %v768
      %v815 = vunpack.c.l.b16 %v769
      %v816 = vunpack.c.h.b16 %v769
      %v817 = vunpack.c.l.b16 %v770
      %v818 = vunpack.c.h.b16 %v770
      %v819 = vpack.c.b16 %v787, %v787
      %v820 = vpack.c.b16 %v788, %v788
      %v821 = vpack.c.b16 %v789, %v789
      %v822 = vpack.c.b16 %v790, %v790
      %v823 = vpack.c.b16 %v791, %v791
      %v824 = vpack.c.b16 %v792, %v792
      %v825 = vpack.c.b16 %v793, %v793
      %v826 = vpack.c.b16 %v794, %v794
      %v827 = vpack.c.b16 %v795, %v795
      %v828 = vpack.c.b16 %v796, %v796
      %v829 = vpack.c.b16 %v797, %v797
      %v830 = vpack.c.b16 %v798, %v798
      %v831 = vpack.c.b16 %v799, %v799
      %v832 = vpack.c.b16 %v800, %v800
      %v833 = vpack.c.b16 %v801, %v801
      %v834 = vpack.c.b16 %v802, %v802
      %v835 = vpack.c.b16 %v803, %v803
      %v836 = vpack.c.b16 %v804, %v804
      %v837 = vpack.c.b16 %v805, %v805
      %v838 = vpack.c.b16 %v806, %v806
      %v839 = vpack.c.b16 %v807, %v807
      %v840 = vpack.c.b16 %v808, %v808
      %v841 = vpack.c.b16 %v809, %v809
      %v842 = vpack.c.b16 %v810, %v810
      %v843 = vpack.c.b16 %v811, %v811
      %v844 = vpack.c.b16 %v812, %v812
      %v845 = vpack.c.b16 %v813, %v813
      %v846 = vpack.c.b16 %v814, %v814
      %v847 = vpack.c.b16 %v815, %v815
      %v848 = vpack.c.b16 %v816, %v816
      %v849 = vpack.c.b16 %v817, %v817
      %v850 = vpack.c.b16 %v818, %v818
      %883 = vst [vmem:[%s175] sm:$0xf] %v819
      %884 = vst [vmem:[%s175 + $0x4] sm:$0xf] %v820
      %885 = vst [vmem:[%s175 + $0x8] sm:$0xf] %v821
      %886 = vst [vmem:[%s175 + $0xc] sm:$0xf] %v822
      %887 = vst [vmem:[%s175 + $0x10] sm:$0xf] %v823
      %888 = vst [vmem:[%s175 + $0x14] sm:$0xf] %v824
      %889 = vst [vmem:[%s175 + $0x18] sm:$0xf] %v825
      %890 = vst [vmem:[%s175 + $0x1c] sm:$0xf] %v826
      %891 = vst [vmem:[%s175 + $0x20] sm:$0xf] %v827
      %892 = vst [vmem:[%s175 + $0x24] sm:$0xf] %v828
      %893 = vst [vmem:[%s175 + $0x28] sm:$0xf] %v829
      %894 = vst [vmem:[%s175 + $0x2c] sm:$0xf] %v830
      %895 = vst [vmem:[%s175 + $0x30] sm:$0xf] %v831
      %896 = vst [vmem:[%s175 + $0x34] sm:$0xf] %v832
      %897 = vst [vmem:[%s175 + $0x38] sm:$0xf] %v833
      %898 = vst [vmem:[%s175 + $0x3c] sm:$0xf] %v834
      %899 = vst [vmem:[%s175 + $0x40] sm:$0xf] %v835
      %900 = vst [vmem:[%s175 + $0x44] sm:$0xf] %v836
      %901 = vst [vmem:[%s175 + $0x48] sm:$0xf] %v837
      %902 = vst [vmem:[%s175 + $0x4c] sm:$0xf] %v838
      %903 = vst [vmem:[%s175 + $0x50] sm:$0xf] %v839
      %904 = vst [vmem:[%s175 + $0x54] sm:$0xf] %v840
      %905 = vst [vmem:[%s175 + $0x58] sm:$0xf] %v841
      %906 = vst [vmem:[%s175 + $0x5c] sm:$0xf] %v842
      %907 = vst [vmem:[%s175 + $0x60] sm:$0xf] %v843
      %908 = vst [vmem:[%s175 + $0x64] sm:$0xf] %v844
      %909 = vst [vmem:[%s175 + $0x68] sm:$0xf] %v845
      %910 = vst [vmem:[%s175 + $0x6c] sm:$0xf] %v846
      %911 = vst [vmem:[%s175 + $0x70] sm:$0xf] %v847
      %912 = vst [vmem:[%s175 + $0x74] sm:$0xf] %v848
      %913 = vst [vmem:[%s175 + $0x78] sm:$0xf] %v849
      %914 = vst [vmem:[%s175 + $0x7c] sm:$0xf] %v850
      %s915 = smul.u32 32, %s14
      %p916 = scmp.lt.s32.totalorder %s915, 63
      %s917 = scalar_select %p916, %s915, 63
      %s918 = smul.addr %s917, 4
      %s919 = scalar_lea.vmem %s3, %s918
      // Predicated region
      $region33: #{_forward_impl.4} parent=31 // pred_check
        %p920 = pneg %p100
      $region34: #{_forward_impl.4} parent=31 // pred_check_branch
        %922 = sbr.rel (%p920) target = $region36
      $region35: #{_forward_impl.4} parent=31 // pred_region
        %s923 = smul.u32 32, %s14
      $region36: #{_forward_impl.4} parent=31 // pred_fallthru
        _
    $region32: #{_forward_impl.4} parent=5 // pred_fallthru
      _
    %p924 = scmp.le.s32.totalorder 2, %s9
    // Predicated region
    $region37: #{_forward_impl.4} parent=5 // pred_check
      %p925 = pneg %p924
    $region38: #{_forward_impl.4} parent=5 // pred_check_branch
      %927 = sbr.rel (%p925) target = $region40
    $region39: #{_forward_impl.4} parent=5 // pred_region
      %s928 = ssub.s32 %s9, 2
      // Predicated region
      $region41: #{_forward_impl.4} parent=39 // pred_check
        %p929 = pneg %p106
      $region42: #{_forward_impl.4} parent=39 // pred_check_branch
        %931 = sbr.rel (%p929) target = $region44
      $region43: #{_forward_impl.4} parent=39 // pred_region
        %s932 = smul.u32 32, %s15
        %p933 = scmp.lt.s32.totalorder %s932, 63
        %s934 = scalar_select %p933, %s932, 63
        %s935 = smul.addr %s934, 4
        %s936 = scalar_lea.vmem %s3, %s935
      $region44: #{_forward_impl.4} parent=39 // pred_fallthru
        _
    $region40: #{_forward_impl.4} parent=5 // pred_fallthru
      _
  $region6: #{_forward_impl.4} parent=0 // loop_footer
    %s13 = sadd.s32 1, %s9
  $region7: #{_forward_impl.4} parent=0 // loop_footer_branch
    %8 = sbr.rel target = $region3
  $region8: #{_forward_impl.4} parent=0 // loop_exit
    _

// kernel: _forward_impl.5
$region0: #{_forward_impl.5}
  #allocation0 [shape = 'u32[]', space=smem, size = 0x4, offset = 0x4, fixed_abs, tag = 'smem constant byte address 0x4 - core index']
  #allocation1 [shape = 'u32[144,128]{1,0:T(1,128)}', space=vmem, size = 0x12000, scoped, tag = 'internal scratch']
  %s0 = inlined_call_operand.vmem [shape: bf16[512,144], index: 0, kind: input, shape index: {}]
  %s1 = inlined_call_operand.vmem [shape: bf16[144,128], index: 1, kind: input, shape index: {}]
  %s2 = inlined_call_operand.vmem [shape: f32[1,128], index: 2, kind: input, shape index: {}]
  %s3 = inlined_call_operand.vmem [shape: f32[512,128], index: 3, kind: output, shape index: {}]
  %s4 = sld [smem:[#allocation0]]
  $region45: #{_forward_impl.5} parent=0
    _
  %s6 = ssub.s32 1, %s4
  %s7 = scalar_select 0, %s6, %s4
  loop: start=0, step=1, limit=4
  $region2: #{_forward_impl.5} parent=0 // loop_pre_header
    _
  $region3: #{_forward_impl.5} parent=0 // loop_header
    %s9 = sphi 0, %s13
    %p10 = scmp.ge.s32.totalorder %s9, 4
    %s19 = sphi 0, %s21
    %s22 = sphi 0, %s19
    %s23 = sphi 0, %s22
    %s39 = sphi 0, %s23
    %s43 = sphi 0, %s43
    %s45 = sphi 0, %s43
    %s46 = sphi 0, %s45
    %s60 = sphi 0, %s46
    %s64 = sphi 0, %s64
    %s66 = sphi 0, %s64
    %s67 = sphi 0, %s66
    %s81 = sphi 0, %s67
    %s87 = sphi 0, %s89
    %s90 = sphi 0, %s87
    %s91 = sphi 0, %s90
    %s107 = sphi 0, %s91
  $region4: #{_forward_impl.5} parent=0 // loop_header_branch
    %12 = sbr.rel (%p10) target = $region8
  $region5: #{_forward_impl.5} parent=0 // loop_body
    %s14 = ssub.s32 %s9, 1
    %s15 = ssub.s32 %s9, 2
    %s16 = sadd.s32 %s9, 1
    %s17 = ssub.s32 %s9, %s16
    %p18 = scmp.eq.s32.totalorder %s17, 0
    %s20 = sadd.s32 %s19, 1
    %s21 = scalar_select %p18, %s19, %s20
    %p24 = pneg %p18
    %p25 = scmp.eq.s32.totalorder %s9, 1
    %p26 = por %p24, %p25
    %p27 = scmp.ne.s32.totalorder %s19, %s22
    %p28 = scmp.eq.s32.totalorder %s9, 0
    %p29 = por %p27, %p28
    %p30 = scmp.ne.s32.totalorder %s19, %s22
    %p31 = scmp.eq.s32.totalorder %s14, 1
    %p32 = por %p30, %p31
    %p33 = scmp.ne.s32.totalorder %s22, %s23
    %p34 = scmp.eq.s32.totalorder %s14, 0
    %p35 = por %p33, %p34
    %p36 = scmp.ne.s32.totalorder %s22, %s23
    %p37 = scmp.eq.s32.totalorder %s15, 1
    %p38 = por %p36, %p37
    %p40 = scmp.ne.s32.totalorder %s23, %s39
    %p41 = scmp.eq.s32.totalorder %s15, 0
    %p42 = por %p40, %p41
    %s44 = sadd.s32 %s43, 1
    %p47 = scmp.eq.s32.totalorder %s9, 1
    %p48 = scmp.ne.s32.totalorder %s43, %s45
    %p49 = scmp.eq.s32.totalorder %s9, 0
    %p50 = por %p48, %p49
    %p51 = scmp.ne.s32.totalorder %s43, %s45
    %p52 = scmp.eq.s32.totalorder %s14, 1
    %p53 = por %p51, %p52
    %p54 = scmp.ne.s32.totalorder %s45, %s46
    %p55 = scmp.eq.s32.totalorder %s14, 0
    %p56 = por %p54, %p55
    %p57 = scmp.ne.s32.totalorder %s45, %s46
    %p58 = scmp.eq.s32.totalorder %s15, 1
    %p59 = por %p57, %p58
    %p61 = scmp.ne.s32.totalorder %s46, %s60
    %p62 = scmp.eq.s32.totalorder %s15, 0
    %p63 = por %p61, %p62
    %s65 = sadd.s32 %s64, 1
    %p68 = scmp.eq.s32.totalorder %s9, 1
    %p69 = scmp.ne.s32.totalorder %s64, %s66
    %p70 = scmp.eq.s32.totalorder %s9, 0
    %p71 = por %p69, %p70
    %p72 = scmp.ne.s32.totalorder %s64, %s66
    %p73 = scmp.eq.s32.totalorder %s14, 1
    %p74 = por %p72, %p73
    %p75 = scmp.ne.s32.totalorder %s66, %s67
    %p76 = scmp.eq.s32.totalorder %s14, 0
    %p77 = por %p75, %p76
    %p78 = scmp.ne.s32.totalorder %s66, %s67
    %p79 = scmp.eq.s32.totalorder %s15, 1
    %p80 = por %p78, %p79
    %p82 = scmp.ne.s32.totalorder %s67, %s81
    %p83 = scmp.eq.s32.totalorder %s15, 0
    %p84 = por %p82, %p83
    %s85 = ssub.s32 %s9, %s16
    %p86 = scmp.eq.s32.totalorder %s85, 0
    %s88 = sadd.s32 %s87, 1
    %s89 = scalar_select %p86, %s87, %s88
    %p92 = pneg %p86
    %p93 = scmp.eq.s32.totalorder %s9, 1
    %p94 = por %p92, %p93
    %p95 = scmp.ne.s32.totalorder %s87, %s90
    %p96 = scmp.eq.s32.totalorder %s9, 0
    %p97 = por %p95, %p96
    %p98 = scmp.ne.s32.totalorder %s87, %s90
    %p99 = scmp.eq.s32.totalorder %s14, 1
    %p100 = por %p98, %p99
    %p101 = scmp.ne.s32.totalorder %s90, %s91
    %p102 = scmp.eq.s32.totalorder %s14, 0
    %p103 = por %p101, %p102
    %p104 = scmp.ne.s32.totalorder %s90, %s91
    %p105 = scmp.eq.s32.totalorder %s15, 1
    %p106 = por %p104, %p105
    %p108 = scmp.ne.s32.totalorder %s91, %s107
    %p109 = scmp.eq.s32.totalorder %s15, 0
    %p110 = por %p108, %p109
    %p111 = scmp.le.s32.totalorder 1, %s9
    %p112 = scmp.lt.s32.totalorder %s9, 3
    %p113 = pnand %p111, %p112
    %p114 = pneg %p113
    // Predicated region
    $region9: #{_forward_impl.5} parent=5 // pred_check
      _
    $region10: #{_forward_impl.5} parent=5 // pred_check_branch
      %116 = sbr.rel (%p113) target = $region12
    $region11: #{_forward_impl.5} parent=5 // pred_region
      %s117 = ssub.s32 %s9, 1
      // Predicated region
      $region13: #{_forward_impl.5} parent=11 // pred_check
        %p118 = pneg %p56
      $region14: #{_forward_impl.5} parent=11 // pred_check_branch
        %120 = sbr.rel (%p118) target = $region16
      $region15: #{_forward_impl.5} parent=11 // pred_region
        _
      $region16: #{_forward_impl.5} parent=11 // pred_fallthru
        _
      // Predicated region
      $region17: #{_forward_impl.5} parent=11 // pred_check
        %p121 = pneg %p77
      $region18: #{_forward_impl.5} parent=11 // pred_check_branch
        %123 = sbr.rel (%p121) target = $region20
      $region19: #{_forward_impl.5} parent=11 // pred_region
        _
      $region20: #{_forward_impl.5} parent=11 // pred_fallthru
        _
    $region12: #{_forward_impl.5} parent=5 // pred_fallthru
      _
    %p124 = scmp.lt.s32.totalorder %s9, 2
    // Predicated region
    $region21: #{_forward_impl.5} parent=5 // pred_check
      %p125 = pneg %p124
    $region22: #{_forward_impl.5} parent=5 // pred_check_branch
      %127 = sbr.rel (%p125) target = $region24
    $region23: #{_forward_impl.5} parent=5 // pred_region
      // Predicated region
      $region25: #{_forward_impl.5} parent=23 // pred_check
        %p128 = pneg %p29
      $region26: #{_forward_impl.5} parent=23 // pred_check_branch
        %130 = sbr.rel (%p128) target = $region28
      $region27: #{_forward_impl.5} parent=23 // pred_region
        %s131 = smul.u32 32, %s9
        %p132 = scmp.lt.s32.totalorder %s131, 63
        %s133 = scalar_select %p132, %s131, 63
        %s134 = smul.addr %s133, 2
        %s135 = smul.addr %s134, 4
        %s136 = scalar_lea.vmem %s0, %s135
        %s137 = smul.u32 32, %s9
      $region28: #{_forward_impl.5} parent=23 // pred_fallthru
        _
    $region24: #{_forward_impl.5} parent=5 // pred_fallthru
      _
    %p138 = scmp.le.s32.totalorder 1, %s9
    %p139 = scmp.lt.s32.totalorder %s9, 3
    %p140 = pnand %p138, %p139
    %p141 = pneg %p140
    // Predicated region
    $region29: #{_forward_impl.5} parent=5 // pred_check
      _
    $region30: #{_forward_impl.5} parent=5 // pred_check_branch
      %143 = sbr.rel (%p140) target = $region32
    $region31: #{_forward_impl.5} parent=5 // pred_region
      %s144 = ssub.s32 %s9, 1
      %s145 = smul.u32 32, %s14
      %p146 = scmp.lt.s32.totalorder %s145, 63
      %s147 = scalar_select %p146, %s145, 63
      %s148 = smul.addr %s147, 2
      %s149 = smul.addr %s148, 4
      %s150 = scalar_lea.vmem %s0, %s149
      %p151 = pneg %p35
      %p152 = pneg %p32
      %p153 = pneg %p56
      %p154 = pneg %p53
      %p155 = pneg %p77
      %p156 = pneg %p74
      %p157 = pneg %p103
      %p158 = pneg %p100
      %s159 = smul.u32 32, %s14
      %p160 = scmp.lt.s32.totalorder %s159, 63
      %s161 = scalar_select %p160, %s159, 63
      %s162 = smul.addr %s161, 8
      %s163 = scalar_lea.vmem %s3, %s162
      %s164 = smul.u32 32, %s14
      %p165 = scmp.lt.s32.totalorder %s164, 63
      %s166 = scalar_select %p165, %s164, 63
      %s167 = smul.addr %s166, 2
      %s168 = smul.addr %s167, 4
      %s169 = scalar_lea.vmem %s0, %s168
      %s170 = smul.u32 32, %s14
      %s171 = smul.u32 32, %s14
      %p172 = scmp.lt.s32.totalorder %s171, 63
      %s173 = scalar_select %p172, %s171, 63
      %s174 = smul.addr %s173, 8
      %s175 = scalar_lea.vmem %s3, %s174
      %s176 = smul.u32 32, %s14
      %v178 = vld [vmem:[%s169] sm:$0xff]
      %v179 = vld [vmem:[%s169 + $0x8] sm:$0xff]
      %v180 = vld [vmem:[%s169 + $0x10] sm:$0xff]
      %v181 = vld [vmem:[%s169 + $0x18] sm:$0xff]
      %v182 = vld [vmem:[%s169 + $0x20] sm:$0xff]
      %v183 = vld [vmem:[%s169 + $0x28] sm:$0xff]
      %v184 = vld [vmem:[%s169 + $0x30] sm:$0xff]
      %v185 = vld [vmem:[%s169 + $0x38] sm:$0xff]
      %v186 = vld [vmem:[%s169 + $0x40] sm:$0xff]
      %v187 = vld [vmem:[%s169 + $0x48] sm:$0xff]
      %v188 = vld [vmem:[%s169 + $0x50] sm:$0xff]
      %v189 = vld [vmem:[%s169 + $0x58] sm:$0xff]
      %v190 = vld [vmem:[%s169 + $0x60] sm:$0xff]
      %v191 = vld [vmem:[%s169 + $0x68] sm:$0xff]
      %v192 = vld [vmem:[%s169 + $0x70] sm:$0xff]
      %v193 = vld [vmem:[%s169 + $0x78] sm:$0xff]
      %v194 = vld [vmem:[%s169 + $0x80] sm:$0xff]
      %v195 = vld [vmem:[%s169 + $0x88] sm:$0xff]
      %v196 = vld [vmem:[%s169 + $0x90] sm:$0xff]
      %v197 = vld [vmem:[%s169 + $0x98] sm:$0xff]
      %v198 = vld [vmem:[%s169 + $0xa0] sm:$0xff]
      %v199 = vld [vmem:[%s169 + $0xa8] sm:$0xff]
      %v200 = vld [vmem:[%s169 + $0xb0] sm:$0xff]
      %v201 = vld [vmem:[%s169 + $0xb8] sm:$0xff]
      %v202 = vld [vmem:[%s169 + $0xc0] sm:$0xff]
      %v203 = vld [vmem:[%s169 + $0xc8] sm:$0xff]
      %v204 = vld [vmem:[%s169 + $0xd0] sm:$0xff]
      %v205 = vld [vmem:[%s169 + $0xd8] sm:$0xff]
      %v206 = vld [vmem:[%s169 + $0xe0] sm:$0xff]
      %v207 = vld [vmem:[%s169 + $0xe8] sm:$0xff]
      %v208 = vld [vmem:[%s169 + $0xf0] sm:$0xff]
      %v209 = vld [vmem:[%s169 + $0xf8] sm:$0xff]
      %v210 = vld [vmem:[%s1] sm:$0xf]
      %v211 = vld [vmem:[%s1 + $0x4] sm:$0xf]
      %v212 = vld [vmem:[%s1 + $0x8] sm:$0xf]
      %v213 = vld [vmem:[%s1 + $0xc] sm:$0xf]
      %v214 = vld [vmem:[%s1 + $0x10] sm:$0xf]
      %v215 = vld [vmem:[%s1 + $0x14] sm:$0xf]
      %v216 = vld [vmem:[%s1 + $0x18] sm:$0xf]
      %v217 = vld [vmem:[%s1 + $0x1c] sm:$0xf]
      %v218 = vld [vmem:[%s1 + $0x20] sm:$0xf]
      %v219 = vld [vmem:[%s1 + $0x24] sm:$0xf]
      %v220 = vld [vmem:[%s1 + $0x28] sm:$0xf]
      %v221 = vld [vmem:[%s1 + $0x2c] sm:$0xf]
      %v222 = vld [vmem:[%s1 + $0x30] sm:$0xf]
      %v223 = vld [vmem:[%s1 + $0x34] sm:$0xf]
      %v224 = vld [vmem:[%s1 + $0x38] sm:$0xf]
      %v225 = vld [vmem:[%s1 + $0x3c] sm:$0xf]
      %v226 = vld [vmem:[%s1 + $0x40] sm:$0xf]
      %v227 = vld [vmem:[%s1 + $0x44] sm:$0xf]
      %v228 = vld [vmem:[%s2] sm:$0x1]
      %v230 = vlaneseq
      %v231 = vshrl.u32 %v230, 7
      %v232 = vsub.s32 0, %v231
      %v233 = vrot.slane %v228, %v232
      %v267 = vunpack.c.l.b16 %v178
      %v268 = vunpack.c.h.b16 %v178
      %v269 = vunpack.c.l.b16 %v179
      %v270 = vunpack.c.h.b16 %v179
      %v271 = vunpack.c.l.b16 %v180
      %v272 = vunpack.c.h.b16 %v180
      %v273 = vunpack.c.l.b16 %v181
      %v274 = vunpack.c.h.b16 %v181
      %v275 = vunpack.c.l.b16 %v182
      %v276 = vunpack.c.h.b16 %v182
      %v277 = vunpack.c.l.b16 %v183
      %v278 = vunpack.c.h.b16 %v183
      %v279 = vunpack.c.l.b16 %v184
      %v280 = vunpack.c.h.b16 %v184
      %v281 = vunpack.c.l.b16 %v185
      %v282 = vunpack.c.h.b16 %v185
      %v283 = vunpack.c.l.b16 %v186
      %v284 = vunpack.c.h.b16 %v186
      %v285 = vunpack.c.l.b16 %v187
      %v286 = vunpack.c.h.b16 %v187
      %v287 = vunpack.c.l.b16 %v188
      %v288 = vunpack.c.h.b16 %v188
      %v289 = vunpack.c.l.b16 %v189
      %v290 = vunpack.c.h.b16 %v189
      %v291 = vunpack.c.l.b16 %v190
      %v292 = vunpack.c.h.b16 %v190
      %v293 = vunpack.c.l.b16 %v191
      %v294 = vunpack.c.h.b16 %v191
      %v295 = vunpack.c.l.b16 %v192
      %v296 = vunpack.c.h.b16 %v192
      %v297 = vunpack.c.l.b16 %v193
      %v298 = vunpack.c.h.b16 %v193
      %v299 = vunpack.c.l.b16 %v194
      %v300 = vunpack.c.h.b16 %v194
      %v301 = vunpack.c.l.b16 %v195
      %v302 = vunpack.c.h.b16 %v195
      %v303 = vunpack.c.l.b16 %v196
      %v304 = vunpack.c.h.b16 %v196
      %v305 = vunpack.c.l.b16 %v197
      %v306 = vunpack.c.h.b16 %v197
      %v307 = vunpack.c.l.b16 %v198
      %v308 = vunpack.c.h.b16 %v198
      %v309 = vunpack.c.l.b16 %v199
      %v310 = vunpack.c.h.b16 %v199
      %v311 = vunpack.c.l.b16 %v200
      %v312 = vunpack.c.h.b16 %v200
      %v313 = vunpack.c.l.b16 %v201
      %v314 = vunpack.c.h.b16 %v201
      %v315 = vunpack.c.l.b16 %v202
      %v316 = vunpack.c.h.b16 %v202
      %v317 = vunpack.c.l.b16 %v203
      %v318 = vunpack.c.h.b16 %v203
      %v319 = vunpack.c.l.b16 %v204
      %v320 = vunpack.c.h.b16 %v204
      %v321 = vunpack.c.l.b16 %v205
      %v322 = vunpack.c.h.b16 %v205
      %v323 = vunpack.c.l.b16 %v206
      %v324 = vunpack.c.h.b16 %v206
      %v325 = vunpack.c.l.b16 %v207
      %v326 = vunpack.c.h.b16 %v207
      %v327 = vunpack.c.l.b16 %v208
      %v328 = vunpack.c.h.b16 %v208
      %v329 = vunpack.c.l.b16 %v209
      %v330 = vunpack.c.h.b16 %v209
      %v331 = vpack.c.b16 %v269, %v267
      %v332 = vpack.c.b16 %v270, %v268
      %v333 = vpack.c.b16 %v273, %v271
      %v334 = vpack.c.b16 %v274, %v272
      %v335 = vpack.c.b16 %v277, %v275
      %v336 = vpack.c.b16 %v278, %v276
      %v337 = vpack.c.b16 %v281, %v279
      %v338 = vpack.c.b16 %v282, %v280
      %v339 = vpack.c.b16 %v285, %v283
      %v340 = vpack.c.b16 %v286, %v284
      %v341 = vpack.c.b16 %v289, %v287
      %v342 = vpack.c.b16 %v290, %v288
      %v343 = vpack.c.b16 %v293, %v291
      %v344 = vpack.c.b16 %v294, %v292
      %v345 = vpack.c.b16 %v297, %v295
      %v346 = vpack.c.b16 %v298, %v296
      %v347 = vpack.c.b16 %v301, %v299
      %v348 = vpack.c.b16 %v302, %v300
      %v349 = vpack.c.b16 %v305, %v303
      %v350 = vpack.c.b16 %v306, %v304
      %v351 = vpack.c.b16 %v309, %v307
      %v352 = vpack.c.b16 %v310, %v308
      %v353 = vpack.c.b16 %v313, %v311
      %v354 = vpack.c.b16 %v314, %v312
      %v355 = vpack.c.b16 %v317, %v315
      %v356 = vpack.c.b16 %v318, %v316
      %v357 = vpack.c.b16 %v321, %v319
      %v358 = vpack.c.b16 %v322, %v320
      %v359 = vpack.c.b16 %v325, %v323
      %v360 = vpack.c.b16 %v326, %v324
      %v361 = vpack.c.b16 %v329, %v327
      %v362 = vpack.c.b16 %v330, %v328
      %v397 = vunpack.c.l.b16 %v210
      %v398 = vunpack.c.l.b16 %v211
      %v399 = vunpack.c.l.b16 %v212
      %v400 = vunpack.c.l.b16 %v213
      %v401 = vunpack.c.l.b16 %v214
      %v402 = vunpack.c.l.b16 %v215
      %v403 = vunpack.c.l.b16 %v216
      %v404 = vunpack.c.l.b16 %v217
      %v405 = vunpack.c.l.b16 %v218
      %v406 = vunpack.c.l.b16 %v219
      %v407 = vunpack.c.l.b16 %v220
      %v408 = vunpack.c.l.b16 %v221
      %v409 = vunpack.c.l.b16 %v222
      %v410 = vunpack.c.l.b16 %v223
      %v411 = vunpack.c.l.b16 %v224
      %v412 = vunpack.c.l.b16 %v225
      %v413 = vunpack.c.l.b16 %v226
      %v414 = vunpack.c.l.b16 %v227
      %v415 = vpack.c.b16 %v398, %v397
      %v416 = vpack.c.b16 %v400, %v399
      %v417 = vpack.c.b16 %v402, %v401
      %v418 = vpack.c.b16 %v404, %v403
      %v419 = vpack.c.b16 %v406, %v405
      %v420 = vpack.c.b16 %v408, %v407
      %v421 = vpack.c.b16 %v410, %v409
      %v422 = vpack.c.b16 %v412, %v411
      %v423 = vpack.c.b16 %v414, %v413
      %vm433 = vcmask 130048
      %v435 = vsel %vm433, %v332, 0
      %v438 = vsel %vm433, %v334, 0
      %v441 = vsel %vm433, %v336, 0
      %v444 = vsel %vm433, %v338, 0
      %v447 = vsel %vm433, %v340, 0
      %v450 = vsel %vm433, %v342, 0
      %v453 = vsel %vm433, %v344, 0
      %v456 = vsel %vm433, %v346, 0
      %v459 = vsel %vm433, %v348, 0
      %v462 = vsel %vm433, %v350, 0
      %v465 = vsel %vm433, %v352, 0
      %v468 = vsel %vm433, %v354, 0
      %v471 = vsel %vm433, %v356, 0
      %v474 = vsel %vm433, %v358, 0
      %v477 = vsel %vm433, %v360, 0
      %v480 = vsel %vm433, %v362, 0
      %482 = vmatprep.subr.bf16.mxu0 0
      %483 = vmatpush1.bf16.msra.mxu0 %v415
      %484 = vmatprep.subr.bf16.mxu0 0
      %485 = vmatpush1.bf16.msra.mxu0 %v416
      %486 = vmatprep.subr.bf16.mxu0 0
      %487 = vmatpush1.bf16.msra.mxu0 %v417
      %488 = vmatprep.subr.bf16.mxu0 0
      %489 = vmatpush1.bf16.msra.mxu0 %v418
      %490 = vmatprep.subr.bf16.mxu0 0
      %491 = vmatpush1.bf16.msra.mxu0 %v419
      %492 = vmatprep.subr.bf16.mxu0 0
      %493 = vmatpush1.bf16.msra.mxu0 %v420
      %494 = vmatprep.subr.bf16.mxu0 0
      %495 = vmatpush1.bf16.msra.mxu0 %v421
      %496 = vmatprep.subr.bf16.mxu0 0
      %497 = vmatpush1.bf16.msra.mxu0 %v422
      %498 = vmatprep.subr.bf16.mxu0 0
      %499 = vmatpush1.bf16.msra.mxu0 %v423
      %500 = vmatprep.subr.bf16.mxu0 0
      %501 = vmatpush1.bf16.msra.mxu0 0
      %502 = vmatprep.subr.bf16.mxu0 0
      %503 = vmatpush1.bf16.msra.mxu0 0
      %504 = vmatprep.subr.bf16.mxu0 0
      %505 = vmatpush1.bf16.msra.mxu0 0
      %506 = vmatprep.subr.bf16.mxu0 0
      %507 = vmatpush1.bf16.msra.mxu0 0
      %508 = vmatprep.subr.bf16.mxu0 0
      %509 = vmatpush1.bf16.msra.mxu0 0
      %510 = vmatprep.subr.bf16.mxu0 0
      %511 = vmatpush1.bf16.msra.mxu0 0
      %512 = vmatprep.subr.bf16.mxu0 0
      %513 = vmatpush1.bf16.msra.mxu0 0
      %514 = vmatprep.mubr.bf16.mxu0 %v435
      %515 = vmatmul.mubr.bf16.gmra.mrb[0].mxu0 %v331
      %v516 = vpop.f32.mrb[0].mxu0
      %v517 = vadd.f32 %v233, %v516
      %v518 = vpop.f32.mrb[0].mxu0
      %v519 = vpop.f32.mrb[0].mxu0
      %v520 = vadd.f32 %v233, %v519
      %v521 = vpop.f32.mrb[0].mxu0
      %522 = vmatprep.mubr.bf16.mxu0 %v438
      %523 = vmatmul.mubr.bf16.gmra.mrb[0].mxu0 %v333
      %v524 = vpop.f32.mrb[0].mxu0
      %v525 = vadd.f32 %v233, %v524
      %v526 = vpop.f32.mrb[0].mxu0
      %v527 = vpop.f32.mrb[0].mxu0
      %v528 = vadd.f32 %v233, %v527
      %v529 = vpop.f32.mrb[0].mxu0
      %530 = vmatprep.mubr.bf16.mxu0 %v441
      %531 = vmatmul.mubr.bf16.gmra.mrb[0].mxu0 %v335
      %v532 = vpop.f32.mrb[0].mxu0
      %v533 = vadd.f32 %v233, %v532
      %v534 = vpop.f32.mrb[0].mxu0
      %v535 = vpop.f32.mrb[0].mxu0
      %v536 = vadd.f32 %v233, %v535
      %v537 = vpop.f32.mrb[0].mxu0
      %538 = vmatprep.mubr.bf16.mxu0 %v444
      %539 = vmatmul.mubr.bf16.gmra.mrb[0].mxu0 %v337
      %v540 = vpop.f32.mrb[0].mxu0
      %v541 = vadd.f32 %v233, %v540
      %v542 = vpop.f32.mrb[0].mxu0
      %v543 = vpop.f32.mrb[0].mxu0
      %v544 = vadd.f32 %v233, %v543
      %v545 = vpop.f32.mrb[0].mxu0
      %546 = vmatprep.mubr.bf16.mxu0 %v447
      %547 = vmatmul.mubr.bf16.gmra.mrb[0].mxu0 %v339
      %v548 = vpop.f32.mrb[0].mxu0
      %v549 = vadd.f32 %v233, %v548
      %v550 = vpop.f32.mrb[0].mxu0
      %v551 = vpop.f32.mrb[0].mxu0
      %v552 = vadd.f32 %v233, %v551
      %v553 = vpop.f32.mrb[0].mxu0
      %554 = vmatprep.mubr.bf16.mxu0 %v450
      %555 = vmatmul.mubr.bf16.gmra.mrb[0].mxu0 %v341
      %v556 = vpop.f32.mrb[0].mxu0
      %v557 = vadd.f32 %v233, %v556
      %v558 = vpop.f32.mrb[0].mxu0
      %v559 = vpop.f32.mrb[0].mxu0
      %v560 = vadd.f32 %v233, %v559
      %v561 = vpop.f32.mrb[0].mxu0
      %562 = vmatprep.mubr.bf16.mxu0 %v453
      %563 = vmatmul.mubr.bf16.gmra.mrb[0].mxu0 %v343
      %v564 = vpop.f32.mrb[0].mxu0
      %v565 = vadd.f32 %v233, %v564
      %v566 = vpop.f32.mrb[0].mxu0
      %v567 = vpop.f32.mrb[0].mxu0
      %v568 = vadd.f32 %v233, %v567
      %v569 = vpop.f32.mrb[0].mxu0
      %570 = vmatprep.mubr.bf16.mxu0 %v456
      %571 = vmatmul.mubr.bf16.gmra.mrb[0].mxu0 %v345
      %v572 = vpop.f32.mrb[0].mxu0
      %v573 = vadd.f32 %v233, %v572
      %v574 = vpop.f32.mrb[0].mxu0
      %v575 = vpop.f32.mrb[0].mxu0
      %v576 = vadd.f32 %v233, %v575
      %v577 = vpop.f32.mrb[0].mxu0
      %578 = vmatprep.mubr.bf16.mxu0 %v459
      %579 = vmatmul.mubr.bf16.gmra.mrb[0].mxu0 %v347
      %v580 = vpop.f32.mrb[0].mxu0
      %v581 = vadd.f32 %v233, %v580
      %v582 = vpop.f32.mrb[0].mxu0
      %v583 = vpop.f32.mrb[0].mxu0
      %v584 = vadd.f32 %v233, %v583
      %v585 = vpop.f32.mrb[0].mxu0
      %586 = vmatprep.mubr.bf16.mxu0 %v462
      %587 = vmatmul.mubr.bf16.gmra.mrb[0].mxu0 %v349
      %v588 = vpop.f32.mrb[0].mxu0
      %v589 = vadd.f32 %v233, %v588
      %v590 = vpop.f32.mrb[0].mxu0
      %v591 = vpop.f32.mrb[0].mxu0
      %v592 = vadd.f32 %v233, %v591
      %v593 = vpop.f32.mrb[0].mxu0
      %594 = vmatprep.mubr.bf16.mxu0 %v465
      %595 = vmatmul.mubr.bf16.gmra.mrb[0].mxu0 %v351
      %v596 = vpop.f32.mrb[0].mxu0
      %v597 = vadd.f32 %v233, %v596
      %v598 = vpop.f32.mrb[0].mxu0
      %v599 = vpop.f32.mrb[0].mxu0
      %v600 = vadd.f32 %v233, %v599
      %v601 = vpop.f32.mrb[0].mxu0
      %602 = vmatprep.mubr.bf16.mxu0 %v468
      %603 = vmatmul.mubr.bf16.gmra.mrb[0].mxu0 %v353
      %v604 = vpop.f32.mrb[0].mxu0
      %v605 = vadd.f32 %v233, %v604
      %v606 = vpop.f32.mrb[0].mxu0
      %v607 = vpop.f32.mrb[0].mxu0
      %v608 = vadd.f32 %v233, %v607
      %v609 = vpop.f32.mrb[0].mxu0
      %610 = vmatprep.mubr.bf16.mxu0 %v471
      %611 = vmatmul.mubr.bf16.gmra.mrb[0].mxu0 %v355
      %v612 = vpop.f32.mrb[0].mxu0
      %v613 = vadd.f32 %v233, %v612
      %v614 = vpop.f32.mrb[0].mxu0
      %v615 = vpop.f32.mrb[0].mxu0
      %v616 = vadd.f32 %v233, %v615
      %v617 = vpop.f32.mrb[0].mxu0
      %618 = vmatprep.mubr.bf16.mxu0 %v474
      %619 = vmatmul.mubr.bf16.gmra.mrb[0].mxu0 %v357
      %v620 = vpop.f32.mrb[0].mxu0
      %v621 = vadd.f32 %v233, %v620
      %v622 = vpop.f32.mrb[0].mxu0
      %v623 = vpop.f32.mrb[0].mxu0
      %v624 = vadd.f32 %v233, %v623
      %v625 = vpop.f32.mrb[0].mxu0
      %626 = vmatprep.mubr.bf16.mxu0 %v477
      %627 = vmatmul.mubr.bf16.gmra.mrb[0].mxu0 %v359
      %v628 = vpop.f32.mrb[0].mxu0
      %v629 = vadd.f32 %v233, %v628
      %v630 = vpop.f32.mrb[0].mxu0
      %v631 = vpop.f32.mrb[0].mxu0
      %v632 = vadd.f32 %v233, %v631
      %v633 = vpop.f32.mrb[0].mxu0
      %634 = vmatprep.mubr.bf16.mxu0 %v480
      %635 = vmatmul.mubr.bf16.gmra.mrb[0].mxu0 %v361
      %v636 = vpop.f32.mrb[0].mxu0
      %v637 = vadd.f32 %v233, %v636
      %v638 = vpop.f32.mrb[0].mxu0
      %v639 = vpop.f32.mrb[0].mxu0
      %v640 = vadd.f32 %v233, %v639
      %v641 = vpop.f32.mrb[0].mxu0
      %642 = vdwg.mxu0
      %v643 = vxor.u32 %v517, 2147483648
      %v644 = vxor.u32 %v520, 2147483648
      %v645 = vxor.u32 %v525, 2147483648
      %v646 = vxor.u32 %v528, 2147483648
      %v647 = vxor.u32 %v533, 2147483648
      %v648 = vxor.u32 %v536, 2147483648
      %v649 = vxor.u32 %v541, 2147483648
      %v650 = vxor.u32 %v544, 2147483648
      %v651 = vxor.u32 %v549, 2147483648
      %v652 = vxor.u32 %v552, 2147483648
      %v653 = vxor.u32 %v557, 2147483648
      %v654 = vxor.u32 %v560, 2147483648
      %v655 = vxor.u32 %v565, 2147483648
      %v656 = vxor.u32 %v568, 2147483648
      %v657 = vxor.u32 %v573, 2147483648
      %v658 = vxor.u32 %v576, 2147483648
      %v659 = vxor.u32 %v581, 2147483648
      %v660 = vxor.u32 %v584, 2147483648
      %v661 = vxor.u32 %v589, 2147483648
      %v662 = vxor.u32 %v592, 2147483648
      %v663 = vxor.u32 %v597, 2147483648
      %v664 = vxor.u32 %v600, 2147483648
      %v665 = vxor.u32 %v605, 2147483648
      %v666 = vxor.u32 %v608, 2147483648
      %v667 = vxor.u32 %v613, 2147483648
      %v668 = vxor.u32 %v616, 2147483648
      %v669 = vxor.u32 %v621, 2147483648
      %v670 = vxor.u32 %v624, 2147483648
      %v671 = vxor.u32 %v629, 2147483648
      %v672 = vxor.u32 %v632, 2147483648
      %v673 = vxor.u32 %v637, 2147483648
      %v674 = vxor.u32 %v640, 2147483648
      %v675 = vmul.f32 %v643, 1.442695
      %v676 = vpow.pop %v675
      %v677 = vmul.f32 %v644, 1.442695
      %v678 = vpow.pop %v677
      %v679 = vmul.f32 %v645, 1.442695
      %v680 = vpow.pop %v679
      %v681 = vmul.f32 %v646, 1.442695
      %v682 = vpow.pop %v681
      %v683 = vmul.f32 %v647, 1.442695
      %v684 = vpow.pop %v683
      %v685 = vmul.f32 %v648, 1.442695
      %v686 = vpow.pop %v685
      %v687 = vmul.f32 %v649, 1.442695
      %v688 = vpow.pop %v687
      %v689 = vmul.f32 %v650, 1.442695
      %v690 = vpow.pop %v689
      %v691 = vmul.f32 %v651, 1.442695
      %v692 = vpow.pop %v691
      %v693 = vmul.f32 %v652, 1.442695
      %v694 = vpow.pop %v693
      %v695 = vmul.f32 %v653, 1.442695
      %v696 = vpow.pop %v695
      %v697 = vmul.f32 %v654, 1.442695
      %v698 = vpow.pop %v697
      %v699 = vmul.f32 %v655, 1.442695
      %v700 = vpow.pop %v699
      %v701 = vmul.f32 %v656, 1.442695
      %v702 = vpow.pop %v701
      %v703 = vmul.f32 %v657, 1.442695
      %v704 = vpow.pop %v703
      %v705 = vmul.f32 %v658, 1.442695
      %v706 = vpow.pop %v705
      %v707 = vmul.f32 %v659, 1.442695
      %v708 = vpow.pop %v707
      %v709 = vmul.f32 %v660, 1.442695
      %v710 = vpow.pop %v709
      %v711 = vmul.f32 %v661, 1.442695
      %v712 = vpow.pop %v711
      %v713 = vmul.f32 %v662, 1.442695
      %v714 = vpow.pop %v713
      %v715 = vmul.f32 %v663, 1.442695
      %v716 = vpow.pop %v715
      %v717 = vmul.f32 %v664, 1.442695
      %v718 = vpow.pop %v717
      %v719 = vmul.f32 %v665, 1.442695
      %v720 = vpow.pop %v719
      %v721 = vmul.f32 %v666, 1.442695
      %v722 = vpow.pop %v721
      %v723 = vmul.f32 %v667, 1.442695
      %v724 = vpow.pop %v723
      %v725 = vmul.f32 %v668, 1.442695
      %v726 = vpow.pop %v725
      %v727 = vmul.f32 %v669, 1.442695
      %v728 = vpow.pop %v727
      %v729 = vmul.f32 %v670, 1.442695
      %v730 = vpow.pop %v729
      %v731 = vmul.f32 %v671, 1.442695
      %v732 = vpow.pop %v731
      %v733 = vmul.f32 %v672, 1.442695
      %v734 = vpow.pop %v733
      %v735 = vmul.f32 %v673, 1.442695
      %v736 = vpow.pop %v735
      %v737 = vmul.f32 %v674, 1.442695
      %v738 = vpow.pop %v737
      %v739 = vadd.f32 %v676, 1.0
      %v740 = vadd.f32 %v678, 1.0
      %v741 = vadd.f32 %v680, 1.0
      %v742 = vadd.f32 %v682, 1.0
      %v743 = vadd.f32 %v684, 1.0
      %v744 = vadd.f32 %v686, 1.0
      %v745 = vadd.f32 %v688, 1.0
      %v746 = vadd.f32 %v690, 1.0
      %v747 = vadd.f32 %v692, 1.0
      %v748 = vadd.f32 %v694, 1.0
      %v749 = vadd.f32 %v696, 1.0
      %v750 = vadd.f32 %v698, 1.0
      %v751 = vadd.f32 %v700, 1.0
      %v752 = vadd.f32 %v702, 1.0
      %v753 = vadd.f32 %v704, 1.0
      %v754 = vadd.f32 %v706, 1.0
      %v755 = vadd.f32 %v708, 1.0
      %v756 = vadd.f32 %v710, 1.0
      %v757 = vadd.f32 %v712, 1.0
      %v758 = vadd.f32 %v714, 1.0
      %v759 = vadd.f32 %v716, 1.0
      %v760 = vadd.f32 %v718, 1.0
      %v761 = vadd.f32 %v720, 1.0
      %v762 = vadd.f32 %v722, 1.0
      %v763 = vadd.f32 %v724, 1.0
      %v764 = vadd.f32 %v726, 1.0
      %v765 = vadd.f32 %v728, 1.0
      %v766 = vadd.f32 %v730, 1.0
      %v767 = vadd.f32 %v732, 1.0
      %v768 = vadd.f32 %v734, 1.0
      %v769 = vadd.f32 %v736, 1.0
      %v770 = vadd.f32 %v738, 1.0
      %v771 = vrcp.pop %v739
      %v772 = vmul.f32 1.0, %v771
      %v773 = vrcp.pop %v740
      %v774 = vmul.f32 1.0, %v773
      %v775 = vrcp.pop %v741
      %v776 = vmul.f32 1.0, %v775
      %v777 = vrcp.pop %v742
      %v778 = vmul.f32 1.0, %v777
      %v779 = vrcp.pop %v743
      %v780 = vmul.f32 1.0, %v779
      %v781 = vrcp.pop %v744
      %v782 = vmul.f32 1.0, %v781
      %v783 = vrcp.pop %v745
      %v784 = vmul.f32 1.0, %v783
      %v785 = vrcp.pop %v746
      %v786 = vmul.f32 1.0, %v785
      %v787 = vrcp.pop %v747
      %v788 = vmul.f32 1.0, %v787
      %v789 = vrcp.pop %v748
      %v790 = vmul.f32 1.0, %v789
      %v791 = vrcp.pop %v749
      %v792 = vmul.f32 1.0, %v791
      %v793 = vrcp.pop %v750
      %v794 = vmul.f32 1.0, %v793
      %v795 = vrcp.pop %v751
      %v796 = vmul.f32 1.0, %v795
      %v797 = vrcp.pop %v752
      %v798 = vmul.f32 1.0, %v797
      %v799 = vrcp.pop %v753
      %v800 = vmul.f32 1.0, %v799
      %v801 = vrcp.pop %v754
      %v802 = vmul.f32 1.0, %v801
      %v803 = vrcp.pop %v755
      %v804 = vmul.f32 1.0, %v803
      %v805 = vrcp.pop %v756
      %v806 = vmul.f32 1.0, %v805
      %v807 = vrcp.pop %v757
      %v808 = vmul.f32 1.0, %v807
      %v809 = vrcp.pop %v758
      %v810 = vmul.f32 1.0, %v809
      %v811 = vrcp.pop %v759
      %v812 = vmul.f32 1.0, %v811
      %v813 = vrcp.pop %v760
      %v814 = vmul.f32 1.0, %v813
      %v815 = vrcp.pop %v761
      %v816 = vmul.f32 1.0, %v815
      %v817 = vrcp.pop %v762
      %v818 = vmul.f32 1.0, %v817
      %v819 = vrcp.pop %v763
      %v820 = vmul.f32 1.0, %v819
      %v821 = vrcp.pop %v764
      %v822 = vmul.f32 1.0, %v821
      %v823 = vrcp.pop %v765
      %v824 = vmul.f32 1.0, %v823
      %v825 = vrcp.pop %v766
      %v826 = vmul.f32 1.0, %v825
      %v827 = vrcp.pop %v767
      %v828 = vmul.f32 1.0, %v827
      %v829 = vrcp.pop %v768
      %v830 = vmul.f32 1.0, %v829
      %v831 = vrcp.pop %v769
      %v832 = vmul.f32 1.0, %v831
      %v833 = vrcp.pop %v770
      %v834 = vmul.f32 1.0, %v833
      %835 = vst [vmem:[%s175] sm:$0xff] %v772
      %836 = vst [vmem:[%s175 + $0x8] sm:$0xff] %v774
      %837 = vst [vmem:[%s175 + $0x10] sm:$0xff] %v776
      %838 = vst [vmem:[%s175 + $0x18] sm:$0xff] %v778
      %839 = vst [vmem:[%s175 + $0x20] sm:$0xff] %v780
      %840 = vst [vmem:[%s175 + $0x28] sm:$0xff] %v782
      %841 = vst [vmem:[%s175 + $0x30] sm:$0xff] %v784
      %842 = vst [vmem:[%s175 + $0x38] sm:$0xff] %v786
      %843 = vst [vmem:[%s175 + $0x40] sm:$0xff] %v788
      %844 = vst [vmem:[%s175 + $0x48] sm:$0xff] %v790
      %845 = vst [vmem:[%s175 + $0x50] sm:$0xff] %v792
      %846 = vst [vmem:[%s175 + $0x58] sm:$0xff] %v794
      %847 = vst [vmem:[%s175 + $0x60] sm:$0xff] %v796
      %848 = vst [vmem:[%s175 + $0x68] sm:$0xff] %v798
      %849 = vst [vmem:[%s175 + $0x70] sm:$0xff] %v800
      %850 = vst [vmem:[%s175 + $0x78] sm:$0xff] %v802
      %851 = vst [vmem:[%s175 + $0x80] sm:$0xff] %v804
      %852 = vst [vmem:[%s175 + $0x88] sm:$0xff] %v806
      %853 = vst [vmem:[%s175 + $0x90] sm:$0xff] %v808
      %854 = vst [vmem:[%s175 + $0x98] sm:$0xff] %v810
      %855 = vst [vmem:[%s175 + $0xa0] sm:$0xff] %v812
      %856 = vst [vmem:[%s175 + $0xa8] sm:$0xff] %v814
      %857 = vst [vmem:[%s175 + $0xb0] sm:$0xff] %v816
      %858 = vst [vmem:[%s175 + $0xb8] sm:$0xff] %v818
      %859 = vst [vmem:[%s175 + $0xc0] sm:$0xff] %v820
      %860 = vst [vmem:[%s175 + $0xc8] sm:$0xff] %v822
      %861 = vst [vmem:[%s175 + $0xd0] sm:$0xff] %v824
      %862 = vst [vmem:[%s175 + $0xd8] sm:$0xff] %v826
      %863 = vst [vmem:[%s175 + $0xe0] sm:$0xff] %v828
      %864 = vst [vmem:[%s175 + $0xe8] sm:$0xff] %v830
      %865 = vst [vmem:[%s175 + $0xf0] sm:$0xff] %v832
      %866 = vst [vmem:[%s175 + $0xf8] sm:$0xff] %v834
      %s867 = smul.u32 32, %s14
      %p868 = scmp.lt.s32.totalorder %s867, 63
      %s869 = scalar_select %p868, %s867, 63
      %s870 = smul.addr %s869, 8
      %s871 = scalar_lea.vmem %s3, %s870
      // Predicated region
      $region33: #{_forward_impl.5} parent=31 // pred_check
        %p872 = pneg %p100
      $region34: #{_forward_impl.5} parent=31 // pred_check_branch
        %874 = sbr.rel (%p872) target = $region36
      $region35: #{_forward_impl.5} parent=31 // pred_region
        %s875 = smul.u32 32, %s14
      $region36: #{_forward_impl.5} parent=31 // pred_fallthru
        _
    $region32: #{_forward_impl.5} parent=5 // pred_fallthru
      _
    %p876 = scmp.le.s32.totalorder 2, %s9
    // Predicated region
    $region37: #{_forward_impl.5} parent=5 // pred_check
      %p877 = pneg %p876
    $region38: #{_forward_impl.5} parent=5 // pred_check_branch
      %879 = sbr.rel (%p877) target = $region40
    $region39: #{_forward_impl.5} parent=5 // pred_region
      %s880 = ssub.s32 %s9, 2
      // Predicated region
      $region41: #{_forward_impl.5} parent=39 // pred_check
        %p881 = pneg %p106
      $region42: #{_forward_impl.5} parent=39 // pred_check_branch
        %883 = sbr.rel (%p881) target = $region44
      $region43: #{_forward_impl.5} parent=39 // pred_region
        %s884 = smul.u32 32, %s15
        %p885 = scmp.lt.s32.totalorder %s884, 63
        %s886 = scalar_select %p885, %s884, 63
        %s887 = smul.addr %s886, 8
        %s888 = scalar_lea.vmem %s3, %s887
      $region44: #{_forward_impl.5} parent=39 // pred_fallthru
        _
    $region40: #{_forward_impl.5} parent=5 // pred_fallthru
      _
  $region6: #{_forward_impl.5} parent=0 // loop_footer
    %s13 = sadd.s32 1, %s9
  $region7: #{_forward_impl.5} parent=0 // loop_footer_branch
    %8 = sbr.rel target = $region3
  $region8: #{_forward_impl.5} parent=0 // loop_exit
    _

// kernel: _forward_impl.6
$region0: #{_forward_impl.6}
  #allocation0 [shape = 'u32[]', space=smem, size = 0x4, offset = 0x4, fixed_abs, tag = 'smem constant byte address 0x4 - core index']
  #allocation1 [shape = 'u32[144,128]{1,0:T(1,128)}', space=vmem, size = 0x12000, scoped, tag = 'internal scratch']
  %s0 = inlined_call_operand.vmem [shape: bf16[1024,48], index: 0, kind: input, shape index: {}]
  %s1 = inlined_call_operand.vmem [shape: bf16[48,128], index: 1, kind: input, shape index: {}]
  %s2 = inlined_call_operand.vmem [shape: f32[1,128], index: 2, kind: input, shape index: {}]
  %s3 = inlined_call_operand.vmem [shape: bf16[1024,128], index: 3, kind: output, shape index: {}]
  %s4 = sld [smem:[#allocation0]]
  $region45: #{_forward_impl.6} parent=0
    _
  %s6 = ssub.s32 1, %s4
  %s7 = scalar_select 0, %s6, %s4
  loop: start=0, step=1, limit=4
  $region2: #{_forward_impl.6} parent=0 // loop_pre_header
    _
  $region3: #{_forward_impl.6} parent=0 // loop_header
    %s9 = sphi 0, %s13
    %p10 = scmp.ge.s32.totalorder %s9, 4
    %s19 = sphi 0, %s21
    %s22 = sphi 0, %s19
    %s23 = sphi 0, %s22
    %s39 = sphi 0, %s23
    %s43 = sphi 0, %s43
    %s45 = sphi 0, %s43
    %s46 = sphi 0, %s45
    %s60 = sphi 0, %s46
    %s64 = sphi 0, %s64
    %s66 = sphi 0, %s64
    %s67 = sphi 0, %s66
    %s81 = sphi 0, %s67
    %s87 = sphi 0, %s89
    %s90 = sphi 0, %s87
    %s91 = sphi 0, %s90
    %s107 = sphi 0, %s91
  $region4: #{_forward_impl.6} parent=0 // loop_header_branch
    %12 = sbr.rel (%p10) target = $region8
  $region5: #{_forward_impl.6} parent=0 // loop_body
    %s14 = ssub.s32 %s9, 1
    %s15 = ssub.s32 %s9, 2
    %s16 = sadd.s32 %s9, 1
    %s17 = ssub.s32 %s9, %s16
    %p18 = scmp.eq.s32.totalorder %s17, 0
    %s20 = sadd.s32 %s19, 1
    %s21 = scalar_select %p18, %s19, %s20
    %p24 = pneg %p18
    %p25 = scmp.eq.s32.totalorder %s9, 1
    %p26 = por %p24, %p25
    %p27 = scmp.ne.s32.totalorder %s19, %s22
    %p28 = scmp.eq.s32.totalorder %s9, 0
    %p29 = por %p27, %p28
    %p30 = scmp.ne.s32.totalorder %s19, %s22
    %p31 = scmp.eq.s32.totalorder %s14, 1
    %p32 = por %p30, %p31
    %p33 = scmp.ne.s32.totalorder %s22, %s23
    %p34 = scmp.eq.s32.totalorder %s14, 0
    %p35 = por %p33, %p34
    %p36 = scmp.ne.s32.totalorder %s22, %s23
    %p37 = scmp.eq.s32.totalorder %s15, 1
    %p38 = por %p36, %p37
    %p40 = scmp.ne.s32.totalorder %s23, %s39
    %p41 = scmp.eq.s32.totalorder %s15, 0
    %p42 = por %p40, %p41
    %s44 = sadd.s32 %s43, 1
    %p47 = scmp.eq.s32.totalorder %s9, 1
    %p48 = scmp.ne.s32.totalorder %s43, %s45
    %p49 = scmp.eq.s32.totalorder %s9, 0
    %p50 = por %p48, %p49
    %p51 = scmp.ne.s32.totalorder %s43, %s45
    %p52 = scmp.eq.s32.totalorder %s14, 1
    %p53 = por %p51, %p52
    %p54 = scmp.ne.s32.totalorder %s45, %s46
    %p55 = scmp.eq.s32.totalorder %s14, 0
    %p56 = por %p54, %p55
    %p57 = scmp.ne.s32.totalorder %s45, %s46
    %p58 = scmp.eq.s32.totalorder %s15, 1
    %p59 = por %p57, %p58
    %p61 = scmp.ne.s32.totalorder %s46, %s60
    %p62 = scmp.eq.s32.totalorder %s15, 0
    %p63 = por %p61, %p62
    %s65 = sadd.s32 %s64, 1
    %p68 = scmp.eq.s32.totalorder %s9, 1
    %p69 = scmp.ne.s32.totalorder %s64, %s66
    %p70 = scmp.eq.s32.totalorder %s9, 0
    %p71 = por %p69, %p70
    %p72 = scmp.ne.s32.totalorder %s64, %s66
    %p73 = scmp.eq.s32.totalorder %s14, 1
    %p74 = por %p72, %p73
    %p75 = scmp.ne.s32.totalorder %s66, %s67
    %p76 = scmp.eq.s32.totalorder %s14, 0
    %p77 = por %p75, %p76
    %p78 = scmp.ne.s32.totalorder %s66, %s67
    %p79 = scmp.eq.s32.totalorder %s15, 1
    %p80 = por %p78, %p79
    %p82 = scmp.ne.s32.totalorder %s67, %s81
    %p83 = scmp.eq.s32.totalorder %s15, 0
    %p84 = por %p82, %p83
    %s85 = ssub.s32 %s9, %s16
    %p86 = scmp.eq.s32.totalorder %s85, 0
    %s88 = sadd.s32 %s87, 1
    %s89 = scalar_select %p86, %s87, %s88
    %p92 = pneg %p86
    %p93 = scmp.eq.s32.totalorder %s9, 1
    %p94 = por %p92, %p93
    %p95 = scmp.ne.s32.totalorder %s87, %s90
    %p96 = scmp.eq.s32.totalorder %s9, 0
    %p97 = por %p95, %p96
    %p98 = scmp.ne.s32.totalorder %s87, %s90
    %p99 = scmp.eq.s32.totalorder %s14, 1
    %p100 = por %p98, %p99
    %p101 = scmp.ne.s32.totalorder %s90, %s91
    %p102 = scmp.eq.s32.totalorder %s14, 0
    %p103 = por %p101, %p102
    %p104 = scmp.ne.s32.totalorder %s90, %s91
    %p105 = scmp.eq.s32.totalorder %s15, 1
    %p106 = por %p104, %p105
    %p108 = scmp.ne.s32.totalorder %s91, %s107
    %p109 = scmp.eq.s32.totalorder %s15, 0
    %p110 = por %p108, %p109
    %p111 = scmp.le.s32.totalorder 1, %s9
    %p112 = scmp.lt.s32.totalorder %s9, 3
    %p113 = pnand %p111, %p112
    %p114 = pneg %p113
    // Predicated region
    $region9: #{_forward_impl.6} parent=5 // pred_check
      _
    $region10: #{_forward_impl.6} parent=5 // pred_check_branch
      %116 = sbr.rel (%p113) target = $region12
    $region11: #{_forward_impl.6} parent=5 // pred_region
      %s117 = ssub.s32 %s9, 1
      // Predicated region
      $region13: #{_forward_impl.6} parent=11 // pred_check
        %p118 = pneg %p56
      $region14: #{_forward_impl.6} parent=11 // pred_check_branch
        %120 = sbr.rel (%p118) target = $region16
      $region15: #{_forward_impl.6} parent=11 // pred_region
        _
      $region16: #{_forward_impl.6} parent=11 // pred_fallthru
        _
      // Predicated region
      $region17: #{_forward_impl.6} parent=11 // pred_check
        %p121 = pneg %p77
      $region18: #{_forward_impl.6} parent=11 // pred_check_branch
        %123 = sbr.rel (%p121) target = $region20
      $region19: #{_forward_impl.6} parent=11 // pred_region
        _
      $region20: #{_forward_impl.6} parent=11 // pred_fallthru
        _
    $region12: #{_forward_impl.6} parent=5 // pred_fallthru
      _
    %p124 = scmp.lt.s32.totalorder %s9, 2
    // Predicated region
    $region21: #{_forward_impl.6} parent=5 // pred_check
      %p125 = pneg %p124
    $region22: #{_forward_impl.6} parent=5 // pred_check_branch
      %127 = sbr.rel (%p125) target = $region24
    $region23: #{_forward_impl.6} parent=5 // pred_region
      // Predicated region
      $region25: #{_forward_impl.6} parent=23 // pred_check
        %p128 = pneg %p29
      $region26: #{_forward_impl.6} parent=23 // pred_check_branch
        %130 = sbr.rel (%p128) target = $region28
      $region27: #{_forward_impl.6} parent=23 // pred_region
        %s131 = smul.u32 64, %s9
        %p132 = scmp.lt.s32.totalorder %s131, 127
        %s133 = scalar_select %p132, %s131, 127
        %s134 = smul.addr %s133, 4
        %s135 = scalar_lea.vmem %s0, %s134
        %s136 = smul.u32 64, %s9
      $region28: #{_forward_impl.6} parent=23 // pred_fallthru
        _
    $region24: #{_forward_impl.6} parent=5 // pred_fallthru
      _
    %p137 = scmp.le.s32.totalorder 1, %s9
    %p138 = scmp.lt.s32.totalorder %s9, 3
    %p139 = pnand %p137, %p138
    %p140 = pneg %p139
    // Predicated region
    $region29: #{_forward_impl.6} parent=5 // pred_check
      _
    $region30: #{_forward_impl.6} parent=5 // pred_check_branch
      %142 = sbr.rel (%p139) target = $region32
    $region31: #{_forward_impl.6} parent=5 // pred_region
      %s143 = ssub.s32 %s9, 1
      %s144 = smul.u32 64, %s14
      %p145 = scmp.lt.s32.totalorder %s144, 127
      %s146 = scalar_select %p145, %s144, 127
      %s147 = smul.addr %s146, 4
      %s148 = scalar_lea.vmem %s0, %s147
      %p149 = pneg %p35
      %p150 = pneg %p32
      %p151 = pneg %p56
      %p152 = pneg %p53
      %p153 = pneg %p77
      %p154 = pneg %p74
      %p155 = pneg %p103
      %p156 = pneg %p100
      %s157 = smul.u32 64, %s14
      %p158 = scmp.lt.s32.totalorder %s157, 127
      %s159 = scalar_select %p158, %s157, 127
      %s160 = smul.addr %s159, 4
      %s161 = scalar_lea.vmem %s3, %s160
      %s162 = smul.u32 64, %s14
      %p163 = scmp.lt.s32.totalorder %s162, 127
      %s164 = scalar_select %p163, %s162, 127
      %s165 = smul.addr %s164, 4
      %s166 = scalar_lea.vmem %s0, %s165
      %s167 = smul.u32 64, %s14
      %s168 = smul.u32 64, %s14
      %p169 = scmp.lt.s32.totalorder %s168, 127
      %s170 = scalar_select %p169, %s168, 127
      %s171 = smul.addr %s170, 4
      %s172 = scalar_lea.vmem %s3, %s171
      %s173 = smul.u32 64, %s14
      %v175 = vld [vmem:[%s166] sm:$0xf]
      %v176 = vld [vmem:[%s166 + $0x4] sm:$0xf]
      %v177 = vld [vmem:[%s166 + $0x8] sm:$0xf]
      %v178 = vld [vmem:[%s166 + $0xc] sm:$0xf]
      %v179 = vld [vmem:[%s166 + $0x10] sm:$0xf]
      %v180 = vld [vmem:[%s166 + $0x14] sm:$0xf]
      %v181 = vld [vmem:[%s166 + $0x18] sm:$0xf]
      %v182 = vld [vmem:[%s166 + $0x1c] sm:$0xf]
      %v183 = vld [vmem:[%s166 + $0x20] sm:$0xf]
      %v184 = vld [vmem:[%s166 + $0x24] sm:$0xf]
      %v185 = vld [vmem:[%s166 + $0x28] sm:$0xf]
      %v186 = vld [vmem:[%s166 + $0x2c] sm:$0xf]
      %v187 = vld [vmem:[%s166 + $0x30] sm:$0xf]
      %v188 = vld [vmem:[%s166 + $0x34] sm:$0xf]
      %v189 = vld [vmem:[%s166 + $0x38] sm:$0xf]
      %v190 = vld [vmem:[%s166 + $0x3c] sm:$0xf]
      %v191 = vld [vmem:[%s166 + $0x40] sm:$0xf]
      %v192 = vld [vmem:[%s166 + $0x44] sm:$0xf]
      %v193 = vld [vmem:[%s166 + $0x48] sm:$0xf]
      %v194 = vld [vmem:[%s166 + $0x4c] sm:$0xf]
      %v195 = vld [vmem:[%s166 + $0x50] sm:$0xf]
      %v196 = vld [vmem:[%s166 + $0x54] sm:$0xf]
      %v197 = vld [vmem:[%s166 + $0x58] sm:$0xf]
      %v198 = vld [vmem:[%s166 + $0x5c] sm:$0xf]
      %v199 = vld [vmem:[%s166 + $0x60] sm:$0xf]
      %v200 = vld [vmem:[%s166 + $0x64] sm:$0xf]
      %v201 = vld [vmem:[%s166 + $0x68] sm:$0xf]
      %v202 = vld [vmem:[%s166 + $0x6c] sm:$0xf]
      %v203 = vld [vmem:[%s166 + $0x70] sm:$0xf]
      %v204 = vld [vmem:[%s166 + $0x74] sm:$0xf]
      %v205 = vld [vmem:[%s166 + $0x78] sm:$0xf]
      %v206 = vld [vmem:[%s166 + $0x7c] sm:$0xf]
      %v207 = vld [vmem:[%s166 + $0x80] sm:$0xf]
      %v208 = vld [vmem:[%s166 + $0x84] sm:$0xf]
      %v209 = vld [vmem:[%s166 + $0x88] sm:$0xf]
      %v210 = vld [vmem:[%s166 + $0x8c] sm:$0xf]
      %v211 = vld [vmem:[%s166 + $0x90] sm:$0xf]
      %v212 = vld [vmem:[%s166 + $0x94] sm:$0xf]
      %v213 = vld [vmem:[%s166 + $0x98] sm:$0xf]
      %v214 = vld [vmem:[%s166 + $0x9c] sm:$0xf]
      %v215 = vld [vmem:[%s166 + $0xa0] sm:$0xf]
      %v216 = vld [vmem:[%s166 + $0xa4] sm:$0xf]
      %v217 = vld [vmem:[%s166 + $0xa8] sm:$0xf]
      %v218 = vld [vmem:[%s166 + $0xac] sm:$0xf]
      %v219 = vld [vmem:[%s166 + $0xb0] sm:$0xf]
      %v220 = vld [vmem:[%s166 + $0xb4] sm:$0xf]
      %v221 = vld [vmem:[%s166 + $0xb8] sm:$0xf]
      %v222 = vld [vmem:[%s166 + $0xbc] sm:$0xf]
      %v223 = vld [vmem:[%s166 + $0xc0] sm:$0xf]
      %v224 = vld [vmem:[%s166 + $0xc4] sm:$0xf]
      %v225 = vld [vmem:[%s166 + $0xc8] sm:$0xf]
      %v226 = vld [vmem:[%s166 + $0xcc] sm:$0xf]
      %v227 = vld [vmem:[%s166 + $0xd0] sm:$0xf]
      %v228 = vld [vmem:[%s166 + $0xd4] sm:$0xf]
      %v229 = vld [vmem:[%s166 + $0xd8] sm:$0xf]
      %v230 = vld [vmem:[%s166 + $0xdc] sm:$0xf]
      %v231 = vld [vmem:[%s166 + $0xe0] sm:$0xf]
      %v232 = vld [vmem:[%s166 + $0xe4] sm:$0xf]
      %v233 = vld [vmem:[%s166 + $0xe8] sm:$0xf]
      %v234 = vld [vmem:[%s166 + $0xec] sm:$0xf]
      %v235 = vld [vmem:[%s166 + $0xf0] sm:$0xf]
      %v236 = vld [vmem:[%s166 + $0xf4] sm:$0xf]
      %v237 = vld [vmem:[%s166 + $0xf8] sm:$0xf]
      %v238 = vld [vmem:[%s166 + $0xfc] sm:$0xf]
      %v239 = vld [vmem:[%s1] sm:$0xf]
      %v240 = vld [vmem:[%s1 + $0x4] sm:$0xf]
      %v241 = vld [vmem:[%s1 + $0x8] sm:$0xf]
      %v242 = vld [vmem:[%s1 + $0xc] sm:$0xf]
      %v243 = vld [vmem:[%s1 + $0x10] sm:$0xf]
      %v244 = vld [vmem:[%s1 + $0x14] sm:$0xf]
      %v245 = vld [vmem:[%s2] sm:$0x1]
      %v247 = vlaneseq
      %v248 = vshrl.u32 %v247, 7
      %v249 = vsub.s32 0, %v248
      %v250 = vrot.slane %v245, %v249
      %v316 = vunpack.c.l.b16 %v175
      %v317 = vunpack.c.l.b16 %v176
      %v318 = vunpack.c.l.b16 %v177
      %v319 = vunpack.c.l.b16 %v178
      %v320 = vunpack.c.l.b16 %v179
      %v321 = vunpack.c.l.b16 %v180
      %v322 = vunpack.c.l.b16 %v181
      %v323 = vunpack.c.l.b16 %v182
      %v324 = vunpack.c.l.b16 %v183
      %v325 = vunpack.c.l.b16 %v184
      %v326 = vunpack.c.l.b16 %v185
      %v327 = vunpack.c.l.b16 %v186
      %v328 = vunpack.c.l.b16 %v187
      %v329 = vunpack.c.l.b16 %v188
      %v330 = vunpack.c.l.b16 %v189
      %v331 = vunpack.c.l.b16 %v190
      %v332 = vunpack.c.l.b16 %v191
      %v333 = vunpack.c.l.b16 %v192
      %v334 = vunpack.c.l.b16 %v193
      %v335 = vunpack.c.l.b16 %v194
      %v336 = vunpack.c.l.b16 %v195
      %v337 = vunpack.c.l.b16 %v196
      %v338 = vunpack.c.l.b16 %v197
      %v339 = vunpack.c.l.b16 %v198
      %v340 = vunpack.c.l.b16 %v199
      %v341 = vunpack.c.l.b16 %v200
      %v342 = vunpack.c.l.b16 %v201
      %v343 = vunpack.c.l.b16 %v202
      %v344 = vunpack.c.l.b16 %v203
      %v345 = vunpack.c.l.b16 %v204
      %v346 = vunpack.c.l.b16 %v205
      %v347 = vunpack.c.l.b16 %v206
      %v348 = vunpack.c.l.b16 %v207
      %v349 = vunpack.c.l.b16 %v208
      %v350 = vunpack.c.l.b16 %v209
      %v351 = vunpack.c.l.b16 %v210
      %v352 = vunpack.c.l.b16 %v211
      %v353 = vunpack.c.l.b16 %v212
      %v354 = vunpack.c.l.b16 %v213
      %v355 = vunpack.c.l.b16 %v214
      %v356 = vunpack.c.l.b16 %v215
      %v357 = vunpack.c.l.b16 %v216
      %v358 = vunpack.c.l.b16 %v217
      %v359 = vunpack.c.l.b16 %v218
      %v360 = vunpack.c.l.b16 %v219
      %v361 = vunpack.c.l.b16 %v220
      %v362 = vunpack.c.l.b16 %v221
      %v363 = vunpack.c.l.b16 %v222
      %v364 = vunpack.c.l.b16 %v223
      %v365 = vunpack.c.l.b16 %v224
      %v366 = vunpack.c.l.b16 %v225
      %v367 = vunpack.c.l.b16 %v226
      %v368 = vunpack.c.l.b16 %v227
      %v369 = vunpack.c.l.b16 %v228
      %v370 = vunpack.c.l.b16 %v229
      %v371 = vunpack.c.l.b16 %v230
      %v372 = vunpack.c.l.b16 %v231
      %v373 = vunpack.c.l.b16 %v232
      %v374 = vunpack.c.l.b16 %v233
      %v375 = vunpack.c.l.b16 %v234
      %v376 = vunpack.c.l.b16 %v235
      %v377 = vunpack.c.l.b16 %v236
      %v378 = vunpack.c.l.b16 %v237
      %v379 = vunpack.c.l.b16 %v238
      %v380 = vpack.c.b16 %v317, %v316
      %v381 = vpack.c.b16 %v319, %v318
      %v382 = vpack.c.b16 %v321, %v320
      %v383 = vpack.c.b16 %v323, %v322
      %v384 = vpack.c.b16 %v325, %v324
      %v385 = vpack.c.b16 %v327, %v326
      %v386 = vpack.c.b16 %v329, %v328
      %v387 = vpack.c.b16 %v331, %v330
      %v388 = vpack.c.b16 %v333, %v332
      %v389 = vpack.c.b16 %v335, %v334
      %v390 = vpack.c.b16 %v337, %v336
      %v391 = vpack.c.b16 %v339, %v338
      %v392 = vpack.c.b16 %v341, %v340
      %v393 = vpack.c.b16 %v343, %v342
      %v394 = vpack.c.b16 %v345, %v344
      %v395 = vpack.c.b16 %v347, %v346
      %v396 = vpack.c.b16 %v349, %v348
      %v397 = vpack.c.b16 %v351, %v350
      %v398 = vpack.c.b16 %v353, %v352
      %v399 = vpack.c.b16 %v355, %v354
      %v400 = vpack.c.b16 %v357, %v356
      %v401 = vpack.c.b16 %v359, %v358
      %v402 = vpack.c.b16 %v361, %v360
      %v403 = vpack.c.b16 %v363, %v362
      %v404 = vpack.c.b16 %v365, %v364
      %v405 = vpack.c.b16 %v367, %v366
      %v406 = vpack.c.b16 %v369, %v368
      %v407 = vpack.c.b16 %v371, %v370
      %v408 = vpack.c.b16 %v373, %v372
      %v409 = vpack.c.b16 %v375, %v374
      %v410 = vpack.c.b16 %v377, %v376
      %v411 = vpack.c.b16 %v379, %v378
      %v418 = vunpack.c.l.b16 %v239
      %v419 = vunpack.c.l.b16 %v240
      %v420 = vunpack.c.l.b16 %v241
      %v421 = vunpack.c.l.b16 %v242
      %v422 = vunpack.c.l.b16 %v243
      %v423 = vunpack.c.l.b16 %v244
      %v424 = vpack.c.b16 %v419, %v418
      %v425 = vpack.c.b16 %v421, %v420
      %v426 = vpack.c.b16 %v423, %v422
      %vm430 = vcmask 392192
      %v432 = vsel %vm430, %v380, 0
      %v435 = vsel %vm430, %v381, 0
      %v438 = vsel %vm430, %v382, 0
      %v441 = vsel %vm430, %v383, 0
      %v444 = vsel %vm430, %v384, 0
      %v447 = vsel %vm430, %v385, 0
      %v450 = vsel %vm430, %v386, 0
      %v453 = vsel %vm430, %v387, 0
      %v456 = vsel %vm430, %v388, 0
      %v459 = vsel %vm430, %v389, 0
      %v462 = vsel %vm430, %v390, 0
      %v465 = vsel %vm430, %v391, 0
      %v468 = vsel %vm430, %v392, 0
      %v471 = vsel %vm430, %v393, 0
      %v474 = vsel %vm430, %v394, 0
      %v477 = vsel %vm430, %v395, 0
      %v480 = vsel %vm430, %v396, 0
      %v483 = vsel %vm430, %v397, 0
      %v486 = vsel %vm430, %v398, 0
      %v489 = vsel %vm430, %v399, 0
      %v492 = vsel %vm430, %v400, 0
      %v495 = vsel %vm430, %v401, 0
      %v498 = vsel %vm430, %v402, 0
      %v501 = vsel %vm430, %v403, 0
      %v504 = vsel %vm430, %v404, 0
      %v507 = vsel %vm430, %v405, 0
      %v510 = vsel %vm430, %v406, 0
      %v513 = vsel %vm430, %v407, 0
      %v516 = vsel %vm430, %v408, 0
      %v519 = vsel %vm430, %v409, 0
      %v522 = vsel %vm430, %v410, 0
      %v525 = vsel %vm430, %v411, 0
      %527 = vmatprep.subr.bf16.mxu0 0
      %528 = vmatpush1.bf16.msra.mxu0 %v424
      %529 = vmatprep.subr.bf16.mxu0 0
      %530 = vmatpush1.bf16.msra.mxu0 %v425
      %531 = vmatprep.subr.bf16.mxu0 0
      %532 = vmatpush1.bf16.msra.mxu0 %v426
      %533 = vmatprep.subr.bf16.mxu0 0
      %534 = vmatpush1.bf16.msra.mxu0 0
      %535 = vmatprep.subr.bf16.mxu0 0
      %536 = vmatpush1.bf16.msra.mxu0 0
      %537 = vmatprep.subr.bf16.mxu0 0
      %538 = vmatpush1.bf16.msra.mxu0 0
      %539 = vmatprep.subr.bf16.mxu0 0
      %540 = vmatpush1.bf16.msra.mxu0 0
      %541 = vmatprep.subr.bf16.mxu0 0
      %542 = vmatpush1.bf16.msra.mxu0 0
      %543 = vmatprep.subr.bf16.mxu0 0
      %544 = vmatpush1.bf16.msra.mxu0 0
      %545 = vmatprep.subr.bf16.mxu0 0
      %546 = vmatpush1.bf16.msra.mxu0 0
      %547 = vmatprep.subr.bf16.mxu0 0
      %548 = vmatpush1.bf16.msra.mxu0 0
      %549 = vmatprep.subr.bf16.mxu0 0
      %550 = vmatpush1.bf16.msra.mxu0 0
      %551 = vmatprep.subr.bf16.mxu0 0
      %552 = vmatpush1.bf16.msra.mxu0 0
      %553 = vmatprep.subr.bf16.mxu0 0
      %554 = vmatpush1.bf16.msra.mxu0 0
      %555 = vmatprep.subr.bf16.mxu0 0
      %556 = vmatpush1.bf16.msra.mxu0 0
      %557 = vmatprep.subr.bf16.mxu0 0
      %558 = vmatpush1.bf16.msra.mxu0 0
      %559 = vmatprep.mubr.bf16.mxu0 0
      %560 = vmatmul.mubr.bf16.gmra.mrb[0].mxu0 %v432
      %v561 = vpop.f32.mrb[0].mxu0
      %v562 = vadd.f32 %v250, %v561
      %v563 = vpop.f32.mrb[0].mxu0
      %v564 = vpop.f32.mrb[0].mxu0
      %v565 = vadd.f32 %v250, %v564
      %v566 = vpop.f32.mrb[0].mxu0
      %567 = vmatprep.mubr.bf16.mxu0 0
      %568 = vmatmul.mubr.bf16.gmra.mrb[0].mxu0 %v435
      %v569 = vpop.f32.mrb[0].mxu0
      %v570 = vadd.f32 %v250, %v569
      %v571 = vpop.f32.mrb[0].mxu0
      %v572 = vpop.f32.mrb[0].mxu0
      %v573 = vadd.f32 %v250, %v572
      %v574 = vpop.f32.mrb[0].mxu0
      %575 = vmatprep.mubr.bf16.mxu0 0
      %576 = vmatmul.mubr.bf16.gmra.mrb[0].mxu0 %v438
      %v577 = vpop.f32.mrb[0].mxu0
      %v578 = vadd.f32 %v250, %v577
      %v579 = vpop.f32.mrb[0].mxu0
      %v580 = vpop.f32.mrb[0].mxu0
      %v581 = vadd.f32 %v250, %v580
      %v582 = vpop.f32.mrb[0].mxu0
      %583 = vmatprep.mubr.bf16.mxu0 0
      %584 = vmatmul.mubr.bf16.gmra.mrb[0].mxu0 %v441
      %v585 = vpop.f32.mrb[0].mxu0
      %v586 = vadd.f32 %v250, %v585
      %v587 = vpop.f32.mrb[0].mxu0
      %v588 = vpop.f32.mrb[0].mxu0
      %v589 = vadd.f32 %v250, %v588
      %v590 = vpop.f32.mrb[0].mxu0
      %591 = vmatprep.mubr.bf16.mxu0 0
      %592 = vmatmul.mubr.bf16.gmra.mrb[0].mxu0 %v444
      %v593 = vpop.f32.mrb[0].mxu0
      %v594 = vadd.f32 %v250, %v593
      %v595 = vpop.f32.mrb[0].mxu0
      %v596 = vpop.f32.mrb[0].mxu0
      %v597 = vadd.f32 %v250, %v596
      %v598 = vpop.f32.mrb[0].mxu0
      %599 = vmatprep.mubr.bf16.mxu0 0
      %600 = vmatmul.mubr.bf16.gmra.mrb[0].mxu0 %v447
      %v601 = vpop.f32.mrb[0].mxu0
      %v602 = vadd.f32 %v250, %v601
      %v603 = vpop.f32.mrb[0].mxu0
      %v604 = vpop.f32.mrb[0].mxu0
      %v605 = vadd.f32 %v250, %v604
      %v606 = vpop.f32.mrb[0].mxu0
      %607 = vmatprep.mubr.bf16.mxu0 0
      %608 = vmatmul.mubr.bf16.gmra.mrb[0].mxu0 %v450
      %v609 = vpop.f32.mrb[0].mxu0
      %v610 = vadd.f32 %v250, %v609
      %v611 = vpop.f32.mrb[0].mxu0
      %v612 = vpop.f32.mrb[0].mxu0
      %v613 = vadd.f32 %v250, %v612
      %v614 = vpop.f32.mrb[0].mxu0
      %615 = vmatprep.mubr.bf16.mxu0 0
      %616 = vmatmul.mubr.bf16.gmra.mrb[0].mxu0 %v453
      %v617 = vpop.f32.mrb[0].mxu0
      %v618 = vadd.f32 %v250, %v617
      %v619 = vpop.f32.mrb[0].mxu0
      %v620 = vpop.f32.mrb[0].mxu0
      %v621 = vadd.f32 %v250, %v620
      %v622 = vpop.f32.mrb[0].mxu0
      %623 = vmatprep.mubr.bf16.mxu0 0
      %624 = vmatmul.mubr.bf16.gmra.mrb[0].mxu0 %v456
      %v625 = vpop.f32.mrb[0].mxu0
      %v626 = vadd.f32 %v250, %v625
      %v627 = vpop.f32.mrb[0].mxu0
      %v628 = vpop.f32.mrb[0].mxu0
      %v629 = vadd.f32 %v250, %v628
      %v630 = vpop.f32.mrb[0].mxu0
      %631 = vmatprep.mubr.bf16.mxu0 0
      %632 = vmatmul.mubr.bf16.gmra.mrb[0].mxu0 %v459
      %v633 = vpop.f32.mrb[0].mxu0
      %v634 = vadd.f32 %v250, %v633
      %v635 = vpop.f32.mrb[0].mxu0
      %v636 = vpop.f32.mrb[0].mxu0
      %v637 = vadd.f32 %v250, %v636
      %v638 = vpop.f32.mrb[0].mxu0
      %639 = vmatprep.mubr.bf16.mxu0 0
      %640 = vmatmul.mubr.bf16.gmra.mrb[0].mxu0 %v462
      %v641 = vpop.f32.mrb[0].mxu0
      %v642 = vadd.f32 %v250, %v641
      %v643 = vpop.f32.mrb[0].mxu0
      %v644 = vpop.f32.mrb[0].mxu0
      %v645 = vadd.f32 %v250, %v644
      %v646 = vpop.f32.mrb[0].mxu0
      %647 = vmatprep.mubr.bf16.mxu0 0
      %648 = vmatmul.mubr.bf16.gmra.mrb[0].mxu0 %v465
      %v649 = vpop.f32.mrb[0].mxu0
      %v650 = vadd.f32 %v250, %v649
      %v651 = vpop.f32.mrb[0].mxu0
      %v652 = vpop.f32.mrb[0].mxu0
      %v653 = vadd.f32 %v250, %v652
      %v654 = vpop.f32.mrb[0].mxu0
      %655 = vmatprep.mubr.bf16.mxu0 0
      %656 = vmatmul.mubr.bf16.gmra.mrb[0].mxu0 %v468
      %v657 = vpop.f32.mrb[0].mxu0
      %v658 = vadd.f32 %v250, %v657
      %v659 = vpop.f32.mrb[0].mxu0
      %v660 = vpop.f32.mrb[0].mxu0
      %v661 = vadd.f32 %v250, %v660
      %v662 = vpop.f32.mrb[0].mxu0
      %663 = vmatprep.mubr.bf16.mxu0 0
      %664 = vmatmul.mubr.bf16.gmra.mrb[0].mxu0 %v471
      %v665 = vpop.f32.mrb[0].mxu0
      %v666 = vadd.f32 %v250, %v665
      %v667 = vpop.f32.mrb[0].mxu0
      %v668 = vpop.f32.mrb[0].mxu0
      %v669 = vadd.f32 %v250, %v668
      %v670 = vpop.f32.mrb[0].mxu0
      %671 = vmatprep.mubr.bf16.mxu0 0
      %672 = vmatmul.mubr.bf16.gmra.mrb[0].mxu0 %v474
      %v673 = vpop.f32.mrb[0].mxu0
      %v674 = vadd.f32 %v250, %v673
      %v675 = vpop.f32.mrb[0].mxu0
      %v676 = vpop.f32.mrb[0].mxu0
      %v677 = vadd.f32 %v250, %v676
      %v678 = vpop.f32.mrb[0].mxu0
      %679 = vmatprep.mubr.bf16.mxu0 0
      %680 = vmatmul.mubr.bf16.gmra.mrb[0].mxu0 %v477
      %v681 = vpop.f32.mrb[0].mxu0
      %v682 = vadd.f32 %v250, %v681
      %v683 = vpop.f32.mrb[0].mxu0
      %v684 = vpop.f32.mrb[0].mxu0
      %v685 = vadd.f32 %v250, %v684
      %v686 = vpop.f32.mrb[0].mxu0
      %687 = vmatprep.mubr.bf16.mxu0 0
      %688 = vmatmul.mubr.bf16.gmra.mrb[0].mxu0 %v480
      %v689 = vpop.f32.mrb[0].mxu0
      %v690 = vadd.f32 %v250, %v689
      %v691 = vpop.f32.mrb[0].mxu0
      %v692 = vpop.f32.mrb[0].mxu0
      %v693 = vadd.f32 %v250, %v692
      %v694 = vpop.f32.mrb[0].mxu0
      %695 = vmatprep.mubr.bf16.mxu0 0
      %696 = vmatmul.mubr.bf16.gmra.mrb[0].mxu0 %v483
      %v697 = vpop.f32.mrb[0].mxu0
      %v698 = vadd.f32 %v250, %v697
      %v699 = vpop.f32.mrb[0].mxu0
      %v700 = vpop.f32.mrb[0].mxu0
      %v701 = vadd.f32 %v250, %v700
      %v702 = vpop.f32.mrb[0].mxu0
      %703 = vmatprep.mubr.bf16.mxu0 0
      %704 = vmatmul.mubr.bf16.gmra.mrb[0].mxu0 %v486
      %v705 = vpop.f32.mrb[0].mxu0
      %v706 = vadd.f32 %v250, %v705
      %v707 = vpop.f32.mrb[0].mxu0
      %v708 = vpop.f32.mrb[0].mxu0
      %v709 = vadd.f32 %v250, %v708
      %v710 = vpop.f32.mrb[0].mxu0
      %711 = vmatprep.mubr.bf16.mxu0 0
      %712 = vmatmul.mubr.bf16.gmra.mrb[0].mxu0 %v489
      %v713 = vpop.f32.mrb[0].mxu0
      %v714 = vadd.f32 %v250, %v713
      %v715 = vpop.f32.mrb[0].mxu0
      %v716 = vpop.f32.mrb[0].mxu0
      %v717 = vadd.f32 %v250, %v716
      %v718 = vpop.f32.mrb[0].mxu0
      %719 = vmatprep.mubr.bf16.mxu0 0
      %720 = vmatmul.mubr.bf16.gmra.mrb[0].mxu0 %v492
      %v721 = vpop.f32.mrb[0].mxu0
      %v722 = vadd.f32 %v250, %v721
      %v723 = vpop.f32.mrb[0].mxu0
      %v724 = vpop.f32.mrb[0].mxu0
      %v725 = vadd.f32 %v250, %v724
      %v726 = vpop.f32.mrb[0].mxu0
      %727 = vmatprep.mubr.bf16.mxu0 0
      %728 = vmatmul.mubr.bf16.gmra.mrb[0].mxu0 %v495
      %v729 = vpop.f32.mrb[0].mxu0
      %v730 = vadd.f32 %v250, %v729
      %v731 = vpop.f32.mrb[0].mxu0
      %v732 = vpop.f32.mrb[0].mxu0
      %v733 = vadd.f32 %v250, %v732
      %v734 = vpop.f32.mrb[0].mxu0
      %735 = vmatprep.mubr.bf16.mxu0 0
      %736 = vmatmul.mubr.bf16.gmra.mrb[0].mxu0 %v498
      %v737 = vpop.f32.mrb[0].mxu0
      %v738 = vadd.f32 %v250, %v737
      %v739 = vpop.f32.mrb[0].mxu0
      %v740 = vpop.f32.mrb[0].mxu0
      %v741 = vadd.f32 %v250, %v740
      %v742 = vpop.f32.mrb[0].mxu0
      %743 = vmatprep.mubr.bf16.mxu0 0
      %744 = vmatmul.mubr.bf16.gmra.mrb[0].mxu0 %v501
      %v745 = vpop.f32.mrb[0].mxu0
      %v746 = vadd.f32 %v250, %v745
      %v747 = vpop.f32.mrb[0].mxu0
      %v748 = vpop.f32.mrb[0].mxu0
      %v749 = vadd.f32 %v250, %v748
      %v750 = vpop.f32.mrb[0].mxu0
      %751 = vmatprep.mubr.bf16.mxu0 0
      %752 = vmatmul.mubr.bf16.gmra.mrb[0].mxu0 %v504
      %v753 = vpop.f32.mrb[0].mxu0
      %v754 = vadd.f32 %v250, %v753
      %v755 = vpop.f32.mrb[0].mxu0
      %v756 = vpop.f32.mrb[0].mxu0
      %v757 = vadd.f32 %v250, %v756
      %v758 = vpop.f32.mrb[0].mxu0
      %759 = vmatprep.mubr.bf16.mxu0 0
      %760 = vmatmul.mubr.bf16.gmra.mrb[0].mxu0 %v507
      %v761 = vpop.f32.mrb[0].mxu0
      %v762 = vadd.f32 %v250, %v761
      %v763 = vpop.f32.mrb[0].mxu0
      %v764 = vpop.f32.mrb[0].mxu0
      %v765 = vadd.f32 %v250, %v764
      %v766 = vpop.f32.mrb[0].mxu0
      %767 = vmatprep.mubr.bf16.mxu0 0
      %768 = vmatmul.mubr.bf16.gmra.mrb[0].mxu0 %v510
      %v769 = vpop.f32.mrb[0].mxu0
      %v770 = vadd.f32 %v250, %v769
      %v771 = vpop.f32.mrb[0].mxu0
      %v772 = vpop.f32.mrb[0].mxu0
      %v773 = vadd.f32 %v250, %v772
      %v774 = vpop.f32.mrb[0].mxu0
      %775 = vmatprep.mubr.bf16.mxu0 0
      %776 = vmatmul.mubr.bf16.gmra.mrb[0].mxu0 %v513
      %v777 = vpop.f32.mrb[0].mxu0
      %v778 = vadd.f32 %v250, %v777
      %v779 = vpop.f32.mrb[0].mxu0
      %v780 = vpop.f32.mrb[0].mxu0
      %v781 = vadd.f32 %v250, %v780
      %v782 = vpop.f32.mrb[0].mxu0
      %783 = vmatprep.mubr.bf16.mxu0 0
      %784 = vmatmul.mubr.bf16.gmra.mrb[0].mxu0 %v516
      %v785 = vpop.f32.mrb[0].mxu0
      %v786 = vadd.f32 %v250, %v785
      %v787 = vpop.f32.mrb[0].mxu0
      %v788 = vpop.f32.mrb[0].mxu0
      %v789 = vadd.f32 %v250, %v788
      %v790 = vpop.f32.mrb[0].mxu0
      %791 = vmatprep.mubr.bf16.mxu0 0
      %792 = vmatmul.mubr.bf16.gmra.mrb[0].mxu0 %v519
      %v793 = vpop.f32.mrb[0].mxu0
      %v794 = vadd.f32 %v250, %v793
      %v795 = vpop.f32.mrb[0].mxu0
      %v796 = vpop.f32.mrb[0].mxu0
      %v797 = vadd.f32 %v250, %v796
      %v798 = vpop.f32.mrb[0].mxu0
      %799 = vmatprep.mubr.bf16.mxu0 0
      %800 = vmatmul.mubr.bf16.gmra.mrb[0].mxu0 %v522
      %v801 = vpop.f32.mrb[0].mxu0
      %v802 = vadd.f32 %v250, %v801
      %v803 = vpop.f32.mrb[0].mxu0
      %v804 = vpop.f32.mrb[0].mxu0
      %v805 = vadd.f32 %v250, %v804
      %v806 = vpop.f32.mrb[0].mxu0
      %807 = vmatprep.mubr.bf16.mxu0 0
      %808 = vmatmul.mubr.bf16.gmra.mrb[0].mxu0 %v525
      %v809 = vpop.f32.mrb[0].mxu0
      %v810 = vadd.f32 %v250, %v809
      %v811 = vpop.f32.mrb[0].mxu0
      %v812 = vpop.f32.mrb[0].mxu0
      %v813 = vadd.f32 %v250, %v812
      %v814 = vpop.f32.mrb[0].mxu0
      %815 = vdwg.mxu0
      %vm816 = vcmp.gt.f32.partialorder %v562, 0.0
      %vm817 = vcmp.gt.f32.partialorder %v565, 0.0
      %vm818 = vcmp.gt.f32.partialorder %v570, 0.0
      %vm819 = vcmp.gt.f32.partialorder %v573, 0.0
      %vm820 = vcmp.gt.f32.partialorder %v578, 0.0
      %vm821 = vcmp.gt.f32.partialorder %v581, 0.0
      %vm822 = vcmp.gt.f32.partialorder %v586, 0.0
      %vm823 = vcmp.gt.f32.partialorder %v589, 0.0
      %vm824 = vcmp.gt.f32.partialorder %v594, 0.0
      %vm825 = vcmp.gt.f32.partialorder %v597, 0.0
      %vm826 = vcmp.gt.f32.partialorder %v602, 0.0
      %vm827 = vcmp.gt.f32.partialorder %v605, 0.0
      %vm828 = vcmp.gt.f32.partialorder %v610, 0.0
      %vm829 = vcmp.gt.f32.partialorder %v613, 0.0
      %vm830 = vcmp.gt.f32.partialorder %v618, 0.0
      %vm831 = vcmp.gt.f32.partialorder %v621, 0.0
      %vm832 = vcmp.gt.f32.partialorder %v626, 0.0
      %vm833 = vcmp.gt.f32.partialorder %v629, 0.0
      %vm834 = vcmp.gt.f32.partialorder %v634, 0.0
      %vm835 = vcmp.gt.f32.partialorder %v637, 0.0
      %vm836 = vcmp.gt.f32.partialorder %v642, 0.0
      %vm837 = vcmp.gt.f32.partialorder %v645, 0.0
      %vm838 = vcmp.gt.f32.partialorder %v650, 0.0
      %vm839 = vcmp.gt.f32.partialorder %v653, 0.0
      %vm840 = vcmp.gt.f32.partialorder %v658, 0.0
      %vm841 = vcmp.gt.f32.partialorder %v661, 0.0
      %vm842 = vcmp.gt.f32.partialorder %v666, 0.0
      %vm843 = vcmp.gt.f32.partialorder %v669, 0.0
      %vm844 = vcmp.gt.f32.partialorder %v674, 0.0
      %vm845 = vcmp.gt.f32.partialorder %v677, 0.0
      %vm846 = vcmp.gt.f32.partialorder %v682, 0.0
      %vm847 = vcmp.gt.f32.partialorder %v685, 0.0
      %vm848 = vcmp.gt.f32.partialorder %v690, 0.0
      %vm849 = vcmp.gt.f32.partialorder %v693, 0.0
      %vm850 = vcmp.gt.f32.partialorder %v698, 0.0
      %vm851 = vcmp.gt.f32.partialorder %v701, 0.0
      %vm852 = vcmp.gt.f32.partialorder %v706, 0.0
      %vm853 = vcmp.gt.f32.partialorder %v709, 0.0
      %vm854 = vcmp.gt.f32.partialorder %v714, 0.0
      %vm855 = vcmp.gt.f32.partialorder %v717, 0.0
      %vm856 = vcmp.gt.f32.partialorder %v722, 0.0
      %vm857 = vcmp.gt.f32.partialorder %v725, 0.0
      %vm858 = vcmp.gt.f32.partialorder %v730, 0.0
      %vm859 = vcmp.gt.f32.partialorder %v733, 0.0
      %vm860 = vcmp.gt.f32.partialorder %v738, 0.0
      %vm861 = vcmp.gt.f32.partialorder %v741, 0.0
      %vm862 = vcmp.gt.f32.partialorder %v746, 0.0
      %vm863 = vcmp.gt.f32.partialorder %v749, 0.0
      %vm864 = vcmp.gt.f32.partialorder %v754, 0.0
      %vm865 = vcmp.gt.f32.partialorder %v757, 0.0
      %vm866 = vcmp.gt.f32.partialorder %v762, 0.0
      %vm867 = vcmp.gt.f32.partialorder %v765, 0.0
      %vm868 = vcmp.gt.f32.partialorder %v770, 0.0
      %vm869 = vcmp.gt.f32.partialorder %v773, 0.0
      %vm870 = vcmp.gt.f32.partialorder %v778, 0.0
      %vm871 = vcmp.gt.f32.partialorder %v781, 0.0
      %vm872 = vcmp.gt.f32.partialorder %v786, 0.0
      %vm873 = vcmp.gt.f32.partialorder %v789, 0.0
      %vm874 = vcmp.gt.f32.partialorder %v794, 0.0
      %vm875 = vcmp.gt.f32.partialorder %v797, 0.0
      %vm876 = vcmp.gt.f32.partialorder %v802, 0.0
      %vm877 = vcmp.gt.f32.partialorder %v805, 0.0
      %vm878 = vcmp.gt.f32.partialorder %v810, 0.0
      %vm879 = vcmp.gt.f32.partialorder %v813, 0.0
      %v880 = vmul.f32 %v562, 0.2
      %v881 = vmul.f32 %v565, 0.2
      %v882 = vmul.f32 %v570, 0.2
      %v883 = vmul.f32 %v573, 0.2
      %v884 = vmul.f32 %v578, 0.2
      %v885 = vmul.f32 %v581, 0.2
      %v886 = vmul.f32 %v586, 0.2
      %v887 = vmul.f32 %v589, 0.2
      %v888 = vmul.f32 %v594, 0.2
      %v889 = vmul.f32 %v597, 0.2
      %v890 = vmul.f32 %v602, 0.2
      %v891 = vmul.f32 %v605, 0.2
      %v892 = vmul.f32 %v610, 0.2
      %v893 = vmul.f32 %v613, 0.2
      %v894 = vmul.f32 %v618, 0.2
      %v895 = vmul.f32 %v621, 0.2
      %v896 = vmul.f32 %v626, 0.2
      %v897 = vmul.f32 %v629, 0.2
      %v898 = vmul.f32 %v634, 0.2
      %v899 = vmul.f32 %v637, 0.2
      %v900 = vmul.f32 %v642, 0.2
      %v901 = vmul.f32 %v645, 0.2
      %v902 = vmul.f32 %v650, 0.2
      %v903 = vmul.f32 %v653, 0.2
      %v904 = vmul.f32 %v658, 0.2
      %v905 = vmul.f32 %v661, 0.2
      %v906 = vmul.f32 %v666, 0.2
      %v907 = vmul.f32 %v669, 0.2
      %v908 = vmul.f32 %v674, 0.2
      %v909 = vmul.f32 %v677, 0.2
      %v910 = vmul.f32 %v682, 0.2
      %v911 = vmul.f32 %v685, 0.2
      %v912 = vmul.f32 %v690, 0.2
      %v913 = vmul.f32 %v693, 0.2
      %v914 = vmul.f32 %v698, 0.2
      %v915 = vmul.f32 %v701, 0.2
      %v916 = vmul.f32 %v706, 0.2
      %v917 = vmul.f32 %v709, 0.2
      %v918 = vmul.f32 %v714, 0.2
      %v919 = vmul.f32 %v717, 0.2
      %v920 = vmul.f32 %v722, 0.2
      %v921 = vmul.f32 %v725, 0.2
      %v922 = vmul.f32 %v730, 0.2
      %v923 = vmul.f32 %v733, 0.2
      %v924 = vmul.f32 %v738, 0.2
      %v925 = vmul.f32 %v741, 0.2
      %v926 = vmul.f32 %v746, 0.2
      %v927 = vmul.f32 %v749, 0.2
      %v928 = vmul.f32 %v754, 0.2
      %v929 = vmul.f32 %v757, 0.2
      %v930 = vmul.f32 %v762, 0.2
      %v931 = vmul.f32 %v765, 0.2
      %v932 = vmul.f32 %v770, 0.2
      %v933 = vmul.f32 %v773, 0.2
      %v934 = vmul.f32 %v778, 0.2
      %v935 = vmul.f32 %v781, 0.2
      %v936 = vmul.f32 %v786, 0.2
      %v937 = vmul.f32 %v789, 0.2
      %v938 = vmul.f32 %v794, 0.2
      %v939 = vmul.f32 %v797, 0.2
      %v940 = vmul.f32 %v802, 0.2
      %v941 = vmul.f32 %v805, 0.2
      %v942 = vmul.f32 %v810, 0.2
      %v943 = vmul.f32 %v813, 0.2
      %v944 = vsel %vm816, %v562, %v880
      %v945 = vsel %vm817, %v565, %v881
      %v946 = vsel %vm818, %v570, %v882
      %v947 = vsel %vm819, %v573, %v883
      %v948 = vsel %vm820, %v578, %v884
      %v949 = vsel %vm821, %v581, %v885
      %v950 = vsel %vm822, %v586, %v886
      %v951 = vsel %vm823, %v589, %v887
      %v952 = vsel %vm824, %v594, %v888
      %v953 = vsel %vm825, %v597, %v889
      %v954 = vsel %vm826, %v602, %v890
      %v955 = vsel %vm827, %v605, %v891
      %v956 = vsel %vm828, %v610, %v892
      %v957 = vsel %vm829, %v613, %v893
      %v958 = vsel %vm830, %v618, %v894
      %v959 = vsel %vm831, %v621, %v895
      %v960 = vsel %vm832, %v626, %v896
      %v961 = vsel %vm833, %v629, %v897
      %v962 = vsel %vm834, %v634, %v898
      %v963 = vsel %vm835, %v637, %v899
      %v964 = vsel %vm836, %v642, %v900
      %v965 = vsel %vm837, %v645, %v901
      %v966 = vsel %vm838, %v650, %v902
      %v967 = vsel %vm839, %v653, %v903
      %v968 = vsel %vm840, %v658, %v904
      %v969 = vsel %vm841, %v661, %v905
      %v970 = vsel %vm842, %v666, %v906
      %v971 = vsel %vm843, %v669, %v907
      %v972 = vsel %vm844, %v674, %v908
      %v973 = vsel %vm845, %v677, %v909
      %v974 = vsel %vm846, %v682, %v910
      %v975 = vsel %vm847, %v685, %v911
      %v976 = vsel %vm848, %v690, %v912
      %v977 = vsel %vm849, %v693, %v913
      %v978 = vsel %vm850, %v698, %v914
      %v979 = vsel %vm851, %v701, %v915
      %v980 = vsel %vm852, %v706, %v916
      %v981 = vsel %vm853, %v709, %v917
      %v982 = vsel %vm854, %v714, %v918
      %v983 = vsel %vm855, %v717, %v919
      %v984 = vsel %vm856, %v722, %v920
      %v985 = vsel %vm857, %v725, %v921
      %v986 = vsel %vm858, %v730, %v922
      %v987 = vsel %vm859, %v733, %v923
      %v988 = vsel %vm860, %v738, %v924
      %v989 = vsel %vm861, %v741, %v925
      %v990 = vsel %vm862, %v746, %v926
      %v991 = vsel %vm863, %v749, %v927
      %v992 = vsel %vm864, %v754, %v928
      %v993 = vsel %vm865, %v757, %v929
      %v994 = vsel %vm866, %v762, %v930
      %v995 = vsel %vm867, %v765, %v931
      %v996 = vsel %vm868, %v770, %v932
      %v997 = vsel %vm869, %v773, %v933
      %v998 = vsel %vm870, %v778, %v934
      %v999 = vsel %vm871, %v781, %v935
      %v1000 = vsel %vm872, %v786, %v936
      %v1001 = vsel %vm873, %v789, %v937
      %v1002 = vsel %vm874, %v794, %v938
      %v1003 = vsel %vm875, %v797, %v939
      %v1004 = vsel %vm876, %v802, %v940
      %v1005 = vsel %vm877, %v805, %v941
      %v1006 = vsel %vm878, %v810, %v942
      %v1007 = vsel %vm879, %v813, %v943
      %v1008 = vpack.c.bf16 %v945, %v944
      %v1009 = vpack.c.bf16 %v947, %v946
      %v1010 = vpack.c.bf16 %v949, %v948
      %v1011 = vpack.c.bf16 %v951, %v950
      %v1012 = vpack.c.bf16 %v953, %v952
      %v1013 = vpack.c.bf16 %v955, %v954
      %v1014 = vpack.c.bf16 %v957, %v956
      %v1015 = vpack.c.bf16 %v959, %v958
      %v1016 = vpack.c.bf16 %v961, %v960
      %v1017 = vpack.c.bf16 %v963, %v962
      %v1018 = vpack.c.bf16 %v965, %v964
      %v1019 = vpack.c.bf16 %v967, %v966
      %v1020 = vpack.c.bf16 %v969, %v968
      %v1021 = vpack.c.bf16 %v971, %v970
      %v1022 = vpack.c.bf16 %v973, %v972
      %v1023 = vpack.c.bf16 %v975, %v974
      %v1024 = vpack.c.bf16 %v977, %v976
      %v1025 = vpack.c.bf16 %v979, %v978
      %v1026 = vpack.c.bf16 %v981, %v980
      %v1027 = vpack.c.bf16 %v983, %v982
      %v1028 = vpack.c.bf16 %v985, %v984
      %v1029 = vpack.c.bf16 %v987, %v986
      %v1030 = vpack.c.bf16 %v989, %v988
      %v1031 = vpack.c.bf16 %v991, %v990
      %v1032 = vpack.c.bf16 %v993, %v992
      %v1033 = vpack.c.bf16 %v995, %v994
      %v1034 = vpack.c.bf16 %v997, %v996
      %v1035 = vpack.c.bf16 %v999, %v998
      %v1036 = vpack.c.bf16 %v1001, %v1000
      %v1037 = vpack.c.bf16 %v1003, %v1002
      %v1038 = vpack.c.bf16 %v1005, %v1004
      %v1039 = vpack.c.bf16 %v1007, %v1006
      %v1072 = vunpack.c.l.b16 %v1008
      %v1073 = vunpack.c.h.b16 %v1008
      %v1074 = vunpack.c.l.b16 %v1009
      %v1075 = vunpack.c.h.b16 %v1009
      %v1076 = vunpack.c.l.b16 %v1010
      %v1077 = vunpack.c.h.b16 %v1010
      %v1078 = vunpack.c.l.b16 %v1011
      %v1079 = vunpack.c.h.b16 %v1011
      %v1080 = vunpack.c.l.b16 %v1012
      %v1081 = vunpack.c.h.b16 %v1012
      %v1082 = vunpack.c.l.b16 %v1013
      %v1083 = vunpack.c.h.b16 %v1013
      %v1084 = vunpack.c.l.b16 %v1014
      %v1085 = vunpack.c.h.b16 %v1014
      %v1086 = vunpack.c.l.b16 %v1015
      %v1087 = vunpack.c.h.b16 %v1015
      %v1088 = vunpack.c.l.b16 %v1016
      %v1089 = vunpack.c.h.b16 %v1016
      %v1090 = vunpack.c.l.b16 %v1017
      %v1091 = vunpack.c.h.b16 %v1017
      %v1092 = vunpack.c.l.b16 %v1018
      %v1093 = vunpack.c.h.b16 %v1018
      %v1094 = vunpack.c.l.b16 %v1019
      %v1095 = vunpack.c.h.b16 %v1019
      %v1096 = vunpack.c.l.b16 %v1020
      %v1097 = vunpack.c.h.b16 %v1020
      %v1098 = vunpack.c.l.b16 %v1021
      %v1099 = vunpack.c.h.b16 %v1021
      %v1100 = vunpack.c.l.b16 %v1022
      %v1101 = vunpack.c.h.b16 %v1022
      %v1102 = vunpack.c.l.b16 %v1023
      %v1103 = vunpack.c.h.b16 %v1023
      %v1104 = vunpack.c.l.b16 %v1024
      %v1105 = vunpack.c.h.b16 %v1024
      %v1106 = vunpack.c.l.b16 %v1025
      %v1107 = vunpack.c.h.b16 %v1025
      %v1108 = vunpack.c.l.b16 %v1026
      %v1109 = vunpack.c.h.b16 %v1026
      %v1110 = vunpack.c.l.b16 %v1027
      %v1111 = vunpack.c.h.b16 %v1027
      %v1112 = vunpack.c.l.b16 %v1028
      %v1113 = vunpack.c.h.b16 %v1028
      %v1114 = vunpack.c.l.b16 %v1029
      %v1115 = vunpack.c.h.b16 %v1029
      %v1116 = vunpack.c.l.b16 %v1030
      %v1117 = vunpack.c.h.b16 %v1030
      %v1118 = vunpack.c.l.b16 %v1031
      %v1119 = vunpack.c.h.b16 %v1031
      %v1120 = vunpack.c.l.b16 %v1032
      %v1121 = vunpack.c.h.b16 %v1032
      %v1122 = vunpack.c.l.b16 %v1033
      %v1123 = vunpack.c.h.b16 %v1033
      %v1124 = vunpack.c.l.b16 %v1034
      %v1125 = vunpack.c.h.b16 %v1034
      %v1126 = vunpack.c.l.b16 %v1035
      %v1127 = vunpack.c.h.b16 %v1035
      %v1128 = vunpack.c.l.b16 %v1036
      %v1129 = vunpack.c.h.b16 %v1036
      %v1130 = vunpack.c.l.b16 %v1037
      %v1131 = vunpack.c.h.b16 %v1037
      %v1132 = vunpack.c.l.b16 %v1038
      %v1133 = vunpack.c.h.b16 %v1038
      %v1134 = vunpack.c.l.b16 %v1039
      %v1135 = vunpack.c.h.b16 %v1039
      %v1136 = vpack.c.b16 %v1072, %v1072
      %v1137 = vpack.c.b16 %v1073, %v1073
      %v1138 = vpack.c.b16 %v1074, %v1074
      %v1139 = vpack.c.b16 %v1075, %v1075
      %v1140 = vpack.c.b16 %v1076, %v1076
      %v1141 = vpack.c.b16 %v1077, %v1077
      %v1142 = vpack.c.b16 %v1078, %v1078
      %v1143 = vpack.c.b16 %v1079, %v1079
      %v1144 = vpack.c.b16 %v1080, %v1080
      %v1145 = vpack.c.b16 %v1081, %v1081
      %v1146 = vpack.c.b16 %v1082, %v1082
      %v1147 = vpack.c.b16 %v1083, %v1083
      %v1148 = vpack.c.b16 %v1084, %v1084
      %v1149 = vpack.c.b16 %v1085, %v1085
      %v1150 = vpack.c.b16 %v1086, %v1086
      %v1151 = vpack.c.b16 %v1087, %v1087
      %v1152 = vpack.c.b16 %v1088, %v1088
      %v1153 = vpack.c.b16 %v1089, %v1089
      %v1154 = vpack.c.b16 %v1090, %v1090
      %v1155 = vpack.c.b16 %v1091, %v1091
      %v1156 = vpack.c.b16 %v1092, %v1092
      %v1157 = vpack.c.b16 %v1093, %v1093
      %v1158 = vpack.c.b16 %v1094, %v1094
      %v1159 = vpack.c.b16 %v1095, %v1095
      %v1160 = vpack.c.b16 %v1096, %v1096
      %v1161 = vpack.c.b16 %v1097, %v1097
      %v1162 = vpack.c.b16 %v1098, %v1098
      %v1163 = vpack.c.b16 %v1099, %v1099
      %v1164 = vpack.c.b16 %v1100, %v1100
      %v1165 = vpack.c.b16 %v1101, %v1101
      %v1166 = vpack.c.b16 %v1102, %v1102
      %v1167 = vpack.c.b16 %v1103, %v1103
      %v1168 = vpack.c.b16 %v1104, %v1104
      %v1169 = vpack.c.b16 %v1105, %v1105
      %v1170 = vpack.c.b16 %v1106, %v1106
      %v1171 = vpack.c.b16 %v1107, %v1107
      %v1172 = vpack.c.b16 %v1108, %v1108
      %v1173 = vpack.c.b16 %v1109, %v1109
      %v1174 = vpack.c.b16 %v1110, %v1110
      %v1175 = vpack.c.b16 %v1111, %v1111
      %v1176 = vpack.c.b16 %v1112, %v1112
      %v1177 = vpack.c.b16 %v1113, %v1113
      %v1178 = vpack.c.b16 %v1114, %v1114
      %v1179 = vpack.c.b16 %v1115, %v1115
      %v1180 = vpack.c.b16 %v1116, %v1116
      %v1181 = vpack.c.b16 %v1117, %v1117
      %v1182 = vpack.c.b16 %v1118, %v1118
      %v1183 = vpack.c.b16 %v1119, %v1119
      %v1184 = vpack.c.b16 %v1120, %v1120
      %v1185 = vpack.c.b16 %v1121, %v1121
      %v1186 = vpack.c.b16 %v1122, %v1122
      %v1187 = vpack.c.b16 %v1123, %v1123
      %v1188 = vpack.c.b16 %v1124, %v1124
      %v1189 = vpack.c.b16 %v1125, %v1125
      %v1190 = vpack.c.b16 %v1126, %v1126
      %v1191 = vpack.c.b16 %v1127, %v1127
      %v1192 = vpack.c.b16 %v1128, %v1128
      %v1193 = vpack.c.b16 %v1129, %v1129
      %v1194 = vpack.c.b16 %v1130, %v1130
      %v1195 = vpack.c.b16 %v1131, %v1131
      %v1196 = vpack.c.b16 %v1132, %v1132
      %v1197 = vpack.c.b16 %v1133, %v1133
      %v1198 = vpack.c.b16 %v1134, %v1134
      %v1199 = vpack.c.b16 %v1135, %v1135
      %1264 = vst [vmem:[%s172] sm:$0xf] %v1136
      %1265 = vst [vmem:[%s172 + $0x4] sm:$0xf] %v1137
      %1266 = vst [vmem:[%s172 + $0x8] sm:$0xf] %v1138
      %1267 = vst [vmem:[%s172 + $0xc] sm:$0xf] %v1139
      %1268 = vst [vmem:[%s172 + $0x10] sm:$0xf] %v1140
      %1269 = vst [vmem:[%s172 + $0x14] sm:$0xf] %v1141
      %1270 = vst [vmem:[%s172 + $0x18] sm:$0xf] %v1142
      %1271 = vst [vmem:[%s172 + $0x1c] sm:$0xf] %v1143
      %1272 = vst [vmem:[%s172 + $0x20] sm:$0xf] %v1144
      %1273 = vst [vmem:[%s172 + $0x24] sm:$0xf] %v1145
      %1274 = vst [vmem:[%s172 + $0x28] sm:$0xf] %v1146
      %1275 = vst [vmem:[%s172 + $0x2c] sm:$0xf] %v1147
      %1276 = vst [vmem:[%s172 + $0x30] sm:$0xf] %v1148
      %1277 = vst [vmem:[%s172 + $0x34] sm:$0xf] %v1149
      %1278 = vst [vmem:[%s172 + $0x38] sm:$0xf] %v1150
      %1279 = vst [vmem:[%s172 + $0x3c] sm:$0xf] %v1151
      %1280 = vst [vmem:[%s172 + $0x40] sm:$0xf] %v1152
      %1281 = vst [vmem:[%s172 + $0x44] sm:$0xf] %v1153
      %1282 = vst [vmem:[%s172 + $0x48] sm:$0xf] %v1154
      %1283 = vst [vmem:[%s172 + $0x4c] sm:$0xf] %v1155
      %1284 = vst [vmem:[%s172 + $0x50] sm:$0xf] %v1156
      %1285 = vst [vmem:[%s172 + $0x54] sm:$0xf] %v1157
      %1286 = vst [vmem:[%s172 + $0x58] sm:$0xf] %v1158
      %1287 = vst [vmem:[%s172 + $0x5c] sm:$0xf] %v1159
      %1288 = vst [vmem:[%s172 + $0x60] sm:$0xf] %v1160
      %1289 = vst [vmem:[%s172 + $0x64] sm:$0xf] %v1161
      %1290 = vst [vmem:[%s172 + $0x68] sm:$0xf] %v1162
      %1291 = vst [vmem:[%s172 + $0x6c] sm:$0xf] %v1163
      %1292 = vst [vmem:[%s172 + $0x70] sm:$0xf] %v1164
      %1293 = vst [vmem:[%s172 + $0x74] sm:$0xf] %v1165
      %1294 = vst [vmem:[%s172 + $0x78] sm:$0xf] %v1166
      %1295 = vst [vmem:[%s172 + $0x7c] sm:$0xf] %v1167
      %1296 = vst [vmem:[%s172 + $0x80] sm:$0xf] %v1168
      %1297 = vst [vmem:[%s172 + $0x84] sm:$0xf] %v1169
      %1298 = vst [vmem:[%s172 + $0x88] sm:$0xf] %v1170
      %1299 = vst [vmem:[%s172 + $0x8c] sm:$0xf] %v1171
      %1300 = vst [vmem:[%s172 + $0x90] sm:$0xf] %v1172
      %1301 = vst [vmem:[%s172 + $0x94] sm:$0xf] %v1173
      %1302 = vst [vmem:[%s172 + $0x98] sm:$0xf] %v1174
      %1303 = vst [vmem:[%s172 + $0x9c] sm:$0xf] %v1175
      %1304 = vst [vmem:[%s172 + $0xa0] sm:$0xf] %v1176
      %1305 = vst [vmem:[%s172 + $0xa4] sm:$0xf] %v1177
      %1306 = vst [vmem:[%s172 + $0xa8] sm:$0xf] %v1178
      %1307 = vst [vmem:[%s172 + $0xac] sm:$0xf] %v1179
      %1308 = vst [vmem:[%s172 + $0xb0] sm:$0xf] %v1180
      %1309 = vst [vmem:[%s172 + $0xb4] sm:$0xf] %v1181
      %1310 = vst [vmem:[%s172 + $0xb8] sm:$0xf] %v1182
      %1311 = vst [vmem:[%s172 + $0xbc] sm:$0xf] %v1183
      %1312 = vst [vmem:[%s172 + $0xc0] sm:$0xf] %v1184
      %1313 = vst [vmem:[%s172 + $0xc4] sm:$0xf] %v1185
      %1314 = vst [vmem:[%s172 + $0xc8] sm:$0xf] %v1186
      %1315 = vst [vmem:[%s172 + $0xcc] sm:$0xf] %v1187
      %1316 = vst [vmem:[%s172 + $0xd0] sm:$0xf] %v1188
      %1317 = vst [vmem:[%s172 + $0xd4] sm:$0xf] %v1189
      %1318 = vst [vmem:[%s172 + $0xd8] sm:$0xf] %v1190
      %1319 = vst [vmem:[%s172 + $0xdc] sm:$0xf] %v1191
      %1320 = vst [vmem:[%s172 + $0xe0] sm:$0xf] %v1192
      %1321 = vst [vmem:[%s172 + $0xe4] sm:$0xf] %v1193
      %1322 = vst [vmem:[%s172 + $0xe8] sm:$0xf] %v1194
      %1323 = vst [vmem:[%s172 + $0xec] sm:$0xf] %v1195
      %1324 = vst [vmem:[%s172 + $0xf0] sm:$0xf] %v1196
      %1325 = vst [vmem:[%s172 + $0xf4] sm:$0xf] %v1197
      %1326 = vst [vmem:[%s172 + $0xf8] sm:$0xf] %v1198
      %1327 = vst [vmem:[%s172 + $0xfc] sm:$0xf] %v1199
      %s1328 = smul.u32 64, %s14
      %p1329 = scmp.lt.s32.totalorder %s1328, 127
      %s1330 = scalar_select %p1329, %s1328, 127
      %s1331 = smul.addr %s1330, 4
      %s1332 = scalar_lea.vmem %s3, %s1331
      // Predicated region
      $region33: #{_forward_impl.6} parent=31 // pred_check
        %p1333 = pneg %p100
      $region34: #{_forward_impl.6} parent=31 // pred_check_branch
        %1335 = sbr.rel (%p1333) target = $region36
      $region35: #{_forward_impl.6} parent=31 // pred_region
        %s1336 = smul.u32 64, %s14
      $region36: #{_forward_impl.6} parent=31 // pred_fallthru
        _
    $region32: #{_forward_impl.6} parent=5 // pred_fallthru
      _
    %p1337 = scmp.le.s32.totalorder 2, %s9
    // Predicated region
    $region37: #{_forward_impl.6} parent=5 // pred_check
      %p1338 = pneg %p1337
    $region38: #{_forward_impl.6} parent=5 // pred_check_branch
      %1340 = sbr.rel (%p1338) target = $region40
    $region39: #{_forward_impl.6} parent=5 // pred_region
      %s1341 = ssub.s32 %s9, 2
      // Predicated region
      $region41: #{_forward_impl.6} parent=39 // pred_check
        %p1342 = pneg %p106
      $region42: #{_forward_impl.6} parent=39 // pred_check_branch
        %1344 = sbr.rel (%p1342) target = $region44
      $region43: #{_forward_impl.6} parent=39 // pred_region
        %s1345 = smul.u32 64, %s15
        %p1346 = scmp.lt.s32.totalorder %s1345, 127
        %s1347 = scalar_select %p1346, %s1345, 127
        %s1348 = smul.addr %s1347, 4
        %s1349 = scalar_lea.vmem %s3, %s1348
      $region44: #{_forward_impl.6} parent=39 // pred_fallthru
        _
    $region40: #{_forward_impl.6} parent=5 // pred_fallthru
      _
  $region6: #{_forward_impl.6} parent=0 // loop_footer
    %s13 = sadd.s32 1, %s9
  $region7: #{_forward_impl.6} parent=0 // loop_footer_branch
    %8 = sbr.rel target = $region3
  $region8: #{_forward_impl.6} parent=0 // loop_exit
    _

// kernel: _forward_impl.7
$region0: #{_forward_impl.7}
  #allocation0 [shape = 'u32[]', space=smem, size = 0x4, offset = 0x4, fixed_abs, tag = 'smem constant byte address 0x4 - core index']
  #allocation1 [shape = 'u32[144,128]{1,0:T(1,128)}', space=vmem, size = 0x12000, scoped, tag = 'internal scratch']
  %s0 = inlined_call_operand.vmem [shape: bf16[256,128], index: 0, kind: input, shape index: {}]
  %s1 = inlined_call_operand.vmem [shape: bf16[128,128], index: 1, kind: input, shape index: {}]
  %s2 = inlined_call_operand.vmem [shape: f32[1,128], index: 2, kind: input, shape index: {}]
  %s3 = inlined_call_operand.vmem [shape: bf16[256,128], index: 3, kind: output, shape index: {}]
  %s4 = sld [smem:[#allocation0]]
  $region45: #{_forward_impl.7} parent=0
    _
  %s6 = ssub.s32 1, %s4
  %s7 = scalar_select 0, %s6, %s4
  loop: start=0, step=1, limit=4
  $region2: #{_forward_impl.7} parent=0 // loop_pre_header
    _
  $region3: #{_forward_impl.7} parent=0 // loop_header
    %s9 = sphi 0, %s13
    %p10 = scmp.ge.s32.totalorder %s9, 4
    %s19 = sphi 0, %s21
    %s22 = sphi 0, %s19
    %s23 = sphi 0, %s22
    %s39 = sphi 0, %s23
    %s43 = sphi 0, %s43
    %s45 = sphi 0, %s43
    %s46 = sphi 0, %s45
    %s60 = sphi 0, %s46
    %s64 = sphi 0, %s64
    %s66 = sphi 0, %s64
    %s67 = sphi 0, %s66
    %s81 = sphi 0, %s67
    %s87 = sphi 0, %s89
    %s90 = sphi 0, %s87
    %s91 = sphi 0, %s90
    %s107 = sphi 0, %s91
  $region4: #{_forward_impl.7} parent=0 // loop_header_branch
    %12 = sbr.rel (%p10) target = $region8
  $region5: #{_forward_impl.7} parent=0 // loop_body
    %s14 = ssub.s32 %s9, 1
    %s15 = ssub.s32 %s9, 2
    %s16 = sadd.s32 %s9, 1
    %s17 = ssub.s32 %s9, %s16
    %p18 = scmp.eq.s32.totalorder %s17, 0
    %s20 = sadd.s32 %s19, 1
    %s21 = scalar_select %p18, %s19, %s20
    %p24 = pneg %p18
    %p25 = scmp.eq.s32.totalorder %s9, 1
    %p26 = por %p24, %p25
    %p27 = scmp.ne.s32.totalorder %s19, %s22
    %p28 = scmp.eq.s32.totalorder %s9, 0
    %p29 = por %p27, %p28
    %p30 = scmp.ne.s32.totalorder %s19, %s22
    %p31 = scmp.eq.s32.totalorder %s14, 1
    %p32 = por %p30, %p31
    %p33 = scmp.ne.s32.totalorder %s22, %s23
    %p34 = scmp.eq.s32.totalorder %s14, 0
    %p35 = por %p33, %p34
    %p36 = scmp.ne.s32.totalorder %s22, %s23
    %p37 = scmp.eq.s32.totalorder %s15, 1
    %p38 = por %p36, %p37
    %p40 = scmp.ne.s32.totalorder %s23, %s39
    %p41 = scmp.eq.s32.totalorder %s15, 0
    %p42 = por %p40, %p41
    %s44 = sadd.s32 %s43, 1
    %p47 = scmp.eq.s32.totalorder %s9, 1
    %p48 = scmp.ne.s32.totalorder %s43, %s45
    %p49 = scmp.eq.s32.totalorder %s9, 0
    %p50 = por %p48, %p49
    %p51 = scmp.ne.s32.totalorder %s43, %s45
    %p52 = scmp.eq.s32.totalorder %s14, 1
    %p53 = por %p51, %p52
    %p54 = scmp.ne.s32.totalorder %s45, %s46
    %p55 = scmp.eq.s32.totalorder %s14, 0
    %p56 = por %p54, %p55
    %p57 = scmp.ne.s32.totalorder %s45, %s46
    %p58 = scmp.eq.s32.totalorder %s15, 1
    %p59 = por %p57, %p58
    %p61 = scmp.ne.s32.totalorder %s46, %s60
    %p62 = scmp.eq.s32.totalorder %s15, 0
    %p63 = por %p61, %p62
    %s65 = sadd.s32 %s64, 1
    %p68 = scmp.eq.s32.totalorder %s9, 1
    %p69 = scmp.ne.s32.totalorder %s64, %s66
    %p70 = scmp.eq.s32.totalorder %s9, 0
    %p71 = por %p69, %p70
    %p72 = scmp.ne.s32.totalorder %s64, %s66
    %p73 = scmp.eq.s32.totalorder %s14, 1
    %p74 = por %p72, %p73
    %p75 = scmp.ne.s32.totalorder %s66, %s67
    %p76 = scmp.eq.s32.totalorder %s14, 0
    %p77 = por %p75, %p76
    %p78 = scmp.ne.s32.totalorder %s66, %s67
    %p79 = scmp.eq.s32.totalorder %s15, 1
    %p80 = por %p78, %p79
    %p82 = scmp.ne.s32.totalorder %s67, %s81
    %p83 = scmp.eq.s32.totalorder %s15, 0
    %p84 = por %p82, %p83
    %s85 = ssub.s32 %s9, %s16
    %p86 = scmp.eq.s32.totalorder %s85, 0
    %s88 = sadd.s32 %s87, 1
    %s89 = scalar_select %p86, %s87, %s88
    %p92 = pneg %p86
    %p93 = scmp.eq.s32.totalorder %s9, 1
    %p94 = por %p92, %p93
    %p95 = scmp.ne.s32.totalorder %s87, %s90
    %p96 = scmp.eq.s32.totalorder %s9, 0
    %p97 = por %p95, %p96
    %p98 = scmp.ne.s32.totalorder %s87, %s90
    %p99 = scmp.eq.s32.totalorder %s14, 1
    %p100 = por %p98, %p99
    %p101 = scmp.ne.s32.totalorder %s90, %s91
    %p102 = scmp.eq.s32.totalorder %s14, 0
    %p103 = por %p101, %p102
    %p104 = scmp.ne.s32.totalorder %s90, %s91
    %p105 = scmp.eq.s32.totalorder %s15, 1
    %p106 = por %p104, %p105
    %p108 = scmp.ne.s32.totalorder %s91, %s107
    %p109 = scmp.eq.s32.totalorder %s15, 0
    %p110 = por %p108, %p109
    %p111 = scmp.le.s32.totalorder 1, %s9
    %p112 = scmp.lt.s32.totalorder %s9, 3
    %p113 = pnand %p111, %p112
    %p114 = pneg %p113
    // Predicated region
    $region9: #{_forward_impl.7} parent=5 // pred_check
      _
    $region10: #{_forward_impl.7} parent=5 // pred_check_branch
      %116 = sbr.rel (%p113) target = $region12
    $region11: #{_forward_impl.7} parent=5 // pred_region
      %s117 = ssub.s32 %s9, 1
      // Predicated region
      $region13: #{_forward_impl.7} parent=11 // pred_check
        %p118 = pneg %p56
      $region14: #{_forward_impl.7} parent=11 // pred_check_branch
        %120 = sbr.rel (%p118) target = $region16
      $region15: #{_forward_impl.7} parent=11 // pred_region
        _
      $region16: #{_forward_impl.7} parent=11 // pred_fallthru
        _
      // Predicated region
      $region17: #{_forward_impl.7} parent=11 // pred_check
        %p121 = pneg %p77
      $region18: #{_forward_impl.7} parent=11 // pred_check_branch
        %123 = sbr.rel (%p121) target = $region20
      $region19: #{_forward_impl.7} parent=11 // pred_region
        _
      $region20: #{_forward_impl.7} parent=11 // pred_fallthru
        _
    $region12: #{_forward_impl.7} parent=5 // pred_fallthru
      _
    %p124 = scmp.lt.s32.totalorder %s9, 2
    // Predicated region
    $region21: #{_forward_impl.7} parent=5 // pred_check
      %p125 = pneg %p124
    $region22: #{_forward_impl.7} parent=5 // pred_check_branch
      %127 = sbr.rel (%p125) target = $region24
    $region23: #{_forward_impl.7} parent=5 // pred_region
      // Predicated region
      $region25: #{_forward_impl.7} parent=23 // pred_check
        %p128 = pneg %p29
      $region26: #{_forward_impl.7} parent=23 // pred_check_branch
        %130 = sbr.rel (%p128) target = $region28
      $region27: #{_forward_impl.7} parent=23 // pred_region
        %s131 = smul.u32 16, %s9
        %p132 = scmp.lt.s32.totalorder %s131, 31
        %s133 = scalar_select %p132, %s131, 31
        %s134 = smul.addr %s133, 4
        %s135 = scalar_lea.vmem %s0, %s134
        %s136 = smul.u32 16, %s9
      $region28: #{_forward_impl.7} parent=23 // pred_fallthru
        _
    $region24: #{_forward_impl.7} parent=5 // pred_fallthru
      _
    %p137 = scmp.le.s32.totalorder 1, %s9
    %p138 = scmp.lt.s32.totalorder %s9, 3
    %p139 = pnand %p137, %p138
    %p140 = pneg %p139
    // Predicated region
    $region29: #{_forward_impl.7} parent=5 // pred_check
      _
    $region30: #{_forward_impl.7} parent=5 // pred_check_branch
      %142 = sbr.rel (%p139) target = $region32
    $region31: #{_forward_impl.7} parent=5 // pred_region
      %s143 = ssub.s32 %s9, 1
      %s144 = smul.u32 16, %s14
      %p145 = scmp.lt.s32.totalorder %s144, 31
      %s146 = scalar_select %p145, %s144, 31
      %s147 = smul.addr %s146, 4
      %s148 = scalar_lea.vmem %s0, %s147
      %p149 = pneg %p35
      %p150 = pneg %p32
      %p151 = pneg %p56
      %p152 = pneg %p53
      %p153 = pneg %p77
      %p154 = pneg %p74
      %p155 = pneg %p103
      %p156 = pneg %p100
      %s157 = smul.u32 16, %s14
      %p158 = scmp.lt.s32.totalorder %s157, 31
      %s159 = scalar_select %p158, %s157, 31
      %s160 = smul.addr %s159, 4
      %s161 = scalar_lea.vmem %s3, %s160
      %s162 = smul.u32 16, %s14
      %p163 = scmp.lt.s32.totalorder %s162, 31
      %s164 = scalar_select %p163, %s162, 31
      %s165 = smul.addr %s164, 4
      %s166 = scalar_lea.vmem %s0, %s165
      %s167 = smul.u32 16, %s14
      %s168 = smul.u32 16, %s14
      %p169 = scmp.lt.s32.totalorder %s168, 31
      %s170 = scalar_select %p169, %s168, 31
      %s171 = smul.addr %s170, 4
      %s172 = scalar_lea.vmem %s3, %s171
      %s173 = smul.u32 16, %s14
      %v175 = vld [vmem:[%s166] sm:$0xf]
      %v176 = vld [vmem:[%s166 + $0x4] sm:$0xf]
      %v177 = vld [vmem:[%s166 + $0x8] sm:$0xf]
      %v178 = vld [vmem:[%s166 + $0xc] sm:$0xf]
      %v179 = vld [vmem:[%s166 + $0x10] sm:$0xf]
      %v180 = vld [vmem:[%s166 + $0x14] sm:$0xf]
      %v181 = vld [vmem:[%s166 + $0x18] sm:$0xf]
      %v182 = vld [vmem:[%s166 + $0x1c] sm:$0xf]
      %v183 = vld [vmem:[%s166 + $0x20] sm:$0xf]
      %v184 = vld [vmem:[%s166 + $0x24] sm:$0xf]
      %v185 = vld [vmem:[%s166 + $0x28] sm:$0xf]
      %v186 = vld [vmem:[%s166 + $0x2c] sm:$0xf]
      %v187 = vld [vmem:[%s166 + $0x30] sm:$0xf]
      %v188 = vld [vmem:[%s166 + $0x34] sm:$0xf]
      %v189 = vld [vmem:[%s166 + $0x38] sm:$0xf]
      %v190 = vld [vmem:[%s166 + $0x3c] sm:$0xf]
      %v191 = vld [vmem:[%s1] sm:$0xf]
      %v192 = vld [vmem:[%s1 + $0x4] sm:$0xf]
      %v193 = vld [vmem:[%s1 + $0x8] sm:$0xf]
      %v194 = vld [vmem:[%s1 + $0xc] sm:$0xf]
      %v195 = vld [vmem:[%s1 + $0x10] sm:$0xf]
      %v196 = vld [vmem:[%s1 + $0x14] sm:$0xf]
      %v197 = vld [vmem:[%s1 + $0x18] sm:$0xf]
      %v198 = vld [vmem:[%s1 + $0x1c] sm:$0xf]
      %v199 = vld [vmem:[%s1 + $0x20] sm:$0xf]
      %v200 = vld [vmem:[%s1 + $0x24] sm:$0xf]
      %v201 = vld [vmem:[%s1 + $0x28] sm:$0xf]
      %v202 = vld [vmem:[%s1 + $0x2c] sm:$0xf]
      %v203 = vld [vmem:[%s1 + $0x30] sm:$0xf]
      %v204 = vld [vmem:[%s1 + $0x34] sm:$0xf]
      %v205 = vld [vmem:[%s1 + $0x38] sm:$0xf]
      %v206 = vld [vmem:[%s1 + $0x3c] sm:$0xf]
      %v207 = vld [vmem:[%s2] sm:$0x1]
      %v209 = vlaneseq
      %v210 = vshrl.u32 %v209, 7
      %v211 = vsub.s32 0, %v210
      %v212 = vrot.slane %v207, %v211
      %v230 = vunpack.c.l.b16 %v175
      %v231 = vunpack.c.l.b16 %v176
      %v232 = vunpack.c.l.b16 %v177
      %v233 = vunpack.c.l.b16 %v178
      %v234 = vunpack.c.l.b16 %v179
      %v235 = vunpack.c.l.b16 %v180
      %v236 = vunpack.c.l.b16 %v181
      %v237 = vunpack.c.l.b16 %v182
      %v238 = vunpack.c.l.b16 %v183
      %v239 = vunpack.c.l.b16 %v184
      %v240 = vunpack.c.l.b16 %v185
      %v241 = vunpack.c.l.b16 %v186
      %v242 = vunpack.c.l.b16 %v187
      %v243 = vunpack.c.l.b16 %v188
      %v244 = vunpack.c.l.b16 %v189
      %v245 = vunpack.c.l.b16 %v190
      %v246 = vpack.c.b16 %v231, %v230
      %v247 = vpack.c.b16 %v233, %v232
      %v248 = vpack.c.b16 %v235, %v234
      %v249 = vpack.c.b16 %v237, %v236
      %v250 = vpack.c.b16 %v239, %v238
      %v251 = vpack.c.b16 %v241, %v240
      %v252 = vpack.c.b16 %v243, %v242
      %v253 = vpack.c.b16 %v245, %v244
      %v278 = vunpack.c.l.b16 %v191
      %v279 = vunpack.c.l.b16 %v192
      %v280 = vunpack.c.l.b16 %v193
      %v281 = vunpack.c.l.b16 %v194
      %v282 = vunpack.c.l.b16 %v195
      %v283 = vunpack.c.l.b16 %v196
      %v284 = vunpack.c.l.b16 %v197
      %v285 = vunpack.c.l.b16 %v198
      %v286 = vunpack.c.l.b16 %v199
      %v287 = vunpack.c.l.b16 %v200
      %v288 = vunpack.c.l.b16 %v201
      %v289 = vunpack.c.l.b16 %v202
      %v290 = vunpack.c.l.b16 %v203
      %v291 = vunpack.c.l.b16 %v204
      %v292 = vunpack.c.l.b16 %v205
      %v293 = vunpack.c.l.b16 %v206
      %v294 = vpack.c.b16 %v279, %v278
      %v295 = vpack.c.b16 %v281, %v280
      %v296 = vpack.c.b16 %v283, %v282
      %v297 = vpack.c.b16 %v285, %v284
      %v298 = vpack.c.b16 %v287, %v286
      %v299 = vpack.c.b16 %v289, %v288
      %v300 = vpack.c.b16 %v291, %v290
      %v301 = vpack.c.b16 %v293, %v292
      %310 = vmatprep.subr.bf16.mxu0 0
      %311 = vmatpush1.bf16.msra.mxu0 %v294
      %312 = vmatprep.subr.bf16.mxu0 0
      %313 = vmatpush1.bf16.msra.mxu0 %v295
      %314 = vmatprep.subr.bf16.mxu0 0
      %315 = vmatpush1.bf16.msra.mxu0 %v296
      %316 = vmatprep.subr.bf16.mxu0 0
      %317 = vmatpush1.bf16.msra.mxu0 %v297
      %318 = vmatprep.subr.bf16.mxu0 0
      %319 = vmatpush1.bf16.msra.mxu0 %v298
      %320 = vmatprep.subr.bf16.mxu0 0
      %321 = vmatpush1.bf16.msra.mxu0 %v299
      %322 = vmatprep.subr.bf16.mxu0 0
      %323 = vmatpush1.bf16.msra.mxu0 %v300
      %324 = vmatprep.subr.bf16.mxu0 0
      %325 = vmatpush1.bf16.msra.mxu0 %v301
      %326 = vmatprep.subr.bf16.mxu0 0
      %327 = vmatpush1.bf16.msra.mxu0 0
      %328 = vmatprep.subr.bf16.mxu0 0
      %329 = vmatpush1.bf16.msra.mxu0 0
      %330 = vmatprep.subr.bf16.mxu0 0
      %331 = vmatpush1.bf16.msra.mxu0 0
      %332 = vmatprep.subr.bf16.mxu0 0
      %333 = vmatpush1.bf16.msra.mxu0 0
      %334 = vmatprep.subr.bf16.mxu0 0
      %335 = vmatpush1.bf16.msra.mxu0 0
      %336 = vmatprep.subr.bf16.mxu0 0
      %337 = vmatpush1.bf16.msra.mxu0 0
      %338 = vmatprep.subr.bf16.mxu0 0
      %339 = vmatpush1.bf16.msra.mxu0 0
      %340 = vmatprep.subr.bf16.mxu0 0
      %341 = vmatpush1.bf16.msra.mxu0 0
      %342 = vmatprep.mubr.bf16.mxu0 0
      %343 = vmatmul.mubr.bf16.gmra.mrb[0].mxu0 %v246
      %v344 = vpop.f32.mrb[0].mxu0
      %v345 = vadd.f32 %v212, %v344
      %v346 = vpop.f32.mrb[0].mxu0
      %v347 = vpop.f32.mrb[0].mxu0
      %v348 = vadd.f32 %v212, %v347
      %v349 = vpop.f32.mrb[0].mxu0
      %350 = vmatprep.mubr.bf16.mxu0 0
      %351 = vmatmul.mubr.bf16.gmra.mrb[0].mxu0 %v247
      %v352 = vpop.f32.mrb[0].mxu0
      %v353 = vadd.f32 %v212, %v352
      %v354 = vpop.f32.mrb[0].mxu0
      %v355 = vpop.f32.mrb[0].mxu0
      %v356 = vadd.f32 %v212, %v355
      %v357 = vpop.f32.mrb[0].mxu0
      %358 = vmatprep.mubr.bf16.mxu0 0
      %359 = vmatmul.mubr.bf16.gmra.mrb[0].mxu0 %v248
      %v360 = vpop.f32.mrb[0].mxu0
      %v361 = vadd.f32 %v212, %v360
      %v362 = vpop.f32.mrb[0].mxu0
      %v363 = vpop.f32.mrb[0].mxu0
      %v364 = vadd.f32 %v212, %v363
      %v365 = vpop.f32.mrb[0].mxu0
      %366 = vmatprep.mubr.bf16.mxu0 0
      %367 = vmatmul.mubr.bf16.gmra.mrb[0].mxu0 %v249
      %v368 = vpop.f32.mrb[0].mxu0
      %v369 = vadd.f32 %v212, %v368
      %v370 = vpop.f32.mrb[0].mxu0
      %v371 = vpop.f32.mrb[0].mxu0
      %v372 = vadd.f32 %v212, %v371
      %v373 = vpop.f32.mrb[0].mxu0
      %374 = vmatprep.mubr.bf16.mxu0 0
      %375 = vmatmul.mubr.bf16.gmra.mrb[0].mxu0 %v250
      %v376 = vpop.f32.mrb[0].mxu0
      %v377 = vadd.f32 %v212, %v376
      %v378 = vpop.f32.mrb[0].mxu0
      %v379 = vpop.f32.mrb[0].mxu0
      %v380 = vadd.f32 %v212, %v379
      %v381 = vpop.f32.mrb[0].mxu0
      %382 = vmatprep.mubr.bf16.mxu0 0
      %383 = vmatmul.mubr.bf16.gmra.mrb[0].mxu0 %v251
      %v384 = vpop.f32.mrb[0].mxu0
      %v385 = vadd.f32 %v212, %v384
      %v386 = vpop.f32.mrb[0].mxu0
      %v387 = vpop.f32.mrb[0].mxu0
      %v388 = vadd.f32 %v212, %v387
      %v389 = vpop.f32.mrb[0].mxu0
      %390 = vmatprep.mubr.bf16.mxu0 0
      %391 = vmatmul.mubr.bf16.gmra.mrb[0].mxu0 %v252
      %v392 = vpop.f32.mrb[0].mxu0
      %v393 = vadd.f32 %v212, %v392
      %v394 = vpop.f32.mrb[0].mxu0
      %v395 = vpop.f32.mrb[0].mxu0
      %v396 = vadd.f32 %v212, %v395
      %v397 = vpop.f32.mrb[0].mxu0
      %398 = vmatprep.mubr.bf16.mxu0 0
      %399 = vmatmul.mubr.bf16.gmra.mrb[0].mxu0 %v253
      %v400 = vpop.f32.mrb[0].mxu0
      %v401 = vadd.f32 %v212, %v400
      %v402 = vpop.f32.mrb[0].mxu0
      %v403 = vpop.f32.mrb[0].mxu0
      %v404 = vadd.f32 %v212, %v403
      %v405 = vpop.f32.mrb[0].mxu0
      %406 = vdwg.mxu0
      %vm407 = vcmp.gt.f32.partialorder %v345, 0.0
      %vm408 = vcmp.gt.f32.partialorder %v348, 0.0
      %vm409 = vcmp.gt.f32.partialorder %v353, 0.0
      %vm410 = vcmp.gt.f32.partialorder %v356, 0.0
      %vm411 = vcmp.gt.f32.partialorder %v361, 0.0
      %vm412 = vcmp.gt.f32.partialorder %v364, 0.0
      %vm413 = vcmp.gt.f32.partialorder %v369, 0.0
      %vm414 = vcmp.gt.f32.partialorder %v372, 0.0
      %vm415 = vcmp.gt.f32.partialorder %v377, 0.0
      %vm416 = vcmp.gt.f32.partialorder %v380, 0.0
      %vm417 = vcmp.gt.f32.partialorder %v385, 0.0
      %vm418 = vcmp.gt.f32.partialorder %v388, 0.0
      %vm419 = vcmp.gt.f32.partialorder %v393, 0.0
      %vm420 = vcmp.gt.f32.partialorder %v396, 0.0
      %vm421 = vcmp.gt.f32.partialorder %v401, 0.0
      %vm422 = vcmp.gt.f32.partialorder %v404, 0.0
      %v423 = vmul.f32 %v345, 0.2
      %v424 = vmul.f32 %v348, 0.2
      %v425 = vmul.f32 %v353, 0.2
      %v426 = vmul.f32 %v356, 0.2
      %v427 = vmul.f32 %v361, 0.2
      %v428 = vmul.f32 %v364, 0.2
      %v429 = vmul.f32 %v369, 0.2
      %v430 = vmul.f32 %v372, 0.2
      %v431 = vmul.f32 %v377, 0.2
      %v432 = vmul.f32 %v380, 0.2
      %v433 = vmul.f32 %v385, 0.2
      %v434 = vmul.f32 %v388, 0.2
      %v435 = vmul.f32 %v393, 0.2
      %v436 = vmul.f32 %v396, 0.2
      %v437 = vmul.f32 %v401, 0.2
      %v438 = vmul.f32 %v404, 0.2
      %v439 = vsel %vm407, %v345, %v423
      %v440 = vsel %vm408, %v348, %v424
      %v441 = vsel %vm409, %v353, %v425
      %v442 = vsel %vm410, %v356, %v426
      %v443 = vsel %vm411, %v361, %v427
      %v444 = vsel %vm412, %v364, %v428
      %v445 = vsel %vm413, %v369, %v429
      %v446 = vsel %vm414, %v372, %v430
      %v447 = vsel %vm415, %v377, %v431
      %v448 = vsel %vm416, %v380, %v432
      %v449 = vsel %vm417, %v385, %v433
      %v450 = vsel %vm418, %v388, %v434
      %v451 = vsel %vm419, %v393, %v435
      %v452 = vsel %vm420, %v396, %v436
      %v453 = vsel %vm421, %v401, %v437
      %v454 = vsel %vm422, %v404, %v438
      %v455 = vpack.c.bf16 %v440, %v439
      %v456 = vpack.c.bf16 %v442, %v441
      %v457 = vpack.c.bf16 %v444, %v443
      %v458 = vpack.c.bf16 %v446, %v445
      %v459 = vpack.c.bf16 %v448, %v447
      %v460 = vpack.c.bf16 %v450, %v449
      %v461 = vpack.c.bf16 %v452, %v451
      %v462 = vpack.c.bf16 %v454, %v453
      %v471 = vunpack.c.l.b16 %v455
      %v472 = vunpack.c.h.b16 %v455
      %v473 = vunpack.c.l.b16 %v456
      %v474 = vunpack.c.h.b16 %v456
      %v475 = vunpack.c.l.b16 %v457
      %v476 = vunpack.c.h.b16 %v457
      %v477 = vunpack.c.l.b16 %v458
      %v478 = vunpack.c.h.b16 %v458
      %v479 = vunpack.c.l.b16 %v459
      %v480 = vunpack.c.h.b16 %v459
      %v481 = vunpack.c.l.b16 %v460
      %v482 = vunpack.c.h.b16 %v460
      %v483 = vunpack.c.l.b16 %v461
      %v484 = vunpack.c.h.b16 %v461
      %v485 = vunpack.c.l.b16 %v462
      %v486 = vunpack.c.h.b16 %v462
      %v487 = vpack.c.b16 %v471, %v471
      %v488 = vpack.c.b16 %v472, %v472
      %v489 = vpack.c.b16 %v473, %v473
      %v490 = vpack.c.b16 %v474, %v474
      %v491 = vpack.c.b16 %v475, %v475
      %v492 = vpack.c.b16 %v476, %v476
      %v493 = vpack.c.b16 %v477, %v477
      %v494 = vpack.c.b16 %v478, %v478
      %v495 = vpack.c.b16 %v479, %v479
      %v496 = vpack.c.b16 %v480, %v480
      %v497 = vpack.c.b16 %v481, %v481
      %v498 = vpack.c.b16 %v482, %v482
      %v499 = vpack.c.b16 %v483, %v483
      %v500 = vpack.c.b16 %v484, %v484
      %v501 = vpack.c.b16 %v485, %v485
      %v502 = vpack.c.b16 %v486, %v486
      %519 = vst [vmem:[%s172] sm:$0xf] %v487
      %520 = vst [vmem:[%s172 + $0x4] sm:$0xf] %v488
      %521 = vst [vmem:[%s172 + $0x8] sm:$0xf] %v489
      %522 = vst [vmem:[%s172 + $0xc] sm:$0xf] %v490
      %523 = vst [vmem:[%s172 + $0x10] sm:$0xf] %v491
      %524 = vst [vmem:[%s172 + $0x14] sm:$0xf] %v492
      %525 = vst [vmem:[%s172 + $0x18] sm:$0xf] %v493
      %526 = vst [vmem:[%s172 + $0x1c] sm:$0xf] %v494
      %527 = vst [vmem:[%s172 + $0x20] sm:$0xf] %v495
      %528 = vst [vmem:[%s172 + $0x24] sm:$0xf] %v496
      %529 = vst [vmem:[%s172 + $0x28] sm:$0xf] %v497
      %530 = vst [vmem:[%s172 + $0x2c] sm:$0xf] %v498
      %531 = vst [vmem:[%s172 + $0x30] sm:$0xf] %v499
      %532 = vst [vmem:[%s172 + $0x34] sm:$0xf] %v500
      %533 = vst [vmem:[%s172 + $0x38] sm:$0xf] %v501
      %534 = vst [vmem:[%s172 + $0x3c] sm:$0xf] %v502
      %s535 = smul.u32 16, %s14
      %p536 = scmp.lt.s32.totalorder %s535, 31
      %s537 = scalar_select %p536, %s535, 31
      %s538 = smul.addr %s537, 4
      %s539 = scalar_lea.vmem %s3, %s538
      // Predicated region
      $region33: #{_forward_impl.7} parent=31 // pred_check
        %p540 = pneg %p100
      $region34: #{_forward_impl.7} parent=31 // pred_check_branch
        %542 = sbr.rel (%p540) target = $region36
      $region35: #{_forward_impl.7} parent=31 // pred_region
        %s543 = smul.u32 16, %s14
      $region36: #{_forward_impl.7} parent=31 // pred_fallthru
        _
    $region32: #{_forward_impl.7} parent=5 // pred_fallthru
      _
    %p544 = scmp.le.s32.totalorder 2, %s9
    // Predicated region
    $region37: #{_forward_impl.7} parent=5 // pred_check
      %p545 = pneg %p544
    $region38: #{_forward_impl.7} parent=5 // pred_check_branch
      %547 = sbr.rel (%p545) target = $region40
    $region39: #{_forward_impl.7} parent=5 // pred_region
      %s548 = ssub.s32 %s9, 2
      // Predicated region
      $region41: #{_forward_impl.7} parent=39 // pred_check
        %p549 = pneg %p106
      $region42: #{_forward_impl.7} parent=39 // pred_check_branch
        %551 = sbr.rel (%p549) target = $region44
      $region43: #{_forward_impl.7} parent=39 // pred_region
        %s552 = smul.u32 16, %s15
        %p553 = scmp.lt.s32.totalorder %s552, 31
        %s554 = scalar_select %p553, %s552, 31
        %s555 = smul.addr %s554, 4
        %s556 = scalar_lea.vmem %s3, %s555
      $region44: #{_forward_impl.7} parent=39 // pred_fallthru
        _
    $region40: #{_forward_impl.7} parent=5 // pred_fallthru
      _
  $region6: #{_forward_impl.7} parent=0 // loop_footer
    %s13 = sadd.s32 1, %s9
  $region7: #{_forward_impl.7} parent=0 // loop_footer_branch
    %8 = sbr.rel target = $region3
  $region8: #{_forward_impl.7} parent=0 // loop_exit
    _

</llo_original>
